<compile_context>
chip_gen: v7x
topology: tpu7x:2x2x1
jax: 0.10.0
libtpu: 0.0.40
codegen_flags: <defaults>
</compile_context>

<pallas_src>
import functools
import math

import jax
import jax.numpy as jnp
import numpy as np
from jax import lax
from jax.experimental import pallas as pl
from jax.experimental import pallas as pl  # noqa: F811 (kept single alias)
from jax.experimental.pallas import tpu as pltpu  # noqa: F401  (not required here)


def _hardswish(x):
    # x * relu6(x + 3) / 6   (matches torch.nn.Hardswish)
    return x * jnp.clip(x + 3.0, 0.0, 6.0) * (1.0 / 6.0)


# ---------------------------------------------------------------------------
# Pallas kernel: entire TransformerBlocks forward, whole batch, single step.
# ---------------------------------------------------------------------------
def transformer_block_kernel(
    x_ref,                         # [B, C, N]      f32 (channels-first view of NCHW)
    wq_ref, wk_ref, wv_ref,        # [H, C, Dqk]/[H, C, Dqk]/[H, C, Dv]   bf16
    bq_ref, bk_ref, bv_ref,        # [H, 1, Dqk]/[H, 1, Dqk]/[H, 1, Dv]   f32
    wp_ref, bp_ref,                # [H, Dv, C] bf16, [1, C] f32
    wf1_ref, bf1_ref,              # [C, 2C] bf16,    [1, 2C] f32
    wf2_ref, bf2_ref,              # [2C, C] bf16,    [1, C] f32
    bias_ref,                      # [H, B*N, B*N] bf16 block-diagonal attention bias
    o_ref,                         # [B, C, N] f32
    *, batch, n_tok, num_heads,
):
    # --- channels-first -> token slab [B*N, C] (f32 2-D transposes, 8-aligned).
    x_tok = jnp.concatenate([x_ref[b].T for b in range(batch)], axis=0)  # [M, C] f32
    x_bf = x_tok.astype(jnp.bfloat16)

    # --- attention: batch handled via block-diagonal bias; small static head loop.
    # Accumulate residual-1 directly: x + bp + sum_h hardswish(o_h) @ Wp_h.
    acc = x_tok + bp_ref[...]                                            # [M, C] f32
    for h in range(num_heads):
        # Per-head projections (attention scale already folded into Wq/bq).
        q = (jnp.dot(x_bf, wq_ref[h], preferred_element_type=jnp.float32)
             + bq_ref[h]).astype(jnp.bfloat16)                           # [M, Dqk]
        k = (jnp.dot(x_bf, wk_ref[h], preferred_element_type=jnp.float32)
             + bk_ref[h]).astype(jnp.bfloat16)                           # [M, Dqk]
        v = (jnp.dot(x_bf, wv_ref[h], preferred_element_type=jnp.float32)
             + bv_ref[h]).astype(jnp.bfloat16)                           # [M, Dv]

        # q @ k^T over the whole [B*N] slab; cross-batch blocks are masked by
        # the -1e9 entries baked into the block-diagonal bias.
        sim = lax.dot_general(q, k, (((1,), (1,)), ((), ())),
                              preferred_element_type=jnp.float32)        # [M, M]
        sim = sim + bias_ref[h].astype(jnp.float32)

        # Full-lane-width (128) softmax in f32.
        mx = jnp.max(sim, axis=-1, keepdims=True)
        e = jnp.exp(sim - mx)
        inv = pl.reciprocal(jnp.sum(e, axis=-1, keepdims=True), approx=True)
        p = (e * inv).astype(jnp.bfloat16)

        o_h = jnp.dot(p, v, preferred_element_type=jnp.float32)          # [M, Dv]
        o_h = _hardswish(o_h).astype(jnp.bfloat16)                       # pre-projection
        acc = acc + jnp.dot(o_h, wp_ref[h], preferred_element_type=jnp.float32)
    x1 = acc                                                             # [M, C] f32

    # --- feed forward: 1x1 conv -> hardswish -> 1x1 conv, + residual 2.
    f1 = _hardswish(jnp.dot(x1.astype(jnp.bfloat16), wf1_ref[...],
                            preferred_element_type=jnp.float32) + bf1_ref[...])
    out = jnp.dot(f1.astype(jnp.bfloat16), wf2_ref[...],
                  preferred_element_type=jnp.float32) + bf2_ref[...] + x1  # [M, C] f32

    # --- token slab -> channels-first output (lane-denser 64-wide stores,
    #     removes the wrapper-side output transpose HLO).
    for b in range(batch):
        o_ref[b] = out[b * n_tok:(b + 1) * n_tok, :].T                   # [C, N]


# ---------------------------------------------------------------------------
# Wrapper (only contiguity-preserving reshapes around one pallas_call).
# ---------------------------------------------------------------------------
def transformer_block_pallas(x_nchw, packed_params, *, num_heads, dqk, dv):
    del dqk, dv  # shapes are carried by the pre-split per-head weights
    B, C, H, W = x_nchw.shape
    N = H * W
    x_cf = x_nchw.reshape(B, C, N)           # no transpose HLO, just a reshape

    kernel = functools.partial(
        transformer_block_kernel, batch=B, n_tok=N, num_heads=num_heads)

    # No grid: every operand is a whole-array VMEM block (total < 1 MiB).
    out_cf = pl.pallas_call(
        kernel,
        out_shape=jax.ShapeDtypeStruct((B, C, N), jnp.float32),
    )(x_cf, *packed_params)

    return out_cf.reshape(B, C, H, W)


# ---------------------------------------------------------------------------
# Parameter construction (deterministic, synthetic)
# ---------------------------------------------------------------------------
def _fold_convnorm(key, cin, cout):
    """1x1 Conv2d(bias=False) + BatchNorm2d (eval mode) folded into (W, b)."""
    k0, k1, k2, k3, k4 = jax.random.split(key, 5)
    w = jax.random.normal(k0, (cin, cout), jnp.float32) * (1.0 / math.sqrt(cin))
    gamma = 1.0 + 0.1 * jax.random.normal(k1, (cout,), jnp.float32)
    beta = 0.1 * jax.random.normal(k2, (cout,), jnp.float32)
    rmean = 0.1 * jax.random.normal(k3, (cout,), jnp.float32)
    rvar = 1.0 + 0.1 * jax.random.uniform(k4, (cout,), jnp.float32)
    eps = 1e-5
    s = gamma / jnp.sqrt(rvar + eps)
    w_f = w * s[None, :]
    b_f = (beta - rmean * s).reshape(1, cout)
    return w_f, b_f


def make_raw_params(key, *, C, num_heads, dqk, dv, feature_size):
    """Raw f32 per-projection params (folded eval-mode BN) + attention bias."""
    H, W = feature_size
    N = H * W
    hid = 2 * C
    keys = jax.random.split(key, 8)
    wq, bq = _fold_convnorm(keys[0], C, num_heads * dqk)
    wk, bk = _fold_convnorm(keys[1], C, num_heads * dqk)
    wv, bv = _fold_convnorm(keys[2], C, num_heads * dv)
    wp, bp = _fold_convnorm(keys[3], num_heads * dv, C)
    wf1, bf1 = _fold_convnorm(keys[4], C, hid)
    wf2, bf2 = _fold_convnorm(keys[5], hid, C)

    # Attention bias table (module inits it to zeros; random so the gather+add
    # path is actually exercised).
    bias_table = 0.05 * jax.random.normal(keys[6], (num_heads, N), jnp.float32)

    # relative_position_index (q_subsampling=False -> q coords == k coords)
    ch = jnp.arange(H)
    cw = jnp.arange(W)
    coords = jnp.stack(jnp.meshgrid(ch, cw, indexing="ij")).reshape(2, -1)   # [2, N]
    rel = jnp.abs(coords[:, :, None] - coords[:, None, :])                    # [2, N, N]
    rel = jnp.transpose(rel, (1, 2, 0))                                       # [N, N, 2]
    rel = rel.at[:, :, 0].multiply(W)
    rel_idx = jnp.sum(rel, axis=-1)                                           # [N, N]
    attn_bias = bias_table[:, rel_idx.reshape(-1)].reshape(num_heads, N, N)

    return (wq, bq, wk, bk, wv, bv, wp, bp, wf1, bf1, wf2, bf2,
            attn_bias.astype(jnp.float32))


def pack_params(raw, *, batch, num_heads, dqk, dv, n_tok):
    """Fold attention scale into Wq/bq, split weights per head, build the
    block-diagonal (over batch) attention bias, cast matmul weights to bf16."""
    (wq, bq, wk, bk, wv, bv, wp, bp, wf1, bf1, wf2, bf2, attn_bias) = raw
    scale = dqk ** (-0.5)
    C = wq.shape[0]

    def split_heads(w, b, d):                      # w: [C, H*d], b: [1, H*d]
        w_h = w.reshape(C, num_heads, d).transpose(1, 0, 2)      # [H, C, d]
        b_h = b.reshape(1, num_heads, d).transpose(1, 0, 2)      # [H, 1, d]
        return w_h, b_h

    wq_h, bq_h = split_heads(wq * scale, bq * scale, dqk)
    wk_h, bk_h = split_heads(wk, bk, dqk)
    wv_h, bv_h = split_heads(wv, bv, dv)
    wp_h = wp.reshape(num_heads, dv, C)                          # [H, Dv, C]

    # Block-diagonal attention bias over the flattened [B*N] token axis:
    # rel-pos bias on within-batch blocks, -1e9 on cross-batch blocks.
    mask = jnp.kron(jnp.eye(batch, dtype=jnp.float32),
                    jnp.ones((n_tok, n_tok), jnp.float32))       # [B*N, B*N]
    bias_tiled = jnp.tile(attn_bias, (1, batch, batch))          # [H, B*N, B*N]
    bias_block = jnp.where(mask[None] > 0.5, bias_tiled, -1e9).astype(jnp.bfloat16)

    as_bf16 = lambda t: t.astype(jnp.bfloat16)
    return (as_bf16(wq_h), as_bf16(wk_h), as_bf16(wv_h),
            bq_h, bk_h, bv_h,
            as_bf16(wp_h), bp,
            as_bf16(wf1), bf1, as_bf16(wf2), bf2,
            bias_block)


# ---------------------------------------------------------------------------
# Pure-JAX reference (module eval-mode semantics; matmul operands cast to bf16
# with f32 accumulation to mirror the kernel's MXU dtypes; softmax uses exact
# division, residual / elementwise math in f32).
# ---------------------------------------------------------------------------
def reference(x_nchw, raw_params, *, num_heads, dqk, dv):
    B, C, H, W = x_nchw.shape
    N = H * W
    scale = dqk ** (-0.5)
    (wq, bq, wk, bk, wv, bv, wp, bp, wf1, bf1, wf2, bf2, attn_bias) = raw_params

    bf = lambda t: t.astype(jnp.bfloat16)
    mm = lambda a, b: jnp.dot(bf(a), bf(b), preferred_element_type=jnp.float32)

    x = jnp.transpose(x_nchw, (0, 2, 3, 1)).reshape(B, N, C).astype(jnp.float32)

    q = mm(x, wq * scale) + bq * scale     # scale folded exactly like the kernel
    k = mm(x, wk) + bk
    v = mm(x, wv) + bv
    q = q.reshape(B, N, num_heads, dqk).transpose(0, 2, 1, 3)
    k = k.reshape(B, N, num_heads, dqk).transpose(0, 2, 1, 3)
    v = v.reshape(B, N, num_heads, dv).transpose(0, 2, 1, 3)
    sim = jnp.einsum("bhnd,bhmd->bhnm", bf(q), bf(k),
                     preferred_element_type=jnp.float32) + attn_bias[None]
    attn = jax.nn.softmax(sim, axis=-1)
    o = jnp.einsum("bhnm,bhmd->bhnd", bf(attn), bf(v),
                   preferred_element_type=jnp.float32)
    o = o.transpose(0, 2, 1, 3).reshape(B, N, num_heads * dv)   # channel = h*Dv + d
    o = _hardswish(o)
    x1 = mm(o, wp) + bp + x
    f = _hardswish(mm(x1, wf1) + bf1)
    f = mm(f, wf2) + bf2
    out = f + x1
    return jnp.transpose(out.reshape(B, H, W, C), (0, 3, 1, 2))


# ---------------------------------------------------------------------------
if __name__ == "__main__":
    B = 2
    C = 32                 # embedding_dimension
    feature_size = (8, 8)  # H, W
    num_heads = 2
    dqk = 8                # qk_embedding_dimension
    dv = 2 * dqk           # v_head_embed_dims (key_value_dim_ratio = 2)
    N = feature_size[0] * feature_size[1]

    key = jax.random.PRNGKey(0)
    kx, kp = jax.random.split(key)
    x = jax.random.normal(kx, (B, C, *feature_size), jnp.float32)
    raw = make_raw_params(kp, C=C, num_heads=num_heads, dqk=dqk, dv=dv,
                          feature_size=feature_size)
    packed = pack_params(raw, batch=B, num_heads=num_heads, dqk=dqk, dv=dv,
                         n_tok=N)

    out = transformer_block_pallas(x, packed, num_heads=num_heads, dqk=dqk, dv=dv)
    out = jax.block_until_ready(out)

    ref = reference(x, raw, num_heads=num_heads, dqk=dqk, dv=dv)
    # Tolerance covers the approximate-reciprocal softmax denominator, bf16
    # attention bias, and f32 accumulation-order differences; any logic bug
    # would be orders of magnitude larger.
    np.testing.assert_allclose(np.asarray(out), np.asarray(ref),
                               rtol=1e-2, atol=1e-2)

    print("KERNEL_OK")
</pallas_src>

<mosaic_0001>
module attributes {stable_mosaic.version = 11 : i64} {
  func.func @transformer_block_kernel(%arg0: memref<2x32x64xf32, #tpu.memory_space<vmem>>, %arg1: memref<2x32x8xbf16, #tpu.memory_space<vmem>>, %arg2: memref<2x32x8xbf16, #tpu.memory_space<vmem>>, %arg3: memref<2x32x16xbf16, #tpu.memory_space<vmem>>, %arg4: memref<2x1x8xf32, #tpu.memory_space<vmem>>, %arg5: memref<2x1x8xf32, #tpu.memory_space<vmem>>, %arg6: memref<2x1x16xf32, #tpu.memory_space<vmem>>, %arg7: memref<2x16x32xbf16, #tpu.memory_space<vmem>>, %arg8: memref<1x32xf32, #tpu.memory_space<vmem>>, %arg9: memref<32x64xbf16, #tpu.memory_space<vmem>>, %arg10: memref<1x64xf32, #tpu.memory_space<vmem>>, %arg11: memref<64x32xbf16, #tpu.memory_space<vmem>>, %arg12: memref<1x32xf32, #tpu.memory_space<vmem>>, %arg13: memref<2x128x128xbf16, #tpu.memory_space<vmem>>, %arg14: memref<2x32x64xf32, #tpu.memory_space<vmem>>) attributes {dimension_semantics = [], scalar_prefetch = 0 : i64, scratch_operands = 0 : i64, tpu.core_type = #tpu.core_type<tc>} {
    %c0 = arith.constant 0 : index
    %c0_0 = arith.constant 0 : index
    %c0_1 = arith.constant 0 : index
    %0 = vector.load %arg0[%c0, %c0_0, %c0_1] : memref<2x32x64xf32, #tpu.memory_space<vmem>>, vector<1x32x64xf32>
    %1 = vector.shape_cast %0 : vector<1x32x64xf32> to vector<32x64xf32>
    %2 = tpu.transpose %1, [1, 0] : vector<32x64xf32> -> vector<64x32xf32>
    %c1 = arith.constant 1 : index
    %c0_2 = arith.constant 0 : index
    %c0_3 = arith.constant 0 : index
    %3 = vector.load %arg0[%c1, %c0_2, %c0_3] : memref<2x32x64xf32, #tpu.memory_space<vmem>>, vector<1x32x64xf32>
    %4 = vector.shape_cast %3 : vector<1x32x64xf32> to vector<32x64xf32>
    %5 = tpu.transpose %4, [1, 0] : vector<32x64xf32> -> vector<64x32xf32>
    %6 = tpu.concatenate %2, %5 in 0 : vector<64x32xf32>, vector<64x32xf32> -> vector<128x32xf32>
    %7 = arith.truncf %6 : vector<128x32xf32> to vector<128x32xbf16>
    %c0_4 = arith.constant 0 : index
    %c0_5 = arith.constant 0 : index
    %8 = vector.load %arg8[%c0_4, %c0_5] : memref<1x32xf32, #tpu.memory_space<vmem>>, vector<1x32xf32>
    %9 = vector.broadcast %8 : vector<1x32xf32> to vector<128x32xf32>
    %10 = arith.addf %6, %9 : vector<128x32xf32>
    %c0_6 = arith.constant 0 : index
    %c0_7 = arith.constant 0 : index
    %c0_8 = arith.constant 0 : index
    %11 = vector.load %arg1[%c0_6, %c0_7, %c0_8] : memref<2x32x8xbf16, #tpu.memory_space<vmem>>, vector<1x32x8xbf16>
    %12 = vector.shape_cast %11 : vector<1x32x8xbf16> to vector<32x8xbf16>
    %cst = arith.constant dense<0.000000e+00> : vector<128x8xf32>
    %13 = tpu.matmul %7, %12, %cst {dimension_numbers = #tpu.dot_dimension_numbers<[1], [0], [0], [1], [0, 0, 1, 1], [], []>} : vector<128x32xbf16>, vector<32x8xbf16>, vector<128x8xf32> -> vector<128x8xf32>
    %c0_9 = arith.constant 0 : index
    %c0_10 = arith.constant 0 : index
    %c0_11 = arith.constant 0 : index
    %14 = vector.load %arg4[%c0_9, %c0_10, %c0_11] : memref<2x1x8xf32, #tpu.memory_space<vmem>>, vector<1x1x8xf32>
    %15 = vector.shape_cast %14 : vector<1x1x8xf32> to vector<1x8xf32>
    %16 = vector.broadcast %15 : vector<1x8xf32> to vector<128x8xf32>
    %17 = arith.addf %13, %16 : vector<128x8xf32>
    %18 = arith.truncf %17 : vector<128x8xf32> to vector<128x8xbf16>
    %c0_12 = arith.constant 0 : index
    %c0_13 = arith.constant 0 : index
    %c0_14 = arith.constant 0 : index
    %19 = vector.load %arg2[%c0_12, %c0_13, %c0_14] : memref<2x32x8xbf16, #tpu.memory_space<vmem>>, vector<1x32x8xbf16>
    %20 = vector.shape_cast %19 : vector<1x32x8xbf16> to vector<32x8xbf16>
    %cst_15 = arith.constant dense<0.000000e+00> : vector<128x8xf32>
    %21 = tpu.matmul %7, %20, %cst_15 {dimension_numbers = #tpu.dot_dimension_numbers<[1], [0], [0], [1], [0, 0, 1, 1], [], []>} : vector<128x32xbf16>, vector<32x8xbf16>, vector<128x8xf32> -> vector<128x8xf32>
    %c0_16 = arith.constant 0 : index
    %c0_17 = arith.constant 0 : index
    %c0_18 = arith.constant 0 : index
    %22 = vector.load %arg5[%c0_16, %c0_17, %c0_18] : memref<2x1x8xf32, #tpu.memory_space<vmem>>, vector<1x1x8xf32>
    %23 = vector.shape_cast %22 : vector<1x1x8xf32> to vector<1x8xf32>
    %24 = vector.broadcast %23 : vector<1x8xf32> to vector<128x8xf32>
    %25 = arith.addf %21, %24 : vector<128x8xf32>
    %26 = arith.truncf %25 : vector<128x8xf32> to vector<128x8xbf16>
    %c0_19 = arith.constant 0 : index
    %c0_20 = arith.constant 0 : index
    %c0_21 = arith.constant 0 : index
    %27 = vector.load %arg3[%c0_19, %c0_20, %c0_21] : memref<2x32x16xbf16, #tpu.memory_space<vmem>>, vector<1x32x16xbf16>
    %28 = vector.shape_cast %27 : vector<1x32x16xbf16> to vector<32x16xbf16>
    %cst_22 = arith.constant dense<0.000000e+00> : vector<128x16xf32>
    %29 = tpu.matmul %7, %28, %cst_22 {dimension_numbers = #tpu.dot_dimension_numbers<[1], [0], [0], [1], [0, 0, 1, 1], [], []>} : vector<128x32xbf16>, vector<32x16xbf16>, vector<128x16xf32> -> vector<128x16xf32>
    %c0_23 = arith.constant 0 : index
    %c0_24 = arith.constant 0 : index
    %c0_25 = arith.constant 0 : index
    %30 = vector.load %arg6[%c0_23, %c0_24, %c0_25] : memref<2x1x16xf32, #tpu.memory_space<vmem>>, vector<1x1x16xf32>
    %31 = vector.shape_cast %30 : vector<1x1x16xf32> to vector<1x16xf32>
    %32 = vector.broadcast %31 : vector<1x16xf32> to vector<128x16xf32>
    %33 = arith.addf %29, %32 : vector<128x16xf32>
    %34 = arith.truncf %33 : vector<128x16xf32> to vector<128x16xbf16>
    %cst_26 = arith.constant dense<0.000000e+00> : vector<128x128xf32>
    %35 = tpu.matmul %18, %26, %cst_26 {dimension_numbers = #tpu.dot_dimension_numbers<[1], [1], [0], [0], [0, 0, 1, 0], [], []>} : vector<128x8xbf16>, vector<128x8xbf16>, vector<128x128xf32> -> vector<128x128xf32>
    %c0_27 = arith.constant 0 : index
    %c0_28 = arith.constant 0 : index
    %c0_29 = arith.constant 0 : index
    %36 = vector.load %arg13[%c0_27, %c0_28, %c0_29] : memref<2x128x128xbf16, #tpu.memory_space<vmem>>, vector<1x128x128xbf16>
    %37 = vector.shape_cast %36 : vector<1x128x128xbf16> to vector<128x128xbf16>
    %38 = arith.extf %37 : vector<128x128xbf16> to vector<128x128xf32>
    %39 = arith.addf %35, %38 : vector<128x128xf32>
    %cst_30 = arith.constant dense<0xFF800000> : vector<128xf32>
    %40 = vector.multi_reduction <maximumf>, %39, %cst_30 [1] : vector<128x128xf32> to vector<128xf32>
    %41 = vector.shape_cast %40 : vector<128xf32> to vector<128x1xf32>
    %42 = vector.broadcast %41 : vector<128x1xf32> to vector<128x128xf32>
    %43 = arith.subf %39, %42 : vector<128x128xf32>
    %44 = math.exp %43 : vector<128x128xf32>
    %cst_31 = arith.constant dense<0.000000e+00> : vector<128xf32>
    %45 = vector.multi_reduction <add>, %44, %cst_31 [1] : vector<128x128xf32> to vector<128xf32>
    %46 = vector.shape_cast %45 : vector<128xf32> to vector<128x1xf32>
    %47 = tpu.reciprocal %46 {approx = true} : vector<128x1xf32> -> vector<128x1xf32>
    %48 = vector.broadcast %47 : vector<128x1xf32> to vector<128x128xf32>
    %49 = arith.mulf %44, %48 : vector<128x128xf32>
    %50 = arith.truncf %49 : vector<128x128xf32> to vector<128x128xbf16>
    %cst_32 = arith.constant dense<0.000000e+00> : vector<128x16xf32>
    %51 = tpu.matmul %50, %34, %cst_32 {dimension_numbers = #tpu.dot_dimension_numbers<[1], [0], [0], [1], [0, 0, 1, 1], [], []>} : vector<128x128xbf16>, vector<128x16xbf16>, vector<128x16xf32> -> vector<128x16xf32>
    %cst_33 = arith.constant 3.000000e+00 : f32
    %52 = vector.broadcast %cst_33 : f32 to vector<128x16xf32>
    %53 = arith.addf %51, %52 : vector<128x16xf32>
    %cst_34 = arith.constant 0.000000e+00 : f32
    %cst_35 = arith.constant 6.000000e+00 : f32
    %54 = vector.broadcast %cst_34 : f32 to vector<128x16xf32>
    %55 = arith.maximumf %54, %53 : vector<128x16xf32>
    %56 = vector.broadcast %cst_35 : f32 to vector<128x16xf32>
    %57 = arith.minimumf %56, %55 : vector<128x16xf32>
    %58 = arith.mulf %51, %57 : vector<128x16xf32>
    %cst_36 = arith.constant 0.166666672 : f32
    %59 = vector.broadcast %cst_36 : f32 to vector<128x16xf32>
    %60 = arith.mulf %58, %59 : vector<128x16xf32>
    %61 = arith.truncf %60 : vector<128x16xf32> to vector<128x16xbf16>
    %c0_37 = arith.constant 0 : index
    %c0_38 = arith.constant 0 : index
    %c0_39 = arith.constant 0 : index
    %62 = vector.load %arg7[%c0_37, %c0_38, %c0_39] : memref<2x16x32xbf16, #tpu.memory_space<vmem>>, vector<1x16x32xbf16>
    %63 = vector.shape_cast %62 : vector<1x16x32xbf16> to vector<16x32xbf16>
    %cst_40 = arith.constant dense<0.000000e+00> : vector<128x32xf32>
    %64 = tpu.matmul %61, %63, %cst_40 {dimension_numbers = #tpu.dot_dimension_numbers<[1], [0], [0], [1], [0, 0, 1, 1], [], []>} : vector<128x16xbf16>, vector<16x32xbf16>, vector<128x32xf32> -> vector<128x32xf32>
    %65 = arith.addf %10, %64 : vector<128x32xf32>
    %c1_41 = arith.constant 1 : index
    %c0_42 = arith.constant 0 : index
    %c0_43 = arith.constant 0 : index
    %66 = vector.load %arg1[%c1_41, %c0_42, %c0_43] : memref<2x32x8xbf16, #tpu.memory_space<vmem>>, vector<1x32x8xbf16>
    %67 = vector.shape_cast %66 : vector<1x32x8xbf16> to vector<32x8xbf16>
    %cst_44 = arith.constant dense<0.000000e+00> : vector<128x8xf32>
    %68 = tpu.matmul %7, %67, %cst_44 {dimension_numbers = #tpu.dot_dimension_numbers<[1], [0], [0], [1], [0, 0, 1, 1], [], []>} : vector<128x32xbf16>, vector<32x8xbf16>, vector<128x8xf32> -> vector<128x8xf32>
    %c1_45 = arith.constant 1 : index
    %c0_46 = arith.constant 0 : index
    %c0_47 = arith.constant 0 : index
    %69 = vector.load %arg4[%c1_45, %c0_46, %c0_47] : memref<2x1x8xf32, #tpu.memory_space<vmem>>, vector<1x1x8xf32>
    %70 = vector.shape_cast %69 : vector<1x1x8xf32> to vector<1x8xf32>
    %71 = vector.broadcast %70 : vector<1x8xf32> to vector<128x8xf32>
    %72 = arith.addf %68, %71 : vector<128x8xf32>
    %73 = arith.truncf %72 : vector<128x8xf32> to vector<128x8xbf16>
    %c1_48 = arith.constant 1 : index
    %c0_49 = arith.constant 0 : index
    %c0_50 = arith.constant 0 : index
    %74 = vector.load %arg2[%c1_48, %c0_49, %c0_50] : memref<2x32x8xbf16, #tpu.memory_space<vmem>>, vector<1x32x8xbf16>
    %75 = vector.shape_cast %74 : vector<1x32x8xbf16> to vector<32x8xbf16>
    %cst_51 = arith.constant dense<0.000000e+00> : vector<128x8xf32>
    %76 = tpu.matmul %7, %75, %cst_51 {dimension_numbers = #tpu.dot_dimension_numbers<[1], [0], [0], [1], [0, 0, 1, 1], [], []>} : vector<128x32xbf16>, vector<32x8xbf16>, vector<128x8xf32> -> vector<128x8xf32>
    %c1_52 = arith.constant 1 : index
    %c0_53 = arith.constant 0 : index
    %c0_54 = arith.constant 0 : index
    %77 = vector.load %arg5[%c1_52, %c0_53, %c0_54] : memref<2x1x8xf32, #tpu.memory_space<vmem>>, vector<1x1x8xf32>
    %78 = vector.shape_cast %77 : vector<1x1x8xf32> to vector<1x8xf32>
    %79 = vector.broadcast %78 : vector<1x8xf32> to vector<128x8xf32>
    %80 = arith.addf %76, %79 : vector<128x8xf32>
    %81 = arith.truncf %80 : vector<128x8xf32> to vector<128x8xbf16>
    %c1_55 = arith.constant 1 : index
    %c0_56 = arith.constant 0 : index
    %c0_57 = arith.constant 0 : index
    %82 = vector.load %arg3[%c1_55, %c0_56, %c0_57] : memref<2x32x16xbf16, #tpu.memory_space<vmem>>, vector<1x32x16xbf16>
    %83 = vector.shape_cast %82 : vector<1x32x16xbf16> to vector<32x16xbf16>
    %cst_58 = arith.constant dense<0.000000e+00> : vector<128x16xf32>
    %84 = tpu.matmul %7, %83, %cst_58 {dimension_numbers = #tpu.dot_dimension_numbers<[1], [0], [0], [1], [0, 0, 1, 1], [], []>} : vector<128x32xbf16>, vector<32x16xbf16>, vector<128x16xf32> -> vector<128x16xf32>
    %c1_59 = arith.constant 1 : index
    %c0_60 = arith.constant 0 : index
    %c0_61 = arith.constant 0 : index
    %85 = vector.load %arg6[%c1_59, %c0_60, %c0_61] : memref<2x1x16xf32, #tpu.memory_space<vmem>>, vector<1x1x16xf32>
    %86 = vector.shape_cast %85 : vector<1x1x16xf32> to vector<1x16xf32>
    %87 = vector.broadcast %86 : vector<1x16xf32> to vector<128x16xf32>
    %88 = arith.addf %84, %87 : vector<128x16xf32>
    %89 = arith.truncf %88 : vector<128x16xf32> to vector<128x16xbf16>
    %cst_62 = arith.constant dense<0.000000e+00> : vector<128x128xf32>
    %90 = tpu.matmul %73, %81, %cst_62 {dimension_numbers = #tpu.dot_dimension_numbers<[1], [1], [0], [0], [0, 0, 1, 0], [], []>} : vector<128x8xbf16>, vector<128x8xbf16>, vector<128x128xf32> -> vector<128x128xf32>
    %c1_63 = arith.constant 1 : index
    %c0_64 = arith.constant 0 : index
    %c0_65 = arith.constant 0 : index
    %91 = vector.load %arg13[%c1_63, %c0_64, %c0_65] : memref<2x128x128xbf16, #tpu.memory_space<vmem>>, vector<1x128x128xbf16>
    %92 = vector.shape_cast %91 : vector<1x128x128xbf16> to vector<128x128xbf16>
    %93 = arith.extf %92 : vector<128x128xbf16> to vector<128x128xf32>
    %94 = arith.addf %90, %93 : vector<128x128xf32>
    %cst_66 = arith.constant dense<0xFF800000> : vector<128xf32>
    %95 = vector.multi_reduction <maximumf>, %94, %cst_66 [1] : vector<128x128xf32> to vector<128xf32>
    %96 = vector.shape_cast %95 : vector<128xf32> to vector<128x1xf32>
    %97 = vector.broadcast %96 : vector<128x1xf32> to vector<128x128xf32>
    %98 = arith.subf %94, %97 : vector<128x128xf32>
    %99 = math.exp %98 : vector<128x128xf32>
    %cst_67 = arith.constant dense<0.000000e+00> : vector<128xf32>
    %100 = vector.multi_reduction <add>, %99, %cst_67 [1] : vector<128x128xf32> to vector<128xf32>
    %101 = vector.shape_cast %100 : vector<128xf32> to vector<128x1xf32>
    %102 = tpu.reciprocal %101 {approx = true} : vector<128x1xf32> -> vector<128x1xf32>
    %103 = vector.broadcast %102 : vector<128x1xf32> to vector<128x128xf32>
    %104 = arith.mulf %99, %103 : vector<128x128xf32>
    %105 = arith.truncf %104 : vector<128x128xf32> to vector<128x128xbf16>
    %cst_68 = arith.constant dense<0.000000e+00> : vector<128x16xf32>
    %106 = tpu.matmul %105, %89, %cst_68 {dimension_numbers = #tpu.dot_dimension_numbers<[1], [0], [0], [1], [0, 0, 1, 1], [], []>} : vector<128x128xbf16>, vector<128x16xbf16>, vector<128x16xf32> -> vector<128x16xf32>
    %cst_69 = arith.constant 3.000000e+00 : f32
    %107 = vector.broadcast %cst_69 : f32 to vector<128x16xf32>
    %108 = arith.addf %106, %107 : vector<128x16xf32>
    %cst_70 = arith.constant 0.000000e+00 : f32
    %cst_71 = arith.constant 6.000000e+00 : f32
    %109 = vector.broadcast %cst_70 : f32 to vector<128x16xf32>
    %110 = arith.maximumf %109, %108 : vector<128x16xf32>
    %111 = vector.broadcast %cst_71 : f32 to vector<128x16xf32>
    %112 = arith.minimumf %111, %110 : vector<128x16xf32>
    %113 = arith.mulf %106, %112 : vector<128x16xf32>
    %cst_72 = arith.constant 0.166666672 : f32
    %114 = vector.broadcast %cst_72 : f32 to vector<128x16xf32>
    %115 = arith.mulf %113, %114 : vector<128x16xf32>
    %116 = arith.truncf %115 : vector<128x16xf32> to vector<128x16xbf16>
    %c1_73 = arith.constant 1 : index
    %c0_74 = arith.constant 0 : index
    %c0_75 = arith.constant 0 : index
    %117 = vector.load %arg7[%c1_73, %c0_74, %c0_75] : memref<2x16x32xbf16, #tpu.memory_space<vmem>>, vector<1x16x32xbf16>
    %118 = vector.shape_cast %117 : vector<1x16x32xbf16> to vector<16x32xbf16>
    %cst_76 = arith.constant dense<0.000000e+00> : vector<128x32xf32>
    %119 = tpu.matmul %116, %118, %cst_76 {dimension_numbers = #tpu.dot_dimension_numbers<[1], [0], [0], [1], [0, 0, 1, 1], [], []>} : vector<128x16xbf16>, vector<16x32xbf16>, vector<128x32xf32> -> vector<128x32xf32>
    %120 = arith.addf %65, %119 : vector<128x32xf32>
    %121 = arith.truncf %120 : vector<128x32xf32> to vector<128x32xbf16>
    %c0_77 = arith.constant 0 : index
    %c0_78 = arith.constant 0 : index
    %122 = vector.load %arg9[%c0_77, %c0_78] : memref<32x64xbf16, #tpu.memory_space<vmem>>, vector<32x64xbf16>
    %cst_79 = arith.constant dense<0.000000e+00> : vector<128x64xf32>
    %123 = tpu.matmul %121, %122, %cst_79 {dimension_numbers = #tpu.dot_dimension_numbers<[1], [0], [0], [1], [0, 0, 1, 1], [], []>} : vector<128x32xbf16>, vector<32x64xbf16>, vector<128x64xf32> -> vector<128x64xf32>
    %c0_80 = arith.constant 0 : index
    %c0_81 = arith.constant 0 : index
    %124 = vector.load %arg10[%c0_80, %c0_81] : memref<1x64xf32, #tpu.memory_space<vmem>>, vector<1x64xf32>
    %125 = vector.broadcast %124 : vector<1x64xf32> to vector<128x64xf32>
    %126 = arith.addf %123, %125 : vector<128x64xf32>
    %cst_82 = arith.constant 3.000000e+00 : f32
    %127 = vector.broadcast %cst_82 : f32 to vector<128x64xf32>
    %128 = arith.addf %126, %127 : vector<128x64xf32>
    %cst_83 = arith.constant 0.000000e+00 : f32
    %cst_84 = arith.constant 6.000000e+00 : f32
    %129 = vector.broadcast %cst_83 : f32 to vector<128x64xf32>
    %130 = arith.maximumf %129, %128 : vector<128x64xf32>
    %131 = vector.broadcast %cst_84 : f32 to vector<128x64xf32>
    %132 = arith.minimumf %131, %130 : vector<128x64xf32>
    %133 = arith.mulf %126, %132 : vector<128x64xf32>
    %cst_85 = arith.constant 0.166666672 : f32
    %134 = vector.broadcast %cst_85 : f32 to vector<128x64xf32>
    %135 = arith.mulf %133, %134 : vector<128x64xf32>
    %136 = arith.truncf %135 : vector<128x64xf32> to vector<128x64xbf16>
    %c0_86 = arith.constant 0 : index
    %c0_87 = arith.constant 0 : index
    %137 = vector.load %arg11[%c0_86, %c0_87] : memref<64x32xbf16, #tpu.memory_space<vmem>>, vector<64x32xbf16>
    %cst_88 = arith.constant dense<0.000000e+00> : vector<128x32xf32>
    %138 = tpu.matmul %136, %137, %cst_88 {dimension_numbers = #tpu.dot_dimension_numbers<[1], [0], [0], [1], [0, 0, 1, 1], [], []>} : vector<128x64xbf16>, vector<64x32xbf16>, vector<128x32xf32> -> vector<128x32xf32>
    %c0_89 = arith.constant 0 : index
    %c0_90 = arith.constant 0 : index
    %139 = vector.load %arg12[%c0_89, %c0_90] : memref<1x32xf32, #tpu.memory_space<vmem>>, vector<1x32xf32>
    %140 = vector.broadcast %139 : vector<1x32xf32> to vector<128x32xf32>
    %141 = arith.addf %138, %140 : vector<128x32xf32>
    %142 = arith.addf %141, %120 : vector<128x32xf32>
    %143 = vector.extract_strided_slice %142 {offsets = [0, 0], sizes = [64, 32], strides = [1, 1]} : vector<128x32xf32> to vector<64x32xf32>
    %144 = tpu.transpose %143, [1, 0] : vector<64x32xf32> -> vector<32x64xf32>
    %c0_91 = arith.constant 0 : index
    %c0_92 = arith.constant 0 : index
    %c0_93 = arith.constant 0 : index
    %145 = vector.load %arg14[%c0_91, %c0_92, %c0_93] : memref<2x32x64xf32, #tpu.memory_space<vmem>>, vector<1x32x64xf32>
    %146 = vector.shape_cast %145 : vector<1x32x64xf32> to vector<32x64xf32>
    %147 = vector.shape_cast %144 : vector<32x64xf32> to vector<1x32x64xf32>
    tpu.vector_store %arg14[%c0_91, %c0_92, %c0_93], %147 {strides = array<i32>} : memref<2x32x64xf32, #tpu.memory_space<vmem>>, vector<1x32x64xf32>,
    %148 = vector.extract_strided_slice %142 {offsets = [64, 0], sizes = [64, 32], strides = [1, 1]} : vector<128x32xf32> to vector<64x32xf32>
    %149 = tpu.transpose %148, [1, 0] : vector<64x32xf32> -> vector<32x64xf32>
    %c1_94 = arith.constant 1 : index
    %c0_95 = arith.constant 0 : index
    %c0_96 = arith.constant 0 : index
    %150 = vector.load %arg14[%c1_94, %c0_95, %c0_96] : memref<2x32x64xf32, #tpu.memory_space<vmem>>, vector<1x32x64xf32>
    %151 = vector.shape_cast %150 : vector<1x32x64xf32> to vector<32x64xf32>
    %152 = vector.shape_cast %149 : vector<32x64xf32> to vector<1x32x64xf32>
    tpu.vector_store %arg14[%c1_94, %c0_95, %c0_96], %152 {strides = array<i32>} : memref<2x32x64xf32, #tpu.memory_space<vmem>>, vector<1x32x64xf32>,
    return
  }
}

</mosaic_0001>

<llo_original>
// kernel: tpu_custom_call.1
$region0: #{tpu_custom_call.1}
  #allocation0 [shape = 'u32[]', space=smem, size = 0x4, offset = 0x4, fixed_abs, tag = 'smem constant byte address 0x4 - core index']
  #allocation1 [shape = 'u32[144,128]{1,0:T(1,128)}', space=vmem, size = 0x12000, scoped, tag = 'internal scratch']
  %s0 = inlined_call_operand.vmem [shape: f32[2,32,64], index: 0, kind: input, shape index: {}]
  %s1 = inlined_call_operand.vmem [shape: bf16[2,32,8], index: 1, kind: input, shape index: {}]
  %s2 = inlined_call_operand.vmem [shape: bf16[2,32,8], index: 2, kind: input, shape index: {}]
  %s3 = inlined_call_operand.vmem [shape: bf16[2,32,16], index: 3, kind: input, shape index: {}]
  %s4 = inlined_call_operand.hbm [shape: f32[2,1,8], index: 4, kind: input, shape index: {}]
  %s5 = inlined_call_operand.hbm [shape: f32[2,1,8], index: 5, kind: input, shape index: {}]
  %s6 = inlined_call_operand.hbm [shape: f32[2,1,16], index: 6, kind: input, shape index: {}]
  %s7 = inlined_call_operand.vmem [shape: bf16[2,16,32], index: 7, kind: input, shape index: {}]
  %s8 = inlined_call_operand.vmem [shape: f32[1,32], index: 8, kind: input, shape index: {}]
  %s9 = inlined_call_operand.hbm [shape: bf16[32,64], index: 9, kind: input, shape index: {}]
  %s10 = inlined_call_operand.hbm [shape: f32[1,64], index: 10, kind: input, shape index: {}]
  %s11 = inlined_call_operand.vmem [shape: bf16[64,32], index: 11, kind: input, shape index: {}]
  %s12 = inlined_call_operand.hbm [shape: f32[1,32], index: 12, kind: input, shape index: {}]
  %s13 = inlined_call_operand.vmem [shape: bf16[2,128,128], index: 13, kind: input, shape index: {}]
  %s14 = inlined_call_operand.hbm [shape: f32[2,32,64], index: 14, kind: output, shape index: {}]
  %s15 = sld [smem:[#allocation0]]
  $region90: #{tpu_custom_call.1} parent=0
    _
  %s17 = ssub.s32 1, %s15
  %s18 = scalar_select 0, %s17, %s15
  $region1: #{tpu_custom_call.1} parent=0
    #allocation2 [shape = 'u8[1024]{0}', space=vmem, size = 0x400, scoped, tag = 'input window, operand 4, single buffered']
    #allocation3 [shape = 's32[1]{0}', space=sflag, size = 0x4, scoped, tag = 'scoped memory for tpu_custom_call.1']
    #allocation4 [shape = 's32[1]{0}', space=sflag, size = 0x4, scoped, tag = 'scoped memory for tpu_custom_call.1']
    #allocation5 [shape = 'u8[1024]{0}', space=vmem, size = 0x400, scoped, tag = 'input window, operand 5, single buffered']
    #allocation6 [shape = 's32[1]{0}', space=sflag, size = 0x4, scoped, tag = 'scoped memory for tpu_custom_call.1']
    #allocation7 [shape = 'u8[1024]{0}', space=vmem, size = 0x400, scoped, tag = 'input window, operand 6, single buffered']
    #allocation8 [shape = 'u8[8192]{0}', space=vmem, size = 0x2000, scoped, tag = 'input window, operand 9, single buffered']
    #allocation9 [shape = 's32[1]{0}', space=sflag, size = 0x4, scoped, tag = 'scoped memory for tpu_custom_call.1']
    #allocation10 [shape = 'u8[512]{0}', space=vmem, size = 0x400, scoped, tag = 'input window, operand 10, single buffered']
    #allocation11 [shape = 'u8[512]{0}', space=vmem, size = 0x400, scoped, tag = 'input window, operand 12, single buffered']
    #allocation12 [shape = 's32[1]{0}', space=sflag, size = 0x4, scoped, tag = 'scoped memory for tpu_custom_call.1']
    #allocation13 [shape = 'u8[32768]{0}', space=vmem, size = 0x8000, scoped, tag = 'output window, operand 0, single buffered']
    %19 = vsyncpa [#allocation3], 0
    %20 = vsyncpa [#allocation6], 0
    %21 = vsyncpa [#allocation9], 0
    %22 = vsyncpa [#allocation12], 0
    %23 = vsyncpa [#allocation4], 0
    // Predicated region
    $region2: #{tpu_custom_call.1} parent=1 // pred_check
      _
    $region3: #{tpu_custom_call.1} parent=1 // pred_check_branch
      %25 = sbr.rel (0) target = $region5
    $region4: #{tpu_custom_call.1} parent=1 // pred_region
      _
    $region5: #{tpu_custom_call.1} parent=1 // pred_fallthru
      _
    // Predicated region
    $region6: #{tpu_custom_call.1} parent=1 // pred_check
      _
    $region7: #{tpu_custom_call.1} parent=1 // pred_check_branch
      %27 = sbr.rel (0) target = $region9
    $region8: #{tpu_custom_call.1} parent=1 // pred_region
      _
    $region9: #{tpu_custom_call.1} parent=1 // pred_fallthru
      _
    // Predicated region
    $region10: #{tpu_custom_call.1} parent=1 // pred_check
      _
    $region11: #{tpu_custom_call.1} parent=1 // pred_check_branch
      %29 = sbr.rel (0) target = $region13
    $region12: #{tpu_custom_call.1} parent=1 // pred_region
      _
    $region13: #{tpu_custom_call.1} parent=1 // pred_fallthru
      _
    // Predicated region
    $region14: #{tpu_custom_call.1} parent=1 // pred_check
      _
    $region15: #{tpu_custom_call.1} parent=1 // pred_check_branch
      %31 = sbr.rel (0) target = $region17
    $region16: #{tpu_custom_call.1} parent=1 // pred_region
      _
    $region17: #{tpu_custom_call.1} parent=1 // pred_fallthru
      _
    // Predicated region
    $region18: #{tpu_custom_call.1} parent=1 // pred_check
      _
    $region19: #{tpu_custom_call.1} parent=1 // pred_check_branch
      %33 = sbr.rel (0) target = $region21
    $region20: #{tpu_custom_call.1} parent=1 // pred_region
      %s35 = ssub.s32 32, 32
      %36 = vsyncadd [#allocation3], %s35
      %s37 = sshll.u32 [#allocation2], 4
      %s38 = int_to_ptr.vmem [resolvable:$true] %s37
      %43 = dma.hbm_to_vmem [thread:$0]  %s4, 32, %s38, [#allocation3], 16, 16, 1
    $region21: #{tpu_custom_call.1} parent=1 // pred_fallthru
      _
    // Predicated region
    $region22: #{tpu_custom_call.1} parent=1 // pred_check
      _
    $region23: #{tpu_custom_call.1} parent=1 // pred_check_branch
      %45 = sbr.rel (0) target = $region25
    $region24: #{tpu_custom_call.1} parent=1 // pred_region
      %s47 = ssub.s32 32, 32
      %48 = vsyncadd [#allocation6], %s47
      %s49 = sshll.u32 [#allocation5], 4
      %s50 = int_to_ptr.vmem [resolvable:$true] %s49
      %55 = dma.hbm_to_vmem [thread:$0]  %s5, 32, %s50, [#allocation6], 16, 16, 1
    $region25: #{tpu_custom_call.1} parent=1 // pred_fallthru
      _
    // Predicated region
    $region26: #{tpu_custom_call.1} parent=1 // pred_check
      _
    $region27: #{tpu_custom_call.1} parent=1 // pred_check_branch
      %57 = sbr.rel (0) target = $region29
    $region28: #{tpu_custom_call.1} parent=1 // pred_region
      %s59 = ssub.s32 32, 32
      %60 = vsyncadd [#allocation6], %s59
      %s61 = sshll.u32 [#allocation7], 4
      %s62 = int_to_ptr.vmem [resolvable:$true] %s61
      %67 = dma.hbm_to_vmem [thread:$0]  %s6, 32, %s62, [#allocation6], 16, 16, 1
    $region29: #{tpu_custom_call.1} parent=1 // pred_fallthru
      _
    // Predicated region
    $region30: #{tpu_custom_call.1} parent=1 // pred_check
      _
    $region31: #{tpu_custom_call.1} parent=1 // pred_check_branch
      %69 = sbr.rel (0) target = $region33
    $region32: #{tpu_custom_call.1} parent=1 // pred_region
      _
    $region33: #{tpu_custom_call.1} parent=1 // pred_fallthru
      _
    // Predicated region
    $region34: #{tpu_custom_call.1} parent=1 // pred_check
      _
    $region35: #{tpu_custom_call.1} parent=1 // pred_check_branch
      %71 = sbr.rel (0) target = $region37
    $region36: #{tpu_custom_call.1} parent=1 // pred_region
      _
    $region37: #{tpu_custom_call.1} parent=1 // pred_fallthru
      _
    // Predicated region
    $region38: #{tpu_custom_call.1} parent=1 // pred_check
      _
    $region39: #{tpu_custom_call.1} parent=1 // pred_check_branch
      %73 = sbr.rel (0) target = $region41
    $region40: #{tpu_custom_call.1} parent=1 // pred_region
      %s75 = ssub.s32 256, 256
      %76 = vsyncadd [#allocation9], %s75
      %s77 = sshll.u32 [#allocation8], 4
      %s78 = int_to_ptr.vmem [resolvable:$true] %s77
      %83 = dma.hbm_to_vmem [thread:$0]  %s9, 256, %s78, [#allocation9], 64, 64, 4
    $region41: #{tpu_custom_call.1} parent=1 // pred_fallthru
      _
    // Predicated region
    $region42: #{tpu_custom_call.1} parent=1 // pred_check
      _
    $region43: #{tpu_custom_call.1} parent=1 // pred_check_branch
      %85 = sbr.rel (0) target = $region45
    $region44: #{tpu_custom_call.1} parent=1 // pred_region
      %s87 = ssub.s32 16, 16
      %88 = vsyncadd [#allocation9], %s87
      %s90 = sshll.u32 [#allocation10], 4
      %s91 = int_to_ptr.vmem [resolvable:$true] %s90
      %93 = dma.hbm_to_vmem [thread:$0]  %s10, 16, %s91, [#allocation9]
    $region45: #{tpu_custom_call.1} parent=1 // pred_fallthru
      _
    // Predicated region
    $region46: #{tpu_custom_call.1} parent=1 // pred_check
      _
    $region47: #{tpu_custom_call.1} parent=1 // pred_check_branch
      %95 = sbr.rel (0) target = $region49
    $region48: #{tpu_custom_call.1} parent=1 // pred_region
      _
    $region49: #{tpu_custom_call.1} parent=1 // pred_fallthru
      _
    // Predicated region
    $region50: #{tpu_custom_call.1} parent=1 // pred_check
      _
    $region51: #{tpu_custom_call.1} parent=1 // pred_check_branch
      %97 = sbr.rel (0) target = $region53
    $region52: #{tpu_custom_call.1} parent=1 // pred_region
      %s99 = ssub.s32 16, 16
      %100 = vsyncadd [#allocation12], %s99
      %s102 = sshll.u32 [#allocation11], 4
      %s103 = int_to_ptr.vmem [resolvable:$true] %s102
      %105 = dma.hbm_to_vmem [thread:$0]  %s12, 16, %s103, [#allocation12]
    $region53: #{tpu_custom_call.1} parent=1 // pred_fallthru
      _
    // Predicated region
    $region54: #{tpu_custom_call.1} parent=1 // pred_check
      _
    $region55: #{tpu_custom_call.1} parent=1 // pred_check_branch
      %107 = sbr.rel (0) target = $region57
    $region56: #{tpu_custom_call.1} parent=1 // pred_region
      _
    $region57: #{tpu_custom_call.1} parent=1 // pred_fallthru
      _
    // Predicated region
    $region58: #{tpu_custom_call.1} parent=1 // pred_check
      _
    $region59: #{tpu_custom_call.1} parent=1 // pred_check_branch
      %109 = sbr.rel (0) target = $region61
    $region60: #{tpu_custom_call.1} parent=1 // pred_region
      %110 = dma.done [#allocation3], 32
    $region61: #{tpu_custom_call.1} parent=1 // pred_fallthru
      _
    // Predicated region
    $region62: #{tpu_custom_call.1} parent=1 // pred_check
      _
    $region63: #{tpu_custom_call.1} parent=1 // pred_check_branch
      %112 = sbr.rel (0) target = $region65
    $region64: #{tpu_custom_call.1} parent=1 // pred_region
      %113 = dma.done [#allocation6], 32
    $region65: #{tpu_custom_call.1} parent=1 // pred_fallthru
      _
    // Predicated region
    $region66: #{tpu_custom_call.1} parent=1 // pred_check
      _
    $region67: #{tpu_custom_call.1} parent=1 // pred_check_branch
      %115 = sbr.rel (0) target = $region69
    $region68: #{tpu_custom_call.1} parent=1 // pred_region
      %116 = dma.done [#allocation6], 32
    $region69: #{tpu_custom_call.1} parent=1 // pred_fallthru
      _
    // Predicated region
    $region70: #{tpu_custom_call.1} parent=1 // pred_check
      _
    $region71: #{tpu_custom_call.1} parent=1 // pred_check_branch
      %118 = sbr.rel (0) target = $region73
    $region72: #{tpu_custom_call.1} parent=1 // pred_region
      %119 = dma.done [#allocation9], 256
    $region73: #{tpu_custom_call.1} parent=1 // pred_fallthru
      _
    // Predicated region
    $region74: #{tpu_custom_call.1} parent=1 // pred_check
      _
    $region75: #{tpu_custom_call.1} parent=1 // pred_check_branch
      %121 = sbr.rel (0) target = $region77
    $region76: #{tpu_custom_call.1} parent=1 // pred_region
      %122 = dma.done [#allocation9], 16
    $region77: #{tpu_custom_call.1} parent=1 // pred_fallthru
      _
    // Predicated region
    $region78: #{tpu_custom_call.1} parent=1 // pred_check
      _
    $region79: #{tpu_custom_call.1} parent=1 // pred_check_branch
      %124 = sbr.rel (0) target = $region81
    $region80: #{tpu_custom_call.1} parent=1 // pred_region
      %125 = dma.done [#allocation12], 16
    $region81: #{tpu_custom_call.1} parent=1 // pred_fallthru
      _
    %v127 = vld [vmem:[%s0] sm:$0xff]
    %v128 = vld [vmem:[%s0 + $0x8] sm:$0xff]
    %v129 = vld [vmem:[%s0 + $0x10] sm:$0xff]
    %v130 = vld [vmem:[%s0 + $0x18] sm:$0xff]
    %131 = vxpose.xlu0.b32.start [1/16] %v127, 128
    %132 = vxpose.xlu0.b32.cont [2/16] %v128, 128
    %133 = vxpose.xlu0.b32.cont [3/16] %v129, 128
    %134 = vxpose.xlu0.b32.cont [4/16] %v130, 128
    %135 = vxpose.xlu0.b32.cont [5/16] 0.0, 128
    %136 = vxpose.xlu0.b32.cont [6/16] 0.0, 128
    %137 = vxpose.xlu0.b32.cont [7/16] 0.0, 128
    %138 = vxpose.xlu0.b32.cont [8/16] 0.0, 128
    %139 = vxpose.xlu0.b32.cont [9/16] 0.0, 128
    %140 = vxpose.xlu0.b32.cont [10/16] 0.0, 128
    %141 = vxpose.xlu0.b32.cont [11/16] 0.0, 128
    %142 = vxpose.xlu0.b32.cont [12/16] 0.0, 128
    %143 = vxpose.xlu0.b32.cont [13/16] 0.0, 128
    %144 = vxpose.xlu0.b32.cont [14/16] 0.0, 128
    %145 = vxpose.xlu0.b32.cont [15/16] 0.0, 128
    %146 = vxpose.xlu0.b32.end [16/16] 0.0, 128
    %v147 = vpop.trf.xlu0
    %v148 = vpop.trf.xlu0
    %v149 = vpop.trf.xlu0
    %v150 = vpop.trf.xlu0
    %v151 = vpop.trf.xlu0
    %v152 = vpop.trf.xlu0
    %v153 = vpop.trf.xlu0
    %v154 = vpop.trf.xlu0
    %v155 = vpop.trf.xlu0
    %v156 = vpop.trf.xlu0
    %v157 = vpop.trf.xlu0
    %v158 = vpop.trf.xlu0
    %v159 = vpop.trf.xlu0
    %v160 = vpop.trf.xlu0
    %v161 = vpop.trf.xlu0
    %v162 = vpop.trf.xlu0
    %s163 = scalar_lea.vmem %s0, 32
    %v164 = vld [vmem:[%s163] sm:$0xff]
    %v165 = vld [vmem:[%s163 + $0x8] sm:$0xff]
    %v166 = vld [vmem:[%s163 + $0x10] sm:$0xff]
    %v167 = vld [vmem:[%s163 + $0x18] sm:$0xff]
    %168 = vxpose.xlu0.b32.start [1/16] %v164, 128
    %169 = vxpose.xlu0.b32.cont [2/16] %v165, 128
    %170 = vxpose.xlu0.b32.cont [3/16] %v166, 128
    %171 = vxpose.xlu0.b32.cont [4/16] %v167, 128
    %172 = vxpose.xlu0.b32.cont [5/16] 0.0, 128
    %173 = vxpose.xlu0.b32.cont [6/16] 0.0, 128
    %174 = vxpose.xlu0.b32.cont [7/16] 0.0, 128
    %175 = vxpose.xlu0.b32.cont [8/16] 0.0, 128
    %176 = vxpose.xlu0.b32.cont [9/16] 0.0, 128
    %177 = vxpose.xlu0.b32.cont [10/16] 0.0, 128
    %178 = vxpose.xlu0.b32.cont [11/16] 0.0, 128
    %179 = vxpose.xlu0.b32.cont [12/16] 0.0, 128
    %180 = vxpose.xlu0.b32.cont [13/16] 0.0, 128
    %181 = vxpose.xlu0.b32.cont [14/16] 0.0, 128
    %182 = vxpose.xlu0.b32.cont [15/16] 0.0, 128
    %183 = vxpose.xlu0.b32.end [16/16] 0.0, 128
    %v184 = vpop.trf.xlu0
    %v185 = vpop.trf.xlu0
    %v186 = vpop.trf.xlu0
    %v187 = vpop.trf.xlu0
    %v188 = vpop.trf.xlu0
    %v189 = vpop.trf.xlu0
    %v190 = vpop.trf.xlu0
    %v191 = vpop.trf.xlu0
    %v192 = vpop.trf.xlu0
    %v193 = vpop.trf.xlu0
    %v194 = vpop.trf.xlu0
    %v195 = vpop.trf.xlu0
    %v196 = vpop.trf.xlu0
    %v197 = vpop.trf.xlu0
    %v198 = vpop.trf.xlu0
    %v199 = vpop.trf.xlu0
    %v200 = vpack.c.bf16 %v148, %v147
    %v201 = vpack.c.bf16 %v150, %v149
    %v202 = vpack.c.bf16 %v152, %v151
    %v203 = vpack.c.bf16 %v154, %v153
    %v204 = vpack.c.bf16 %v185, %v184
    %v205 = vpack.c.bf16 %v187, %v186
    %v206 = vpack.c.bf16 %v189, %v188
    %v207 = vpack.c.bf16 %v191, %v190
    %v208 = vld [vmem:[%s8] sm:$0x1]
    %v210 = vlaneseq
    %v211 = vshrl.u32 %v210, 7
    %v212 = vsub.s32 0, %v211
    %v213 = vrot.slane %v208, %v212
    %v215 = vadd.f32 %v147, %v213
    %v216 = vadd.f32 %v148, %v213
    %v217 = vadd.f32 %v149, %v213
    %v218 = vadd.f32 %v150, %v213
    %v219 = vadd.f32 %v151, %v213
    %v220 = vadd.f32 %v152, %v213
    %v221 = vadd.f32 %v153, %v213
    %v222 = vadd.f32 %v154, %v213
    %v223 = vadd.f32 %v184, %v213
    %v224 = vadd.f32 %v185, %v213
    %v225 = vadd.f32 %v186, %v213
    %v226 = vadd.f32 %v187, %v213
    %v227 = vadd.f32 %v188, %v213
    %v228 = vadd.f32 %v189, %v213
    %v229 = vadd.f32 %v190, %v213
    %v230 = vadd.f32 %v191, %v213
    %v231 = vld [vmem:[%s1] sm:$0xf]
    %v232 = vld [vmem:[%s1 + $0x4] sm:$0xf]
    %v233 = vld [vmem:[%s1 + $0x8] sm:$0xf]
    %v234 = vld [vmem:[%s1 + $0xc] sm:$0xf]
    %v235 = vld [vmem:[#allocation2] sm:$0x1]
    %v237 = vlaneseq
    %v238 = vshrl.u32 %v237, 7
    %v239 = vsub.s32 0, %v238
    %v240 = vrot.slane %v235, %v239
    %v246 = vunpack.c.l.b16 %v231
    %v247 = vunpack.c.l.b16 %v232
    %v248 = vunpack.c.l.b16 %v233
    %v249 = vunpack.c.l.b16 %v234
    %v250 = vpack.c.b16 %v247, %v246
    %v251 = vpack.c.b16 %v249, %v248
    %vm254 = vcmask 261120
    %v256 = vsel %vm254, %v200, 0
    %v259 = vsel %vm254, %v201, 0
    %v262 = vsel %vm254, %v202, 0
    %v265 = vsel %vm254, %v203, 0
    %v268 = vsel %vm254, %v204, 0
    %v271 = vsel %vm254, %v205, 0
    %v274 = vsel %vm254, %v206, 0
    %v277 = vsel %vm254, %v207, 0
    %279 = vmatprep.subr.bf16.mxu0 0
    %280 = vmatpush1.bf16.msra.mxu0 %v250
    %281 = vmatprep.subr.bf16.mxu0 0
    %282 = vmatpush1.bf16.msra.mxu0 %v251
    %283 = vmatprep.subr.bf16.mxu0 0
    %284 = vmatpush1.bf16.msra.mxu0 0
    %285 = vmatprep.subr.bf16.mxu0 0
    %286 = vmatpush1.bf16.msra.mxu0 0
    %287 = vmatprep.subr.bf16.mxu0 0
    %288 = vmatpush1.bf16.msra.mxu0 0
    %289 = vmatprep.subr.bf16.mxu0 0
    %290 = vmatpush1.bf16.msra.mxu0 0
    %291 = vmatprep.subr.bf16.mxu0 0
    %292 = vmatpush1.bf16.msra.mxu0 0
    %293 = vmatprep.subr.bf16.mxu0 0
    %294 = vmatpush1.bf16.msra.mxu0 0
    %295 = vmatprep.subr.bf16.mxu0 0
    %296 = vmatpush1.bf16.msra.mxu0 0
    %297 = vmatprep.subr.bf16.mxu0 0
    %298 = vmatpush1.bf16.msra.mxu0 0
    %299 = vmatprep.subr.bf16.mxu0 0
    %300 = vmatpush1.bf16.msra.mxu0 0
    %301 = vmatprep.subr.bf16.mxu0 0
    %302 = vmatpush1.bf16.msra.mxu0 0
    %303 = vmatprep.subr.bf16.mxu0 0
    %304 = vmatpush1.bf16.msra.mxu0 0
    %305 = vmatprep.subr.bf16.mxu0 0
    %306 = vmatpush1.bf16.msra.mxu0 0
    %307 = vmatprep.subr.bf16.mxu0 0
    %308 = vmatpush1.bf16.msra.mxu0 0
    %309 = vmatprep.subr.bf16.mxu0 0
    %310 = vmatpush1.bf16.msra.mxu0 0
    %311 = vmatprep.mubr.bf16.mxu0 0
    %312 = vmatmul.mubr.bf16.gmra.mrb[0].mxu0 %v256
    %v313 = vpop.f32.mrb[0].mxu0
    %v314 = vadd.f32 %v240, %v313
    %v315 = vpop.f32.mrb[0].mxu0
    %v316 = vpop.f32.mrb[0].mxu0
    %v317 = vadd.f32 %v240, %v316
    %v318 = vpop.f32.mrb[0].mxu0
    %319 = vmatprep.mubr.bf16.mxu0 0
    %320 = vmatmul.mubr.bf16.gmra.mrb[0].mxu0 %v259
    %v321 = vpop.f32.mrb[0].mxu0
    %v322 = vadd.f32 %v240, %v321
    %v323 = vpop.f32.mrb[0].mxu0
    %v324 = vpop.f32.mrb[0].mxu0
    %v325 = vadd.f32 %v240, %v324
    %v326 = vpop.f32.mrb[0].mxu0
    %327 = vmatprep.mubr.bf16.mxu0 0
    %328 = vmatmul.mubr.bf16.gmra.mrb[0].mxu0 %v262
    %v329 = vpop.f32.mrb[0].mxu0
    %v330 = vadd.f32 %v240, %v329
    %v331 = vpop.f32.mrb[0].mxu0
    %v332 = vpop.f32.mrb[0].mxu0
    %v333 = vadd.f32 %v240, %v332
    %v334 = vpop.f32.mrb[0].mxu0
    %335 = vmatprep.mubr.bf16.mxu0 0
    %336 = vmatmul.mubr.bf16.gmra.mrb[0].mxu0 %v265
    %v337 = vpop.f32.mrb[0].mxu0
    %v338 = vadd.f32 %v240, %v337
    %v339 = vpop.f32.mrb[0].mxu0
    %v340 = vpop.f32.mrb[0].mxu0
    %v341 = vadd.f32 %v240, %v340
    %v342 = vpop.f32.mrb[0].mxu0
    %343 = vmatprep.mubr.bf16.mxu0 0
    %344 = vmatmul.mubr.bf16.gmra.mrb[0].mxu0 %v268
    %v345 = vpop.f32.mrb[0].mxu0
    %v346 = vadd.f32 %v240, %v345
    %v347 = vpop.f32.mrb[0].mxu0
    %v348 = vpop.f32.mrb[0].mxu0
    %v349 = vadd.f32 %v240, %v348
    %v350 = vpop.f32.mrb[0].mxu0
    %351 = vmatprep.mubr.bf16.mxu0 0
    %352 = vmatmul.mubr.bf16.gmra.mrb[0].mxu0 %v271
    %v353 = vpop.f32.mrb[0].mxu0
    %v354 = vadd.f32 %v240, %v353
    %v355 = vpop.f32.mrb[0].mxu0
    %v356 = vpop.f32.mrb[0].mxu0
    %v357 = vadd.f32 %v240, %v356
    %v358 = vpop.f32.mrb[0].mxu0
    %359 = vmatprep.mubr.bf16.mxu0 0
    %360 = vmatmul.mubr.bf16.gmra.mrb[0].mxu0 %v274
    %v361 = vpop.f32.mrb[0].mxu0
    %v362 = vadd.f32 %v240, %v361
    %v363 = vpop.f32.mrb[0].mxu0
    %v364 = vpop.f32.mrb[0].mxu0
    %v365 = vadd.f32 %v240, %v364
    %v366 = vpop.f32.mrb[0].mxu0
    %367 = vmatprep.mubr.bf16.mxu0 0
    %368 = vmatmul.mubr.bf16.gmra.mrb[0].mxu0 %v277
    %v369 = vpop.f32.mrb[0].mxu0
    %v370 = vadd.f32 %v240, %v369
    %v371 = vpop.f32.mrb[0].mxu0
    %v372 = vpop.f32.mrb[0].mxu0
    %v373 = vadd.f32 %v240, %v372
    %v374 = vpop.f32.mrb[0].mxu0
    %375 = vdwg.mxu0
    %v376 = vpack.c.bf16 %v317, %v314
    %v377 = vpack.c.bf16 %v325, %v322
    %v378 = vpack.c.bf16 %v333, %v330
    %v379 = vpack.c.bf16 %v341, %v338
    %v380 = vpack.c.bf16 %v349, %v346
    %v381 = vpack.c.bf16 %v357, %v354
    %v382 = vpack.c.bf16 %v365, %v362
    %v383 = vpack.c.bf16 %v373, %v370
    %v384 = vld [vmem:[%s2] sm:$0xf]
    %v385 = vld [vmem:[%s2 + $0x4] sm:$0xf]
    %v386 = vld [vmem:[%s2 + $0x8] sm:$0xf]
    %v387 = vld [vmem:[%s2 + $0xc] sm:$0xf]
    %v388 = vld [vmem:[#allocation5] sm:$0x1]
    %v390 = vlaneseq
    %v391 = vshrl.u32 %v390, 7
    %v392 = vsub.s32 0, %v391
    %v393 = vrot.slane %v388, %v392
    %v399 = vunpack.c.l.b16 %v384
    %v400 = vunpack.c.l.b16 %v385
    %v401 = vunpack.c.l.b16 %v386
    %v402 = vunpack.c.l.b16 %v387
    %v403 = vpack.c.b16 %v400, %v399
    %v404 = vpack.c.b16 %v402, %v401
    %407 = vmatprep.subr.bf16.mxu0 0
    %408 = vmatpush1.bf16.msra.mxu0 %v403
    %409 = vmatprep.subr.bf16.mxu0 0
    %410 = vmatpush1.bf16.msra.mxu0 %v404
    %411 = vmatprep.subr.bf16.mxu0 0
    %412 = vmatpush1.bf16.msra.mxu0 0
    %413 = vmatprep.subr.bf16.mxu0 0
    %414 = vmatpush1.bf16.msra.mxu0 0
    %415 = vmatprep.subr.bf16.mxu0 0
    %416 = vmatpush1.bf16.msra.mxu0 0
    %417 = vmatprep.subr.bf16.mxu0 0
    %418 = vmatpush1.bf16.msra.mxu0 0
    %419 = vmatprep.subr.bf16.mxu0 0
    %420 = vmatpush1.bf16.msra.mxu0 0
    %421 = vmatprep.subr.bf16.mxu0 0
    %422 = vmatpush1.bf16.msra.mxu0 0
    %423 = vmatprep.subr.bf16.mxu0 0
    %424 = vmatpush1.bf16.msra.mxu0 0
    %425 = vmatprep.subr.bf16.mxu0 0
    %426 = vmatpush1.bf16.msra.mxu0 0
    %427 = vmatprep.subr.bf16.mxu0 0
    %428 = vmatpush1.bf16.msra.mxu0 0
    %429 = vmatprep.subr.bf16.mxu0 0
    %430 = vmatpush1.bf16.msra.mxu0 0
    %431 = vmatprep.subr.bf16.mxu0 0
    %432 = vmatpush1.bf16.msra.mxu0 0
    %433 = vmatprep.subr.bf16.mxu0 0
    %434 = vmatpush1.bf16.msra.mxu0 0
    %435 = vmatprep.subr.bf16.mxu0 0
    %436 = vmatpush1.bf16.msra.mxu0 0
    %437 = vmatprep.subr.bf16.mxu0 0
    %438 = vmatpush1.bf16.msra.mxu0 0
    %439 = vmatprep.mubr.bf16.mxu0 0
    %440 = vmatmul.mubr.bf16.gmra.mrb[0].mxu0 %v256
    %v441 = vpop.f32.mrb[0].mxu0
    %v442 = vadd.f32 %v393, %v441
    %v443 = vpop.f32.mrb[0].mxu0
    %v444 = vpop.f32.mrb[0].mxu0
    %v445 = vadd.f32 %v393, %v444
    %v446 = vpop.f32.mrb[0].mxu0
    %447 = vmatprep.mubr.bf16.mxu0 0
    %448 = vmatmul.mubr.bf16.gmra.mrb[0].mxu0 %v259
    %v449 = vpop.f32.mrb[0].mxu0
    %v450 = vadd.f32 %v393, %v449
    %v451 = vpop.f32.mrb[0].mxu0
    %v452 = vpop.f32.mrb[0].mxu0
    %v453 = vadd.f32 %v393, %v452
    %v454 = vpop.f32.mrb[0].mxu0
    %455 = vmatprep.mubr.bf16.mxu0 0
    %456 = vmatmul.mubr.bf16.gmra.mrb[0].mxu0 %v262
    %v457 = vpop.f32.mrb[0].mxu0
    %v458 = vadd.f32 %v393, %v457
    %v459 = vpop.f32.mrb[0].mxu0
    %v460 = vpop.f32.mrb[0].mxu0
    %v461 = vadd.f32 %v393, %v460
    %v462 = vpop.f32.mrb[0].mxu0
    %463 = vmatprep.mubr.bf16.mxu0 0
    %464 = vmatmul.mubr.bf16.gmra.mrb[0].mxu0 %v265
    %v465 = vpop.f32.mrb[0].mxu0
    %v466 = vadd.f32 %v393, %v465
    %v467 = vpop.f32.mrb[0].mxu0
    %v468 = vpop.f32.mrb[0].mxu0
    %v469 = vadd.f32 %v393, %v468
    %v470 = vpop.f32.mrb[0].mxu0
    %471 = vmatprep.mubr.bf16.mxu0 0
    %472 = vmatmul.mubr.bf16.gmra.mrb[0].mxu0 %v268
    %v473 = vpop.f32.mrb[0].mxu0
    %v474 = vadd.f32 %v393, %v473
    %v475 = vpop.f32.mrb[0].mxu0
    %v476 = vpop.f32.mrb[0].mxu0
    %v477 = vadd.f32 %v393, %v476
    %v478 = vpop.f32.mrb[0].mxu0
    %479 = vmatprep.mubr.bf16.mxu0 0
    %480 = vmatmul.mubr.bf16.gmra.mrb[0].mxu0 %v271
    %v481 = vpop.f32.mrb[0].mxu0
    %v482 = vadd.f32 %v393, %v481
    %v483 = vpop.f32.mrb[0].mxu0
    %v484 = vpop.f32.mrb[0].mxu0
    %v485 = vadd.f32 %v393, %v484
    %v486 = vpop.f32.mrb[0].mxu0
    %487 = vmatprep.mubr.bf16.mxu0 0
    %488 = vmatmul.mubr.bf16.gmra.mrb[0].mxu0 %v274
    %v489 = vpop.f32.mrb[0].mxu0
    %v490 = vadd.f32 %v393, %v489
    %v491 = vpop.f32.mrb[0].mxu0
    %v492 = vpop.f32.mrb[0].mxu0
    %v493 = vadd.f32 %v393, %v492
    %v494 = vpop.f32.mrb[0].mxu0
    %495 = vmatprep.mubr.bf16.mxu0 0
    %496 = vmatmul.mubr.bf16.gmra.mrb[0].mxu0 %v277
    %v497 = vpop.f32.mrb[0].mxu0
    %v498 = vadd.f32 %v393, %v497
    %v499 = vpop.f32.mrb[0].mxu0
    %v500 = vpop.f32.mrb[0].mxu0
    %v501 = vadd.f32 %v393, %v500
    %v502 = vpop.f32.mrb[0].mxu0
    %503 = vdwg.mxu0
    %v504 = vpack.c.bf16 %v445, %v442
    %v505 = vpack.c.bf16 %v453, %v450
    %v506 = vpack.c.bf16 %v461, %v458
    %v507 = vpack.c.bf16 %v469, %v466
    %v508 = vpack.c.bf16 %v477, %v474
    %v509 = vpack.c.bf16 %v485, %v482
    %v510 = vpack.c.bf16 %v493, %v490
    %v511 = vpack.c.bf16 %v501, %v498
    %v512 = vld [vmem:[%s3] sm:$0xf]
    %v513 = vld [vmem:[%s3 + $0x4] sm:$0xf]
    %v514 = vld [vmem:[%s3 + $0x8] sm:$0xf]
    %v515 = vld [vmem:[%s3 + $0xc] sm:$0xf]
    %v516 = vld [vmem:[#allocation7] sm:$0x1]
    %v518 = vlaneseq
    %v519 = vshrl.u32 %v518, 7
    %v520 = vsub.s32 0, %v519
    %v521 = vrot.slane %v516, %v520
    %v527 = vunpack.c.l.b16 %v512
    %v528 = vunpack.c.l.b16 %v513
    %v529 = vunpack.c.l.b16 %v514
    %v530 = vunpack.c.l.b16 %v515
    %v531 = vpack.c.b16 %v528, %v527
    %v532 = vpack.c.b16 %v530, %v529
    %535 = vmatprep.subr.bf16.mxu0 0
    %536 = vmatpush1.bf16.msra.mxu0 %v531
    %537 = vmatprep.subr.bf16.mxu0 0
    %538 = vmatpush1.bf16.msra.mxu0 %v532
    %539 = vmatprep.subr.bf16.mxu0 0
    %540 = vmatpush1.bf16.msra.mxu0 0
    %541 = vmatprep.subr.bf16.mxu0 0
    %542 = vmatpush1.bf16.msra.mxu0 0
    %543 = vmatprep.subr.bf16.mxu0 0
    %544 = vmatpush1.bf16.msra.mxu0 0
    %545 = vmatprep.subr.bf16.mxu0 0
    %546 = vmatpush1.bf16.msra.mxu0 0
    %547 = vmatprep.subr.bf16.mxu0 0
    %548 = vmatpush1.bf16.msra.mxu0 0
    %549 = vmatprep.subr.bf16.mxu0 0
    %550 = vmatpush1.bf16.msra.mxu0 0
    %551 = vmatprep.subr.bf16.mxu0 0
    %552 = vmatpush1.bf16.msra.mxu0 0
    %553 = vmatprep.subr.bf16.mxu0 0
    %554 = vmatpush1.bf16.msra.mxu0 0
    %555 = vmatprep.subr.bf16.mxu0 0
    %556 = vmatpush1.bf16.msra.mxu0 0
    %557 = vmatprep.subr.bf16.mxu0 0
    %558 = vmatpush1.bf16.msra.mxu0 0
    %559 = vmatprep.subr.bf16.mxu0 0
    %560 = vmatpush1.bf16.msra.mxu0 0
    %561 = vmatprep.subr.bf16.mxu0 0
    %562 = vmatpush1.bf16.msra.mxu0 0
    %563 = vmatprep.subr.bf16.mxu0 0
    %564 = vmatpush1.bf16.msra.mxu0 0
    %565 = vmatprep.subr.bf16.mxu0 0
    %566 = vmatpush1.bf16.msra.mxu0 0
    %567 = vmatprep.mubr.bf16.mxu0 0
    %568 = vmatmul.mubr.bf16.gmra.mrb[0].mxu0 %v256
    %v569 = vpop.f32.mrb[0].mxu0
    %v570 = vadd.f32 %v521, %v569
    %v571 = vpop.f32.mrb[0].mxu0
    %v572 = vpop.f32.mrb[0].mxu0
    %v573 = vadd.f32 %v521, %v572
    %v574 = vpop.f32.mrb[0].mxu0
    %575 = vmatprep.mubr.bf16.mxu0 0
    %576 = vmatmul.mubr.bf16.gmra.mrb[0].mxu0 %v259
    %v577 = vpop.f32.mrb[0].mxu0
    %v578 = vadd.f32 %v521, %v577
    %v579 = vpop.f32.mrb[0].mxu0
    %v580 = vpop.f32.mrb[0].mxu0
    %v581 = vadd.f32 %v521, %v580
    %v582 = vpop.f32.mrb[0].mxu0
    %583 = vmatprep.mubr.bf16.mxu0 0
    %584 = vmatmul.mubr.bf16.gmra.mrb[0].mxu0 %v262
    %v585 = vpop.f32.mrb[0].mxu0
    %v586 = vadd.f32 %v521, %v585
    %v587 = vpop.f32.mrb[0].mxu0
    %v588 = vpop.f32.mrb[0].mxu0
    %v589 = vadd.f32 %v521, %v588
    %v590 = vpop.f32.mrb[0].mxu0
    %591 = vmatprep.mubr.bf16.mxu0 0
    %592 = vmatmul.mubr.bf16.gmra.mrb[0].mxu0 %v265
    %v593 = vpop.f32.mrb[0].mxu0
    %v594 = vadd.f32 %v521, %v593
    %v595 = vpop.f32.mrb[0].mxu0
    %v596 = vpop.f32.mrb[0].mxu0
    %v597 = vadd.f32 %v521, %v596
    %v598 = vpop.f32.mrb[0].mxu0
    %599 = vmatprep.mubr.bf16.mxu0 0
    %600 = vmatmul.mubr.bf16.gmra.mrb[0].mxu0 %v268
    %v601 = vpop.f32.mrb[0].mxu0
    %v602 = vadd.f32 %v521, %v601
    %v603 = vpop.f32.mrb[0].mxu0
    %v604 = vpop.f32.mrb[0].mxu0
    %v605 = vadd.f32 %v521, %v604
    %v606 = vpop.f32.mrb[0].mxu0
    %607 = vmatprep.mubr.bf16.mxu0 0
    %608 = vmatmul.mubr.bf16.gmra.mrb[0].mxu0 %v271
    %v609 = vpop.f32.mrb[0].mxu0
    %v610 = vadd.f32 %v521, %v609
    %v611 = vpop.f32.mrb[0].mxu0
    %v612 = vpop.f32.mrb[0].mxu0
    %v613 = vadd.f32 %v521, %v612
    %v614 = vpop.f32.mrb[0].mxu0
    %615 = vmatprep.mubr.bf16.mxu0 0
    %616 = vmatmul.mubr.bf16.gmra.mrb[0].mxu0 %v274
    %v617 = vpop.f32.mrb[0].mxu0
    %v618 = vadd.f32 %v521, %v617
    %v619 = vpop.f32.mrb[0].mxu0
    %v620 = vpop.f32.mrb[0].mxu0
    %v621 = vadd.f32 %v521, %v620
    %v622 = vpop.f32.mrb[0].mxu0
    %623 = vmatprep.mubr.bf16.mxu0 0
    %624 = vmatmul.mubr.bf16.gmra.mrb[0].mxu0 %v277
    %v625 = vpop.f32.mrb[0].mxu0
    %v626 = vadd.f32 %v521, %v625
    %v627 = vpop.f32.mrb[0].mxu0
    %v628 = vpop.f32.mrb[0].mxu0
    %v629 = vadd.f32 %v521, %v628
    %v630 = vpop.f32.mrb[0].mxu0
    %631 = vdwg.mxu0
    %v632 = vpack.c.bf16 %v573, %v570
    %v633 = vpack.c.bf16 %v581, %v578
    %v634 = vpack.c.bf16 %v589, %v586
    %v635 = vpack.c.bf16 %v597, %v594
    %v636 = vpack.c.bf16 %v605, %v602
    %v637 = vpack.c.bf16 %v613, %v610
    %v638 = vpack.c.bf16 %v621, %v618
    %v639 = vpack.c.bf16 %v629, %v626
    %v640 = vld [vmem:[%s13] sm:$0xf]
    %v641 = vld [vmem:[%s13 + $0x4] sm:$0xf]
    %v642 = vld [vmem:[%s13 + $0x8] sm:$0xf]
    %v643 = vld [vmem:[%s13 + $0xc] sm:$0xf]
    %v644 = vld [vmem:[%s13 + $0x10] sm:$0xf]
    %v645 = vld [vmem:[%s13 + $0x14] sm:$0xf]
    %v646 = vld [vmem:[%s13 + $0x18] sm:$0xf]
    %v647 = vld [vmem:[%s13 + $0x1c] sm:$0xf]
    %v648 = vld [vmem:[%s13 + $0x20] sm:$0xf]
    %v649 = vld [vmem:[%s13 + $0x24] sm:$0xf]
    %v650 = vld [vmem:[%s13 + $0x28] sm:$0xf]
    %v651 = vld [vmem:[%s13 + $0x2c] sm:$0xf]
    %v652 = vld [vmem:[%s13 + $0x30] sm:$0xf]
    %v653 = vld [vmem:[%s13 + $0x34] sm:$0xf]
    %v654 = vld [vmem:[%s13 + $0x38] sm:$0xf]
    %v655 = vld [vmem:[%s13 + $0x3c] sm:$0xf]
    %v656 = vunpack.c.l.bf16 %v640
    %v657 = vunpack.c.l.bf16 %v641
    %v658 = vunpack.c.l.bf16 %v642
    %v659 = vunpack.c.l.bf16 %v643
    %v660 = vunpack.c.l.bf16 %v644
    %v661 = vunpack.c.l.bf16 %v645
    %v662 = vunpack.c.l.bf16 %v646
    %v663 = vunpack.c.l.bf16 %v647
    %v664 = vunpack.c.l.bf16 %v648
    %v665 = vunpack.c.l.bf16 %v649
    %v666 = vunpack.c.l.bf16 %v650
    %v667 = vunpack.c.l.bf16 %v651
    %v668 = vunpack.c.l.bf16 %v652
    %v669 = vunpack.c.l.bf16 %v653
    %v670 = vunpack.c.l.bf16 %v654
    %v671 = vunpack.c.l.bf16 %v655
    %vm672 = vcmask 64512
    %v674 = vsel %vm672, %v376, 0
    %v677 = vsel %vm672, %v377, 0
    %v680 = vsel %vm672, %v378, 0
    %v683 = vsel %vm672, %v379, 0
    %v686 = vsel %vm672, %v380, 0
    %v689 = vsel %vm672, %v381, 0
    %v692 = vsel %vm672, %v382, 0
    %v695 = vsel %vm672, %v383, 0
    %v698 = vsel %vm672, %v504, 0
    %v701 = vsel %vm672, %v505, 0
    %v704 = vsel %vm672, %v506, 0
    %v707 = vsel %vm672, %v507, 0
    %v710 = vsel %vm672, %v508, 0
    %v713 = vsel %vm672, %v509, 0
    %v716 = vsel %vm672, %v510, 0
    %v719 = vsel %vm672, %v511, 0
    %721 = vmatprep.subr.bf16.mxu0 0
    %722 = vmatpush1.bf16.xpose.msra.mxu0 %v698
    %723 = vmatprep.subr.bf16.mxu0 0
    %724 = vmatpush1.bf16.xpose.msra.mxu0 %v701
    %725 = vmatprep.subr.bf16.mxu0 0
    %726 = vmatpush1.bf16.xpose.msra.mxu0 %v704
    %727 = vmatprep.subr.bf16.mxu0 0
    %728 = vmatpush1.bf16.xpose.msra.mxu0 %v707
    %729 = vmatprep.subr.bf16.mxu0 0
    %730 = vmatpush1.bf16.xpose.msra.mxu0 %v710
    %731 = vmatprep.subr.bf16.mxu0 0
    %732 = vmatpush1.bf16.xpose.msra.mxu0 %v713
    %733 = vmatprep.subr.bf16.mxu0 0
    %734 = vmatpush1.bf16.xpose.msra.mxu0 %v716
    %735 = vmatprep.subr.bf16.mxu0 0
    %736 = vmatpush1.bf16.xpose.msra.mxu0 %v719
    %737 = vmatprep.subr.bf16.mxu0 0
    %738 = vmatpush1.bf16.xpose.msra.mxu0 0
    %739 = vmatprep.subr.bf16.mxu0 0
    %740 = vmatpush1.bf16.xpose.msra.mxu0 0
    %741 = vmatprep.subr.bf16.mxu0 0
    %742 = vmatpush1.bf16.xpose.msra.mxu0 0
    %743 = vmatprep.subr.bf16.mxu0 0
    %744 = vmatpush1.bf16.xpose.msra.mxu0 0
    %745 = vmatprep.subr.bf16.mxu0 0
    %746 = vmatpush1.bf16.xpose.msra.mxu0 0
    %747 = vmatprep.subr.bf16.mxu0 0
    %748 = vmatpush1.bf16.xpose.msra.mxu0 0
    %749 = vmatprep.subr.bf16.mxu0 0
    %750 = vmatpush1.bf16.xpose.msra.mxu0 0
    %751 = vmatprep.subr.bf16.mxu0 0
    %752 = vmatpush1.bf16.xpose.msra.mxu0 0
    %753 = vmatprep.mubr.bf16.mxu0 0
    %754 = vmatmul.mubr.bf16.gmra.mrb[0].mxu0 %v674
    %v755 = vpop.f32.mrb[0].mxu0
    %v756 = vadd.f32 %v656, %v755
    %v757 = vpop.f32.mrb[0].mxu0
    %v758 = vpop.f32.mrb[0].mxu0
    %v759 = vadd.f32 %v657, %v758
    %v760 = vpop.f32.mrb[0].mxu0
    %761 = vmatprep.mubr.bf16.mxu0 0
    %762 = vmatmul.mubr.bf16.gmra.mrb[0].mxu0 %v677
    %v763 = vpop.f32.mrb[0].mxu0
    %v764 = vadd.f32 %v658, %v763
    %v765 = vpop.f32.mrb[0].mxu0
    %v766 = vpop.f32.mrb[0].mxu0
    %v767 = vadd.f32 %v659, %v766
    %v768 = vpop.f32.mrb[0].mxu0
    %769 = vmatprep.mubr.bf16.mxu0 0
    %770 = vmatmul.mubr.bf16.gmra.mrb[0].mxu0 %v680
    %v771 = vpop.f32.mrb[0].mxu0
    %v772 = vadd.f32 %v660, %v771
    %v773 = vpop.f32.mrb[0].mxu0
    %v774 = vpop.f32.mrb[0].mxu0
    %v775 = vadd.f32 %v661, %v774
    %v776 = vpop.f32.mrb[0].mxu0
    %777 = vmatprep.mubr.bf16.mxu0 0
    %778 = vmatmul.mubr.bf16.gmra.mrb[0].mxu0 %v683
    %v779 = vpop.f32.mrb[0].mxu0
    %v780 = vadd.f32 %v662, %v779
    %v781 = vpop.f32.mrb[0].mxu0
    %v782 = vpop.f32.mrb[0].mxu0
    %v783 = vadd.f32 %v663, %v782
    %v784 = vpop.f32.mrb[0].mxu0
    %785 = vmatprep.mubr.bf16.mxu0 0
    %786 = vmatmul.mubr.bf16.gmra.mrb[0].mxu0 %v686
    %v787 = vpop.f32.mrb[0].mxu0
    %v788 = vadd.f32 %v664, %v787
    %v789 = vpop.f32.mrb[0].mxu0
    %v790 = vpop.f32.mrb[0].mxu0
    %v791 = vadd.f32 %v665, %v790
    %v792 = vpop.f32.mrb[0].mxu0
    %793 = vmatprep.mubr.bf16.mxu0 0
    %794 = vmatmul.mubr.bf16.gmra.mrb[0].mxu0 %v689
    %v795 = vpop.f32.mrb[0].mxu0
    %v796 = vadd.f32 %v666, %v795
    %v797 = vpop.f32.mrb[0].mxu0
    %v798 = vpop.f32.mrb[0].mxu0
    %v799 = vadd.f32 %v667, %v798
    %v800 = vpop.f32.mrb[0].mxu0
    %801 = vmatprep.mubr.bf16.mxu0 0
    %802 = vmatmul.mubr.bf16.gmra.mrb[0].mxu0 %v692
    %v803 = vpop.f32.mrb[0].mxu0
    %v804 = vadd.f32 %v668, %v803
    %v805 = vpop.f32.mrb[0].mxu0
    %v806 = vpop.f32.mrb[0].mxu0
    %v807 = vadd.f32 %v669, %v806
    %v808 = vpop.f32.mrb[0].mxu0
    %809 = vmatprep.mubr.bf16.mxu0 0
    %810 = vmatmul.mubr.bf16.gmra.mrb[0].mxu0 %v695
    %v811 = vpop.f32.mrb[0].mxu0
    %v812 = vadd.f32 %v670, %v811
    %v813 = vpop.f32.mrb[0].mxu0
    %v814 = vpop.f32.mrb[0].mxu0
    %v815 = vadd.f32 %v671, %v814
    %v816 = vpop.f32.mrb[0].mxu0
    %817 = vdwg.mxu0
    %818 = vmax.xlane.f32.xlu0 %v756
    %v819 = vpop.xlane.xlu0 %818
    %820 = vmax.xlane.f32.xlu0 %v759
    %v821 = vpop.xlane.xlu0 %820
    %822 = vmax.xlane.f32.xlu0 %v764
    %v823 = vpop.xlane.xlu0 %822
    %824 = vmax.xlane.f32.xlu0 %v767
    %v825 = vpop.xlane.xlu0 %824
    %826 = vmax.xlane.f32.xlu0 %v772
    %v827 = vpop.xlane.xlu0 %826
    %828 = vmax.xlane.f32.xlu0 %v775
    %v829 = vpop.xlane.xlu0 %828
    %830 = vmax.xlane.f32.xlu0 %v780
    %v831 = vpop.xlane.xlu0 %830
    %832 = vmax.xlane.f32.xlu0 %v783
    %v833 = vpop.xlane.xlu0 %832
    %834 = vmax.xlane.f32.xlu0 %v788
    %v835 = vpop.xlane.xlu0 %834
    %836 = vmax.xlane.f32.xlu0 %v791
    %v837 = vpop.xlane.xlu0 %836
    %838 = vmax.xlane.f32.xlu0 %v796
    %v839 = vpop.xlane.xlu0 %838
    %840 = vmax.xlane.f32.xlu0 %v799
    %v841 = vpop.xlane.xlu0 %840
    %842 = vmax.xlane.f32.xlu0 %v804
    %v843 = vpop.xlane.xlu0 %842
    %844 = vmax.xlane.f32.xlu0 %v807
    %v845 = vpop.xlane.xlu0 %844
    %846 = vmax.xlane.f32.xlu0 %v812
    %v847 = vpop.xlane.xlu0 %846
    %848 = vmax.xlane.f32.xlu0 %v815
    %v849 = vpop.xlane.xlu0 %848
    %v850 = vsub.f32 %v756, %v819
    %v851 = vsub.f32 %v759, %v821
    %v852 = vsub.f32 %v764, %v823
    %v853 = vsub.f32 %v767, %v825
    %v854 = vsub.f32 %v772, %v827
    %v855 = vsub.f32 %v775, %v829
    %v856 = vsub.f32 %v780, %v831
    %v857 = vsub.f32 %v783, %v833
    %v858 = vsub.f32 %v788, %v835
    %v859 = vsub.f32 %v791, %v837
    %v860 = vsub.f32 %v796, %v839
    %v861 = vsub.f32 %v799, %v841
    %v862 = vsub.f32 %v804, %v843
    %v863 = vsub.f32 %v807, %v845
    %v864 = vsub.f32 %v812, %v847
    %v865 = vsub.f32 %v815, %v849
    %v866 = vmul.f32 %v850, 1.442695
    %v867 = vpow.pop %v866
    %v868 = vmul.f32 %v851, 1.442695
    %v869 = vpow.pop %v868
    %v870 = vmul.f32 %v852, 1.442695
    %v871 = vpow.pop %v870
    %v872 = vmul.f32 %v853, 1.442695
    %v873 = vpow.pop %v872
    %v874 = vmul.f32 %v854, 1.442695
    %v875 = vpow.pop %v874
    %v876 = vmul.f32 %v855, 1.442695
    %v877 = vpow.pop %v876
    %v878 = vmul.f32 %v856, 1.442695
    %v879 = vpow.pop %v878
    %v880 = vmul.f32 %v857, 1.442695
    %v881 = vpow.pop %v880
    %v882 = vmul.f32 %v858, 1.442695
    %v883 = vpow.pop %v882
    %v884 = vmul.f32 %v859, 1.442695
    %v885 = vpow.pop %v884
    %v886 = vmul.f32 %v860, 1.442695
    %v887 = vpow.pop %v886
    %v888 = vmul.f32 %v861, 1.442695
    %v889 = vpow.pop %v888
    %v890 = vmul.f32 %v862, 1.442695
    %v891 = vpow.pop %v890
    %v892 = vmul.f32 %v863, 1.442695
    %v893 = vpow.pop %v892
    %v894 = vmul.f32 %v864, 1.442695
    %v895 = vpow.pop %v894
    %v896 = vmul.f32 %v865, 1.442695
    %v897 = vpow.pop %v896
    %898 = vadd.xlane.f32.xlu0 %v867
    %v899 = vpop.xlane.xlu0 %898
    %900 = vadd.xlane.f32.xlu0 %v869
    %v901 = vpop.xlane.xlu0 %900
    %902 = vadd.xlane.f32.xlu0 %v871
    %v903 = vpop.xlane.xlu0 %902
    %904 = vadd.xlane.f32.xlu0 %v873
    %v905 = vpop.xlane.xlu0 %904
    %906 = vadd.xlane.f32.xlu0 %v875
    %v907 = vpop.xlane.xlu0 %906
    %908 = vadd.xlane.f32.xlu0 %v877
    %v909 = vpop.xlane.xlu0 %908
    %910 = vadd.xlane.f32.xlu0 %v879
    %v911 = vpop.xlane.xlu0 %910
    %912 = vadd.xlane.f32.xlu0 %v881
    %v913 = vpop.xlane.xlu0 %912
    %914 = vadd.xlane.f32.xlu0 %v883
    %v915 = vpop.xlane.xlu0 %914
    %916 = vadd.xlane.f32.xlu0 %v885
    %v917 = vpop.xlane.xlu0 %916
    %918 = vadd.xlane.f32.xlu0 %v887
    %v919 = vpop.xlane.xlu0 %918
    %920 = vadd.xlane.f32.xlu0 %v889
    %v921 = vpop.xlane.xlu0 %920
    %922 = vadd.xlane.f32.xlu0 %v891
    %v923 = vpop.xlane.xlu0 %922
    %924 = vadd.xlane.f32.xlu0 %v893
    %v925 = vpop.xlane.xlu0 %924
    %926 = vadd.xlane.f32.xlu0 %v895
    %v927 = vpop.xlane.xlu0 %926
    %928 = vadd.xlane.f32.xlu0 %v897
    %v929 = vpop.xlane.xlu0 %928
    %v930 = vrcp.pop %v899
    %v931 = vrcp.pop %v901
    %v932 = vrcp.pop %v903
    %v933 = vrcp.pop %v905
    %v934 = vrcp.pop %v907
    %v935 = vrcp.pop %v909
    %v936 = vrcp.pop %v911
    %v937 = vrcp.pop %v913
    %v938 = vrcp.pop %v915
    %v939 = vrcp.pop %v917
    %v940 = vrcp.pop %v919
    %v941 = vrcp.pop %v921
    %v942 = vrcp.pop %v923
    %v943 = vrcp.pop %v925
    %v944 = vrcp.pop %v927
    %v945 = vrcp.pop %v929
    %v946 = vmul.f32 %v867, %v930
    %v947 = vmul.f32 %v869, %v931
    %v948 = vmul.f32 %v871, %v932
    %v949 = vmul.f32 %v873, %v933
    %v950 = vmul.f32 %v875, %v934
    %v951 = vmul.f32 %v877, %v935
    %v952 = vmul.f32 %v879, %v936
    %v953 = vmul.f32 %v881, %v937
    %v954 = vmul.f32 %v883, %v938
    %v955 = vmul.f32 %v885, %v939
    %v956 = vmul.f32 %v887, %v940
    %v957 = vmul.f32 %v889, %v941
    %v958 = vmul.f32 %v891, %v942
    %v959 = vmul.f32 %v893, %v943
    %v960 = vmul.f32 %v895, %v944
    %v961 = vmul.f32 %v897, %v945
    %v962 = vpack.c.bf16 %v947, %v946
    %v963 = vpack.c.bf16 %v949, %v948
    %v964 = vpack.c.bf16 %v951, %v950
    %v965 = vpack.c.bf16 %v953, %v952
    %v966 = vpack.c.bf16 %v955, %v954
    %v967 = vpack.c.bf16 %v957, %v956
    %v968 = vpack.c.bf16 %v959, %v958
    %v969 = vpack.c.bf16 %v961, %v960
    %970 = vmatprep.subr.bf16.mxu0 0
    %971 = vmatpush1.bf16.msra.mxu0 %v632
    %972 = vmatprep.subr.bf16.mxu0 0
    %973 = vmatpush1.bf16.msra.mxu0 %v633
    %974 = vmatprep.subr.bf16.mxu0 0
    %975 = vmatpush1.bf16.msra.mxu0 %v634
    %976 = vmatprep.subr.bf16.mxu0 0
    %977 = vmatpush1.bf16.msra.mxu0 %v635
    %978 = vmatprep.subr.bf16.mxu0 0
    %979 = vmatpush1.bf16.msra.mxu0 %v636
    %980 = vmatprep.subr.bf16.mxu0 0
    %981 = vmatpush1.bf16.msra.mxu0 %v637
    %982 = vmatprep.subr.bf16.mxu0 0
    %983 = vmatpush1.bf16.msra.mxu0 %v638
    %984 = vmatprep.subr.bf16.mxu0 0
    %985 = vmatpush1.bf16.msra.mxu0 %v639
    %986 = vmatprep.subr.bf16.mxu0 0
    %987 = vmatpush1.bf16.msra.mxu0 0
    %988 = vmatprep.subr.bf16.mxu0 0
    %989 = vmatpush1.bf16.msra.mxu0 0
    %990 = vmatprep.subr.bf16.mxu0 0
    %991 = vmatpush1.bf16.msra.mxu0 0
    %992 = vmatprep.subr.bf16.mxu0 0
    %993 = vmatpush1.bf16.msra.mxu0 0
    %994 = vmatprep.subr.bf16.mxu0 0
    %995 = vmatpush1.bf16.msra.mxu0 0
    %996 = vmatprep.subr.bf16.mxu0 0
    %997 = vmatpush1.bf16.msra.mxu0 0
    %998 = vmatprep.subr.bf16.mxu0 0
    %999 = vmatpush1.bf16.msra.mxu0 0
    %1000 = vmatprep.subr.bf16.mxu0 0
    %1001 = vmatpush1.bf16.msra.mxu0 0
    %1002 = vmatprep.mubr.bf16.mxu0 0
    %1003 = vmatmul.mubr.bf16.gmra.mrb[0].mxu0 %v962
    %v1004 = vpop.f32.mrb[0].mxu0
    %v1005 = vadd.f32 0.0, %v1004
    %v1006 = vpop.f32.mrb[0].mxu0
    %v1007 = vpop.f32.mrb[0].mxu0
    %v1008 = vadd.f32 0.0, %v1007
    %v1009 = vpop.f32.mrb[0].mxu0
    %1010 = vmatprep.mubr.bf16.mxu0 0
    %1011 = vmatmul.mubr.bf16.gmra.mrb[0].mxu0 %v963
    %v1012 = vpop.f32.mrb[0].mxu0
    %v1013 = vadd.f32 0.0, %v1012
    %v1014 = vpop.f32.mrb[0].mxu0
    %v1015 = vpop.f32.mrb[0].mxu0
    %v1016 = vadd.f32 0.0, %v1015
    %v1017 = vpop.f32.mrb[0].mxu0
    %1018 = vmatprep.mubr.bf16.mxu0 0
    %1019 = vmatmul.mubr.bf16.gmra.mrb[0].mxu0 %v964
    %v1020 = vpop.f32.mrb[0].mxu0
    %v1021 = vadd.f32 0.0, %v1020
    %v1022 = vpop.f32.mrb[0].mxu0
    %v1023 = vpop.f32.mrb[0].mxu0
    %v1024 = vadd.f32 0.0, %v1023
    %v1025 = vpop.f32.mrb[0].mxu0
    %1026 = vmatprep.mubr.bf16.mxu0 0
    %1027 = vmatmul.mubr.bf16.gmra.mrb[0].mxu0 %v965
    %v1028 = vpop.f32.mrb[0].mxu0
    %v1029 = vadd.f32 0.0, %v1028
    %v1030 = vpop.f32.mrb[0].mxu0
    %v1031 = vpop.f32.mrb[0].mxu0
    %v1032 = vadd.f32 0.0, %v1031
    %v1033 = vpop.f32.mrb[0].mxu0
    %1034 = vmatprep.mubr.bf16.mxu0 0
    %1035 = vmatmul.mubr.bf16.gmra.mrb[0].mxu0 %v966
    %v1036 = vpop.f32.mrb[0].mxu0
    %v1037 = vadd.f32 0.0, %v1036
    %v1038 = vpop.f32.mrb[0].mxu0
    %v1039 = vpop.f32.mrb[0].mxu0
    %v1040 = vadd.f32 0.0, %v1039
    %v1041 = vpop.f32.mrb[0].mxu0
    %1042 = vmatprep.mubr.bf16.mxu0 0
    %1043 = vmatmul.mubr.bf16.gmra.mrb[0].mxu0 %v967
    %v1044 = vpop.f32.mrb[0].mxu0
    %v1045 = vadd.f32 0.0, %v1044
    %v1046 = vpop.f32.mrb[0].mxu0
    %v1047 = vpop.f32.mrb[0].mxu0
    %v1048 = vadd.f32 0.0, %v1047
    %v1049 = vpop.f32.mrb[0].mxu0
    %1050 = vmatprep.mubr.bf16.mxu0 0
    %1051 = vmatmul.mubr.bf16.gmra.mrb[0].mxu0 %v968
    %v1052 = vpop.f32.mrb[0].mxu0
    %v1053 = vadd.f32 0.0, %v1052
    %v1054 = vpop.f32.mrb[0].mxu0
    %v1055 = vpop.f32.mrb[0].mxu0
    %v1056 = vadd.f32 0.0, %v1055
    %v1057 = vpop.f32.mrb[0].mxu0
    %1058 = vmatprep.mubr.bf16.mxu0 0
    %1059 = vmatmul.mubr.bf16.gmra.mrb[0].mxu0 %v969
    %v1060 = vpop.f32.mrb[0].mxu0
    %v1061 = vadd.f32 0.0, %v1060
    %v1062 = vpop.f32.mrb[0].mxu0
    %v1063 = vpop.f32.mrb[0].mxu0
    %v1064 = vadd.f32 0.0, %v1063
    %v1065 = vpop.f32.mrb[0].mxu0
    %1066 = vdwg.mxu0
    %v1067 = vadd.f32 %v1005, 3.0
    %v1068 = vadd.f32 %v1008, 3.0
    %v1069 = vadd.f32 %v1013, 3.0
    %v1070 = vadd.f32 %v1016, 3.0
    %v1071 = vadd.f32 %v1021, 3.0
    %v1072 = vadd.f32 %v1024, 3.0
    %v1073 = vadd.f32 %v1029, 3.0
    %v1074 = vadd.f32 %v1032, 3.0
    %v1075 = vadd.f32 %v1037, 3.0
    %v1076 = vadd.f32 %v1040, 3.0
    %v1077 = vadd.f32 %v1045, 3.0
    %v1078 = vadd.f32 %v1048, 3.0
    %v1079 = vadd.f32 %v1053, 3.0
    %v1080 = vadd.f32 %v1056, 3.0
    %v1081 = vadd.f32 %v1061, 3.0
    %v1082 = vadd.f32 %v1064, 3.0
    %v1083 = vmax.f32 %v1067, 0.0
    %v1084 = vmax.f32 %v1068, 0.0
    %v1085 = vmax.f32 %v1069, 0.0
    %v1086 = vmax.f32 %v1070, 0.0
    %v1087 = vmax.f32 %v1071, 0.0
    %v1088 = vmax.f32 %v1072, 0.0
    %v1089 = vmax.f32 %v1073, 0.0
    %v1090 = vmax.f32 %v1074, 0.0
    %v1091 = vmax.f32 %v1075, 0.0
    %v1092 = vmax.f32 %v1076, 0.0
    %v1093 = vmax.f32 %v1077, 0.0
    %v1094 = vmax.f32 %v1078, 0.0
    %v1095 = vmax.f32 %v1079, 0.0
    %v1096 = vmax.f32 %v1080, 0.0
    %v1097 = vmax.f32 %v1081, 0.0
    %v1098 = vmax.f32 %v1082, 0.0
    %v1099 = vmin.f32 %v1083, 6.0
    %v1100 = vmin.f32 %v1084, 6.0
    %v1101 = vmin.f32 %v1085, 6.0
    %v1102 = vmin.f32 %v1086, 6.0
    %v1103 = vmin.f32 %v1087, 6.0
    %v1104 = vmin.f32 %v1088, 6.0
    %v1105 = vmin.f32 %v1089, 6.0
    %v1106 = vmin.f32 %v1090, 6.0
    %v1107 = vmin.f32 %v1091, 6.0
    %v1108 = vmin.f32 %v1092, 6.0
    %v1109 = vmin.f32 %v1093, 6.0
    %v1110 = vmin.f32 %v1094, 6.0
    %v1111 = vmin.f32 %v1095, 6.0
    %v1112 = vmin.f32 %v1096, 6.0
    %v1113 = vmin.f32 %v1097, 6.0
    %v1114 = vmin.f32 %v1098, 6.0
    %v1115 = vmul.f32 %v1005, %v1099
    %v1116 = vmul.f32 %v1008, %v1100
    %v1117 = vmul.f32 %v1013, %v1101
    %v1118 = vmul.f32 %v1016, %v1102
    %v1119 = vmul.f32 %v1021, %v1103
    %v1120 = vmul.f32 %v1024, %v1104
    %v1121 = vmul.f32 %v1029, %v1105
    %v1122 = vmul.f32 %v1032, %v1106
    %v1123 = vmul.f32 %v1037, %v1107
    %v1124 = vmul.f32 %v1040, %v1108
    %v1125 = vmul.f32 %v1045, %v1109
    %v1126 = vmul.f32 %v1048, %v1110
    %v1127 = vmul.f32 %v1053, %v1111
    %v1128 = vmul.f32 %v1056, %v1112
    %v1129 = vmul.f32 %v1061, %v1113
    %v1130 = vmul.f32 %v1064, %v1114
    %v1131 = vmul.f32 %v1115, 0.16666667
    %v1132 = vmul.f32 %v1116, 0.16666667
    %v1133 = vmul.f32 %v1117, 0.16666667
    %v1134 = vmul.f32 %v1118, 0.16666667
    %v1135 = vmul.f32 %v1119, 0.16666667
    %v1136 = vmul.f32 %v1120, 0.16666667
    %v1137 = vmul.f32 %v1121, 0.16666667
    %v1138 = vmul.f32 %v1122, 0.16666667
    %v1139 = vmul.f32 %v1123, 0.16666667
    %v1140 = vmul.f32 %v1124, 0.16666667
    %v1141 = vmul.f32 %v1125, 0.16666667
    %v1142 = vmul.f32 %v1126, 0.16666667
    %v1143 = vmul.f32 %v1127, 0.16666667
    %v1144 = vmul.f32 %v1128, 0.16666667
    %v1145 = vmul.f32 %v1129, 0.16666667
    %v1146 = vmul.f32 %v1130, 0.16666667
    %v1147 = vpack.c.bf16 %v1132, %v1131
    %v1148 = vpack.c.bf16 %v1134, %v1133
    %v1149 = vpack.c.bf16 %v1136, %v1135
    %v1150 = vpack.c.bf16 %v1138, %v1137
    %v1151 = vpack.c.bf16 %v1140, %v1139
    %v1152 = vpack.c.bf16 %v1142, %v1141
    %v1153 = vpack.c.bf16 %v1144, %v1143
    %v1154 = vpack.c.bf16 %v1146, %v1145
    %v1155 = vld [vmem:[%s7] sm:$0xf]
    %v1156 = vld [vmem:[%s7 + $0x4] sm:$0xf]
    %v1159 = vunpack.c.l.b16 %v1155
    %v1160 = vunpack.c.l.b16 %v1156
    %v1161 = vpack.c.b16 %v1160, %v1159
    %vm1163 = vcmask 130048
    %v1165 = vsel %vm1163, %v1147, 0
    %v1168 = vsel %vm1163, %v1148, 0
    %v1171 = vsel %vm1163, %v1149, 0
    %v1174 = vsel %vm1163, %v1150, 0
    %v1177 = vsel %vm1163, %v1151, 0
    %v1180 = vsel %vm1163, %v1152, 0
    %v1183 = vsel %vm1163, %v1153, 0
    %v1186 = vsel %vm1163, %v1154, 0
    %1188 = vmatprep.subr.bf16.mxu0 0
    %1189 = vmatpush1.bf16.msra.mxu0 %v1161
    %1190 = vmatprep.subr.bf16.mxu0 0
    %1191 = vmatpush1.bf16.msra.mxu0 0
    %1192 = vmatprep.subr.bf16.mxu0 0
    %1193 = vmatpush1.bf16.msra.mxu0 0
    %1194 = vmatprep.subr.bf16.mxu0 0
    %1195 = vmatpush1.bf16.msra.mxu0 0
    %1196 = vmatprep.subr.bf16.mxu0 0
    %1197 = vmatpush1.bf16.msra.mxu0 0
    %1198 = vmatprep.subr.bf16.mxu0 0
    %1199 = vmatpush1.bf16.msra.mxu0 0
    %1200 = vmatprep.subr.bf16.mxu0 0
    %1201 = vmatpush1.bf16.msra.mxu0 0
    %1202 = vmatprep.subr.bf16.mxu0 0
    %1203 = vmatpush1.bf16.msra.mxu0 0
    %1204 = vmatprep.subr.bf16.mxu0 0
    %1205 = vmatpush1.bf16.msra.mxu0 0
    %1206 = vmatprep.subr.bf16.mxu0 0
    %1207 = vmatpush1.bf16.msra.mxu0 0
    %1208 = vmatprep.subr.bf16.mxu0 0
    %1209 = vmatpush1.bf16.msra.mxu0 0
    %1210 = vmatprep.subr.bf16.mxu0 0
    %1211 = vmatpush1.bf16.msra.mxu0 0
    %1212 = vmatprep.subr.bf16.mxu0 0
    %1213 = vmatpush1.bf16.msra.mxu0 0
    %1214 = vmatprep.subr.bf16.mxu0 0
    %1215 = vmatpush1.bf16.msra.mxu0 0
    %1216 = vmatprep.subr.bf16.mxu0 0
    %1217 = vmatpush1.bf16.msra.mxu0 0
    %1218 = vmatprep.subr.bf16.mxu0 0
    %1219 = vmatpush1.bf16.msra.mxu0 0
    %1220 = vmatprep.mubr.bf16.mxu0 0
    %1221 = vmatmul.mubr.bf16.gmra.mrb[0].mxu0 %v1165
    %v1222 = vpop.f32.mrb[0].mxu0
    %v1223 = vadd.f32 0.0, %v1222
    %v1224 = vpop.f32.mrb[0].mxu0
    %v1225 = vpop.f32.mrb[0].mxu0
    %v1226 = vadd.f32 0.0, %v1225
    %v1227 = vpop.f32.mrb[0].mxu0
    %1228 = vmatprep.mubr.bf16.mxu0 0
    %1229 = vmatmul.mubr.bf16.gmra.mrb[0].mxu0 %v1168
    %v1230 = vpop.f32.mrb[0].mxu0
    %v1231 = vadd.f32 0.0, %v1230
    %v1232 = vpop.f32.mrb[0].mxu0
    %v1233 = vpop.f32.mrb[0].mxu0
    %v1234 = vadd.f32 0.0, %v1233
    %v1235 = vpop.f32.mrb[0].mxu0
    %1236 = vmatprep.mubr.bf16.mxu0 0
    %1237 = vmatmul.mubr.bf16.gmra.mrb[0].mxu0 %v1171
    %v1238 = vpop.f32.mrb[0].mxu0
    %v1239 = vadd.f32 0.0, %v1238
    %v1240 = vpop.f32.mrb[0].mxu0
    %v1241 = vpop.f32.mrb[0].mxu0
    %v1242 = vadd.f32 0.0, %v1241
    %v1243 = vpop.f32.mrb[0].mxu0
    %1244 = vmatprep.mubr.bf16.mxu0 0
    %1245 = vmatmul.mubr.bf16.gmra.mrb[0].mxu0 %v1174
    %v1246 = vpop.f32.mrb[0].mxu0
    %v1247 = vadd.f32 0.0, %v1246
    %v1248 = vpop.f32.mrb[0].mxu0
    %v1249 = vpop.f32.mrb[0].mxu0
    %v1250 = vadd.f32 0.0, %v1249
    %v1251 = vpop.f32.mrb[0].mxu0
    %1252 = vmatprep.mubr.bf16.mxu0 0
    %1253 = vmatmul.mubr.bf16.gmra.mrb[0].mxu0 %v1177
    %v1254 = vpop.f32.mrb[0].mxu0
    %v1255 = vadd.f32 0.0, %v1254
    %v1256 = vpop.f32.mrb[0].mxu0
    %v1257 = vpop.f32.mrb[0].mxu0
    %v1258 = vadd.f32 0.0, %v1257
    %v1259 = vpop.f32.mrb[0].mxu0
    %1260 = vmatprep.mubr.bf16.mxu0 0
    %1261 = vmatmul.mubr.bf16.gmra.mrb[0].mxu0 %v1180
    %v1262 = vpop.f32.mrb[0].mxu0
    %v1263 = vadd.f32 0.0, %v1262
    %v1264 = vpop.f32.mrb[0].mxu0
    %v1265 = vpop.f32.mrb[0].mxu0
    %v1266 = vadd.f32 0.0, %v1265
    %v1267 = vpop.f32.mrb[0].mxu0
    %1268 = vmatprep.mubr.bf16.mxu0 0
    %1269 = vmatmul.mubr.bf16.gmra.mrb[0].mxu0 %v1183
    %v1270 = vpop.f32.mrb[0].mxu0
    %v1271 = vadd.f32 0.0, %v1270
    %v1272 = vpop.f32.mrb[0].mxu0
    %v1273 = vpop.f32.mrb[0].mxu0
    %v1274 = vadd.f32 0.0, %v1273
    %v1275 = vpop.f32.mrb[0].mxu0
    %1276 = vmatprep.mubr.bf16.mxu0 0
    %1277 = vmatmul.mubr.bf16.gmra.mrb[0].mxu0 %v1186
    %v1278 = vpop.f32.mrb[0].mxu0
    %v1279 = vadd.f32 0.0, %v1278
    %v1280 = vpop.f32.mrb[0].mxu0
    %v1281 = vpop.f32.mrb[0].mxu0
    %v1282 = vadd.f32 0.0, %v1281
    %v1283 = vpop.f32.mrb[0].mxu0
    %1284 = vdwg.mxu0
    %v1285 = vadd.f32 %v215, %v1223
    %v1286 = vadd.f32 %v216, %v1226
    %v1287 = vadd.f32 %v217, %v1231
    %v1288 = vadd.f32 %v218, %v1234
    %v1289 = vadd.f32 %v219, %v1239
    %v1290 = vadd.f32 %v220, %v1242
    %v1291 = vadd.f32 %v221, %v1247
    %v1292 = vadd.f32 %v222, %v1250
    %v1293 = vadd.f32 %v223, %v1255
    %v1294 = vadd.f32 %v224, %v1258
    %v1295 = vadd.f32 %v225, %v1263
    %v1296 = vadd.f32 %v226, %v1266
    %v1297 = vadd.f32 %v227, %v1271
    %v1298 = vadd.f32 %v228, %v1274
    %v1299 = vadd.f32 %v229, %v1279
    %v1300 = vadd.f32 %v230, %v1282
    %s1301 = scalar_lea.vmem %s1, 16
    %v1302 = vld [vmem:[%s1301] sm:$0xf]
    %v1303 = vld [vmem:[%s1301 + $0x4] sm:$0xf]
    %v1304 = vld [vmem:[%s1301 + $0x8] sm:$0xf]
    %v1305 = vld [vmem:[%s1301 + $0xc] sm:$0xf]
    %s1306 = scalar_lea.vmem [#allocation2], 1
    %v1307 = vld [vmem:[%s1306] sm:$0x1]
    %v1309 = vlaneseq
    %v1310 = vshrl.u32 %v1309, 7
    %v1311 = vsub.s32 0, %v1310
    %v1312 = vrot.slane %v1307, %v1311
    %v1318 = vunpack.c.l.b16 %v1302
    %v1319 = vunpack.c.l.b16 %v1303
    %v1320 = vunpack.c.l.b16 %v1304
    %v1321 = vunpack.c.l.b16 %v1305
    %v1322 = vpack.c.b16 %v1319, %v1318
    %v1323 = vpack.c.b16 %v1321, %v1320
    %1326 = vmatprep.subr.bf16.mxu0 0
    %1327 = vmatpush1.bf16.msra.mxu0 %v1322
    %1328 = vmatprep.subr.bf16.mxu0 0
    %1329 = vmatpush1.bf16.msra.mxu0 %v1323
    %1330 = vmatprep.subr.bf16.mxu0 0
    %1331 = vmatpush1.bf16.msra.mxu0 0
    %1332 = vmatprep.subr.bf16.mxu0 0
    %1333 = vmatpush1.bf16.msra.mxu0 0
    %1334 = vmatprep.subr.bf16.mxu0 0
    %1335 = vmatpush1.bf16.msra.mxu0 0
    %1336 = vmatprep.subr.bf16.mxu0 0
    %1337 = vmatpush1.bf16.msra.mxu0 0
    %1338 = vmatprep.subr.bf16.mxu0 0
    %1339 = vmatpush1.bf16.msra.mxu0 0
    %1340 = vmatprep.subr.bf16.mxu0 0
    %1341 = vmatpush1.bf16.msra.mxu0 0
    %1342 = vmatprep.subr.bf16.mxu0 0
    %1343 = vmatpush1.bf16.msra.mxu0 0
    %1344 = vmatprep.subr.bf16.mxu0 0
    %1345 = vmatpush1.bf16.msra.mxu0 0
    %1346 = vmatprep.subr.bf16.mxu0 0
    %1347 = vmatpush1.bf16.msra.mxu0 0
    %1348 = vmatprep.subr.bf16.mxu0 0
    %1349 = vmatpush1.bf16.msra.mxu0 0
    %1350 = vmatprep.subr.bf16.mxu0 0
    %1351 = vmatpush1.bf16.msra.mxu0 0
    %1352 = vmatprep.subr.bf16.mxu0 0
    %1353 = vmatpush1.bf16.msra.mxu0 0
    %1354 = vmatprep.subr.bf16.mxu0 0
    %1355 = vmatpush1.bf16.msra.mxu0 0
    %1356 = vmatprep.subr.bf16.mxu0 0
    %1357 = vmatpush1.bf16.msra.mxu0 0
    %1358 = vmatprep.mubr.bf16.mxu0 0
    %1359 = vmatmul.mubr.bf16.gmra.mrb[0].mxu0 %v256
    %v1360 = vpop.f32.mrb[0].mxu0
    %v1361 = vadd.f32 %v1312, %v1360
    %v1362 = vpop.f32.mrb[0].mxu0
    %v1363 = vpop.f32.mrb[0].mxu0
    %v1364 = vadd.f32 %v1312, %v1363
    %v1365 = vpop.f32.mrb[0].mxu0
    %1366 = vmatprep.mubr.bf16.mxu0 0
    %1367 = vmatmul.mubr.bf16.gmra.mrb[0].mxu0 %v259
    %v1368 = vpop.f32.mrb[0].mxu0
    %v1369 = vadd.f32 %v1312, %v1368
    %v1370 = vpop.f32.mrb[0].mxu0
    %v1371 = vpop.f32.mrb[0].mxu0
    %v1372 = vadd.f32 %v1312, %v1371
    %v1373 = vpop.f32.mrb[0].mxu0
    %1374 = vmatprep.mubr.bf16.mxu0 0
    %1375 = vmatmul.mubr.bf16.gmra.mrb[0].mxu0 %v262
    %v1376 = vpop.f32.mrb[0].mxu0
    %v1377 = vadd.f32 %v1312, %v1376
    %v1378 = vpop.f32.mrb[0].mxu0
    %v1379 = vpop.f32.mrb[0].mxu0
    %v1380 = vadd.f32 %v1312, %v1379
    %v1381 = vpop.f32.mrb[0].mxu0
    %1382 = vmatprep.mubr.bf16.mxu0 0
    %1383 = vmatmul.mubr.bf16.gmra.mrb[0].mxu0 %v265
    %v1384 = vpop.f32.mrb[0].mxu0
    %v1385 = vadd.f32 %v1312, %v1384
    %v1386 = vpop.f32.mrb[0].mxu0
    %v1387 = vpop.f32.mrb[0].mxu0
    %v1388 = vadd.f32 %v1312, %v1387
    %v1389 = vpop.f32.mrb[0].mxu0
    %1390 = vmatprep.mubr.bf16.mxu0 0
    %1391 = vmatmul.mubr.bf16.gmra.mrb[0].mxu0 %v268
    %v1392 = vpop.f32.mrb[0].mxu0
    %v1393 = vadd.f32 %v1312, %v1392
    %v1394 = vpop.f32.mrb[0].mxu0
    %v1395 = vpop.f32.mrb[0].mxu0
    %v1396 = vadd.f32 %v1312, %v1395
    %v1397 = vpop.f32.mrb[0].mxu0
    %1398 = vmatprep.mubr.bf16.mxu0 0
    %1399 = vmatmul.mubr.bf16.gmra.mrb[0].mxu0 %v271
    %v1400 = vpop.f32.mrb[0].mxu0
    %v1401 = vadd.f32 %v1312, %v1400
    %v1402 = vpop.f32.mrb[0].mxu0
    %v1403 = vpop.f32.mrb[0].mxu0
    %v1404 = vadd.f32 %v1312, %v1403
    %v1405 = vpop.f32.mrb[0].mxu0
    %1406 = vmatprep.mubr.bf16.mxu0 0
    %1407 = vmatmul.mubr.bf16.gmra.mrb[0].mxu0 %v274
    %v1408 = vpop.f32.mrb[0].mxu0
    %v1409 = vadd.f32 %v1312, %v1408
    %v1410 = vpop.f32.mrb[0].mxu0
    %v1411 = vpop.f32.mrb[0].mxu0
    %v1412 = vadd.f32 %v1312, %v1411
    %v1413 = vpop.f32.mrb[0].mxu0
    %1414 = vmatprep.mubr.bf16.mxu0 0
    %1415 = vmatmul.mubr.bf16.gmra.mrb[0].mxu0 %v277
    %v1416 = vpop.f32.mrb[0].mxu0
    %v1417 = vadd.f32 %v1312, %v1416
    %v1418 = vpop.f32.mrb[0].mxu0
    %v1419 = vpop.f32.mrb[0].mxu0
    %v1420 = vadd.f32 %v1312, %v1419
    %v1421 = vpop.f32.mrb[0].mxu0
    %1422 = vdwg.mxu0
    %v1423 = vpack.c.bf16 %v1364, %v1361
    %v1424 = vpack.c.bf16 %v1372, %v1369
    %v1425 = vpack.c.bf16 %v1380, %v1377
    %v1426 = vpack.c.bf16 %v1388, %v1385
    %v1427 = vpack.c.bf16 %v1396, %v1393
    %v1428 = vpack.c.bf16 %v1404, %v1401
    %v1429 = vpack.c.bf16 %v1412, %v1409
    %v1430 = vpack.c.bf16 %v1420, %v1417
    %s1431 = scalar_lea.vmem %s2, 16
    %v1432 = vld [vmem:[%s1431] sm:$0xf]
    %v1433 = vld [vmem:[%s1431 + $0x4] sm:$0xf]
    %v1434 = vld [vmem:[%s1431 + $0x8] sm:$0xf]
    %v1435 = vld [vmem:[%s1431 + $0xc] sm:$0xf]
    %s1436 = scalar_lea.vmem [#allocation5], 1
    %v1437 = vld [vmem:[%s1436] sm:$0x1]
    %v1439 = vlaneseq
    %v1440 = vshrl.u32 %v1439, 7
    %v1441 = vsub.s32 0, %v1440
    %v1442 = vrot.slane %v1437, %v1441
    %v1448 = vunpack.c.l.b16 %v1432
    %v1449 = vunpack.c.l.b16 %v1433
    %v1450 = vunpack.c.l.b16 %v1434
    %v1451 = vunpack.c.l.b16 %v1435
    %v1452 = vpack.c.b16 %v1449, %v1448
    %v1453 = vpack.c.b16 %v1451, %v1450
    %1456 = vmatprep.subr.bf16.mxu0 0
    %1457 = vmatpush1.bf16.msra.mxu0 %v1452
    %1458 = vmatprep.subr.bf16.mxu0 0
    %1459 = vmatpush1.bf16.msra.mxu0 %v1453
    %1460 = vmatprep.subr.bf16.mxu0 0
    %1461 = vmatpush1.bf16.msra.mxu0 0
    %1462 = vmatprep.subr.bf16.mxu0 0
    %1463 = vmatpush1.bf16.msra.mxu0 0
    %1464 = vmatprep.subr.bf16.mxu0 0
    %1465 = vmatpush1.bf16.msra.mxu0 0
    %1466 = vmatprep.subr.bf16.mxu0 0
    %1467 = vmatpush1.bf16.msra.mxu0 0
    %1468 = vmatprep.subr.bf16.mxu0 0
    %1469 = vmatpush1.bf16.msra.mxu0 0
    %1470 = vmatprep.subr.bf16.mxu0 0
    %1471 = vmatpush1.bf16.msra.mxu0 0
    %1472 = vmatprep.subr.bf16.mxu0 0
    %1473 = vmatpush1.bf16.msra.mxu0 0
    %1474 = vmatprep.subr.bf16.mxu0 0
    %1475 = vmatpush1.bf16.msra.mxu0 0
    %1476 = vmatprep.subr.bf16.mxu0 0
    %1477 = vmatpush1.bf16.msra.mxu0 0
    %1478 = vmatprep.subr.bf16.mxu0 0
    %1479 = vmatpush1.bf16.msra.mxu0 0
    %1480 = vmatprep.subr.bf16.mxu0 0
    %1481 = vmatpush1.bf16.msra.mxu0 0
    %1482 = vmatprep.subr.bf16.mxu0 0
    %1483 = vmatpush1.bf16.msra.mxu0 0
    %1484 = vmatprep.subr.bf16.mxu0 0
    %1485 = vmatpush1.bf16.msra.mxu0 0
    %1486 = vmatprep.subr.bf16.mxu0 0
    %1487 = vmatpush1.bf16.msra.mxu0 0
    %1488 = vmatprep.mubr.bf16.mxu0 0
    %1489 = vmatmul.mubr.bf16.gmra.mrb[0].mxu0 %v256
    %v1490 = vpop.f32.mrb[0].mxu0
    %v1491 = vadd.f32 %v1442, %v1490
    %v1492 = vpop.f32.mrb[0].mxu0
    %v1493 = vpop.f32.mrb[0].mxu0
    %v1494 = vadd.f32 %v1442, %v1493
    %v1495 = vpop.f32.mrb[0].mxu0
    %1496 = vmatprep.mubr.bf16.mxu0 0
    %1497 = vmatmul.mubr.bf16.gmra.mrb[0].mxu0 %v259
    %v1498 = vpop.f32.mrb[0].mxu0
    %v1499 = vadd.f32 %v1442, %v1498
    %v1500 = vpop.f32.mrb[0].mxu0
    %v1501 = vpop.f32.mrb[0].mxu0
    %v1502 = vadd.f32 %v1442, %v1501
    %v1503 = vpop.f32.mrb[0].mxu0
    %1504 = vmatprep.mubr.bf16.mxu0 0
    %1505 = vmatmul.mubr.bf16.gmra.mrb[0].mxu0 %v262
    %v1506 = vpop.f32.mrb[0].mxu0
    %v1507 = vadd.f32 %v1442, %v1506
    %v1508 = vpop.f32.mrb[0].mxu0
    %v1509 = vpop.f32.mrb[0].mxu0
    %v1510 = vadd.f32 %v1442, %v1509
    %v1511 = vpop.f32.mrb[0].mxu0
    %1512 = vmatprep.mubr.bf16.mxu0 0
    %1513 = vmatmul.mubr.bf16.gmra.mrb[0].mxu0 %v265
    %v1514 = vpop.f32.mrb[0].mxu0
    %v1515 = vadd.f32 %v1442, %v1514
    %v1516 = vpop.f32.mrb[0].mxu0
    %v1517 = vpop.f32.mrb[0].mxu0
    %v1518 = vadd.f32 %v1442, %v1517
    %v1519 = vpop.f32.mrb[0].mxu0
    %1520 = vmatprep.mubr.bf16.mxu0 0
    %1521 = vmatmul.mubr.bf16.gmra.mrb[0].mxu0 %v268
    %v1522 = vpop.f32.mrb[0].mxu0
    %v1523 = vadd.f32 %v1442, %v1522
    %v1524 = vpop.f32.mrb[0].mxu0
    %v1525 = vpop.f32.mrb[0].mxu0
    %v1526 = vadd.f32 %v1442, %v1525
    %v1527 = vpop.f32.mrb[0].mxu0
    %1528 = vmatprep.mubr.bf16.mxu0 0
    %1529 = vmatmul.mubr.bf16.gmra.mrb[0].mxu0 %v271
    %v1530 = vpop.f32.mrb[0].mxu0
    %v1531 = vadd.f32 %v1442, %v1530
    %v1532 = vpop.f32.mrb[0].mxu0
    %v1533 = vpop.f32.mrb[0].mxu0
    %v1534 = vadd.f32 %v1442, %v1533
    %v1535 = vpop.f32.mrb[0].mxu0
    %1536 = vmatprep.mubr.bf16.mxu0 0
    %1537 = vmatmul.mubr.bf16.gmra.mrb[0].mxu0 %v274
    %v1538 = vpop.f32.mrb[0].mxu0
    %v1539 = vadd.f32 %v1442, %v1538
    %v1540 = vpop.f32.mrb[0].mxu0
    %v1541 = vpop.f32.mrb[0].mxu0
    %v1542 = vadd.f32 %v1442, %v1541
    %v1543 = vpop.f32.mrb[0].mxu0
    %1544 = vmatprep.mubr.bf16.mxu0 0
    %1545 = vmatmul.mubr.bf16.gmra.mrb[0].mxu0 %v277
    %v1546 = vpop.f32.mrb[0].mxu0
    %v1547 = vadd.f32 %v1442, %v1546
    %v1548 = vpop.f32.mrb[0].mxu0
    %v1549 = vpop.f32.mrb[0].mxu0
    %v1550 = vadd.f32 %v1442, %v1549
    %v1551 = vpop.f32.mrb[0].mxu0
    %1552 = vdwg.mxu0
    %v1553 = vpack.c.bf16 %v1494, %v1491
    %v1554 = vpack.c.bf16 %v1502, %v1499
    %v1555 = vpack.c.bf16 %v1510, %v1507
    %v1556 = vpack.c.bf16 %v1518, %v1515
    %v1557 = vpack.c.bf16 %v1526, %v1523
    %v1558 = vpack.c.bf16 %v1534, %v1531
    %v1559 = vpack.c.bf16 %v1542, %v1539
    %v1560 = vpack.c.bf16 %v1550, %v1547
    %s1561 = scalar_lea.vmem %s3, 16
    %v1562 = vld [vmem:[%s1561] sm:$0xf]
    %v1563 = vld [vmem:[%s1561 + $0x4] sm:$0xf]
    %v1564 = vld [vmem:[%s1561 + $0x8] sm:$0xf]
    %v1565 = vld [vmem:[%s1561 + $0xc] sm:$0xf]
    %s1566 = scalar_lea.vmem [#allocation7], 1
    %v1567 = vld [vmem:[%s1566] sm:$0x1]
    %v1569 = vlaneseq
    %v1570 = vshrl.u32 %v1569, 7
    %v1571 = vsub.s32 0, %v1570
    %v1572 = vrot.slane %v1567, %v1571
    %v1578 = vunpack.c.l.b16 %v1562
    %v1579 = vunpack.c.l.b16 %v1563
    %v1580 = vunpack.c.l.b16 %v1564
    %v1581 = vunpack.c.l.b16 %v1565
    %v1582 = vpack.c.b16 %v1579, %v1578
    %v1583 = vpack.c.b16 %v1581, %v1580
    %1586 = vmatprep.subr.bf16.mxu0 0
    %1587 = vmatpush1.bf16.msra.mxu0 %v1582
    %1588 = vmatprep.subr.bf16.mxu0 0
    %1589 = vmatpush1.bf16.msra.mxu0 %v1583
    %1590 = vmatprep.subr.bf16.mxu0 0
    %1591 = vmatpush1.bf16.msra.mxu0 0
    %1592 = vmatprep.subr.bf16.mxu0 0
    %1593 = vmatpush1.bf16.msra.mxu0 0
    %1594 = vmatprep.subr.bf16.mxu0 0
    %1595 = vmatpush1.bf16.msra.mxu0 0
    %1596 = vmatprep.subr.bf16.mxu0 0
    %1597 = vmatpush1.bf16.msra.mxu0 0
    %1598 = vmatprep.subr.bf16.mxu0 0
    %1599 = vmatpush1.bf16.msra.mxu0 0
    %1600 = vmatprep.subr.bf16.mxu0 0
    %1601 = vmatpush1.bf16.msra.mxu0 0
    %1602 = vmatprep.subr.bf16.mxu0 0
    %1603 = vmatpush1.bf16.msra.mxu0 0
    %1604 = vmatprep.subr.bf16.mxu0 0
    %1605 = vmatpush1.bf16.msra.mxu0 0
    %1606 = vmatprep.subr.bf16.mxu0 0
    %1607 = vmatpush1.bf16.msra.mxu0 0
    %1608 = vmatprep.subr.bf16.mxu0 0
    %1609 = vmatpush1.bf16.msra.mxu0 0
    %1610 = vmatprep.subr.bf16.mxu0 0
    %1611 = vmatpush1.bf16.msra.mxu0 0
    %1612 = vmatprep.subr.bf16.mxu0 0
    %1613 = vmatpush1.bf16.msra.mxu0 0
    %1614 = vmatprep.subr.bf16.mxu0 0
    %1615 = vmatpush1.bf16.msra.mxu0 0
    %1616 = vmatprep.subr.bf16.mxu0 0
    %1617 = vmatpush1.bf16.msra.mxu0 0
    %1618 = vmatprep.mubr.bf16.mxu0 0
    %1619 = vmatmul.mubr.bf16.gmra.mrb[0].mxu0 %v256
    %v1620 = vpop.f32.mrb[0].mxu0
    %v1621 = vadd.f32 %v1572, %v1620
    %v1622 = vpop.f32.mrb[0].mxu0
    %v1623 = vpop.f32.mrb[0].mxu0
    %v1624 = vadd.f32 %v1572, %v1623
    %v1625 = vpop.f32.mrb[0].mxu0
    %1626 = vmatprep.mubr.bf16.mxu0 0
    %1627 = vmatmul.mubr.bf16.gmra.mrb[0].mxu0 %v259
    %v1628 = vpop.f32.mrb[0].mxu0
    %v1629 = vadd.f32 %v1572, %v1628
    %v1630 = vpop.f32.mrb[0].mxu0
    %v1631 = vpop.f32.mrb[0].mxu0
    %v1632 = vadd.f32 %v1572, %v1631
    %v1633 = vpop.f32.mrb[0].mxu0
    %1634 = vmatprep.mubr.bf16.mxu0 0
    %1635 = vmatmul.mubr.bf16.gmra.mrb[0].mxu0 %v262
    %v1636 = vpop.f32.mrb[0].mxu0
    %v1637 = vadd.f32 %v1572, %v1636
    %v1638 = vpop.f32.mrb[0].mxu0
    %v1639 = vpop.f32.mrb[0].mxu0
    %v1640 = vadd.f32 %v1572, %v1639
    %v1641 = vpop.f32.mrb[0].mxu0
    %1642 = vmatprep.mubr.bf16.mxu0 0
    %1643 = vmatmul.mubr.bf16.gmra.mrb[0].mxu0 %v265
    %v1644 = vpop.f32.mrb[0].mxu0
    %v1645 = vadd.f32 %v1572, %v1644
    %v1646 = vpop.f32.mrb[0].mxu0
    %v1647 = vpop.f32.mrb[0].mxu0
    %v1648 = vadd.f32 %v1572, %v1647
    %v1649 = vpop.f32.mrb[0].mxu0
    %1650 = vmatprep.mubr.bf16.mxu0 0
    %1651 = vmatmul.mubr.bf16.gmra.mrb[0].mxu0 %v268
    %v1652 = vpop.f32.mrb[0].mxu0
    %v1653 = vadd.f32 %v1572, %v1652
    %v1654 = vpop.f32.mrb[0].mxu0
    %v1655 = vpop.f32.mrb[0].mxu0
    %v1656 = vadd.f32 %v1572, %v1655
    %v1657 = vpop.f32.mrb[0].mxu0
    %1658 = vmatprep.mubr.bf16.mxu0 0
    %1659 = vmatmul.mubr.bf16.gmra.mrb[0].mxu0 %v271
    %v1660 = vpop.f32.mrb[0].mxu0
    %v1661 = vadd.f32 %v1572, %v1660
    %v1662 = vpop.f32.mrb[0].mxu0
    %v1663 = vpop.f32.mrb[0].mxu0
    %v1664 = vadd.f32 %v1572, %v1663
    %v1665 = vpop.f32.mrb[0].mxu0
    %1666 = vmatprep.mubr.bf16.mxu0 0
    %1667 = vmatmul.mubr.bf16.gmra.mrb[0].mxu0 %v274
    %v1668 = vpop.f32.mrb[0].mxu0
    %v1669 = vadd.f32 %v1572, %v1668
    %v1670 = vpop.f32.mrb[0].mxu0
    %v1671 = vpop.f32.mrb[0].mxu0
    %v1672 = vadd.f32 %v1572, %v1671
    %v1673 = vpop.f32.mrb[0].mxu0
    %1674 = vmatprep.mubr.bf16.mxu0 0
    %1675 = vmatmul.mubr.bf16.gmra.mrb[0].mxu0 %v277
    %v1676 = vpop.f32.mrb[0].mxu0
    %v1677 = vadd.f32 %v1572, %v1676
    %v1678 = vpop.f32.mrb[0].mxu0
    %v1679 = vpop.f32.mrb[0].mxu0
    %v1680 = vadd.f32 %v1572, %v1679
    %v1681 = vpop.f32.mrb[0].mxu0
    %1682 = vdwg.mxu0
    %v1683 = vpack.c.bf16 %v1624, %v1621
    %v1684 = vpack.c.bf16 %v1632, %v1629
    %v1685 = vpack.c.bf16 %v1640, %v1637
    %v1686 = vpack.c.bf16 %v1648, %v1645
    %v1687 = vpack.c.bf16 %v1656, %v1653
    %v1688 = vpack.c.bf16 %v1664, %v1661
    %v1689 = vpack.c.bf16 %v1672, %v1669
    %v1690 = vpack.c.bf16 %v1680, %v1677
    %s1691 = scalar_lea.vmem %s13, 64
    %v1692 = vld [vmem:[%s1691] sm:$0xf]
    %v1693 = vld [vmem:[%s1691 + $0x4] sm:$0xf]
    %v1694 = vld [vmem:[%s1691 + $0x8] sm:$0xf]
    %v1695 = vld [vmem:[%s1691 + $0xc] sm:$0xf]
    %v1696 = vld [vmem:[%s1691 + $0x10] sm:$0xf]
    %v1697 = vld [vmem:[%s1691 + $0x14] sm:$0xf]
    %v1698 = vld [vmem:[%s1691 + $0x18] sm:$0xf]
    %v1699 = vld [vmem:[%s1691 + $0x1c] sm:$0xf]
    %v1700 = vld [vmem:[%s1691 + $0x20] sm:$0xf]
    %v1701 = vld [vmem:[%s1691 + $0x24] sm:$0xf]
    %v1702 = vld [vmem:[%s1691 + $0x28] sm:$0xf]
    %v1703 = vld [vmem:[%s1691 + $0x2c] sm:$0xf]
    %v1704 = vld [vmem:[%s1691 + $0x30] sm:$0xf]
    %v1705 = vld [vmem:[%s1691 + $0x34] sm:$0xf]
    %v1706 = vld [vmem:[%s1691 + $0x38] sm:$0xf]
    %v1707 = vld [vmem:[%s1691 + $0x3c] sm:$0xf]
    %v1708 = vunpack.c.l.bf16 %v1692
    %v1709 = vunpack.c.l.bf16 %v1693
    %v1710 = vunpack.c.l.bf16 %v1694
    %v1711 = vunpack.c.l.bf16 %v1695
    %v1712 = vunpack.c.l.bf16 %v1696
    %v1713 = vunpack.c.l.bf16 %v1697
    %v1714 = vunpack.c.l.bf16 %v1698
    %v1715 = vunpack.c.l.bf16 %v1699
    %v1716 = vunpack.c.l.bf16 %v1700
    %v1717 = vunpack.c.l.bf16 %v1701
    %v1718 = vunpack.c.l.bf16 %v1702
    %v1719 = vunpack.c.l.bf16 %v1703
    %v1720 = vunpack.c.l.bf16 %v1704
    %v1721 = vunpack.c.l.bf16 %v1705
    %v1722 = vunpack.c.l.bf16 %v1706
    %v1723 = vunpack.c.l.bf16 %v1707
    %v1725 = vsel %vm672, %v1423, 0
    %v1728 = vsel %vm672, %v1424, 0
    %v1731 = vsel %vm672, %v1425, 0
    %v1734 = vsel %vm672, %v1426, 0
    %v1737 = vsel %vm672, %v1427, 0
    %v1740 = vsel %vm672, %v1428, 0
    %v1743 = vsel %vm672, %v1429, 0
    %v1746 = vsel %vm672, %v1430, 0
    %v1749 = vsel %vm672, %v1553, 0
    %v1752 = vsel %vm672, %v1554, 0
    %v1755 = vsel %vm672, %v1555, 0
    %v1758 = vsel %vm672, %v1556, 0
    %v1761 = vsel %vm672, %v1557, 0
    %v1764 = vsel %vm672, %v1558, 0
    %v1767 = vsel %vm672, %v1559, 0
    %v1770 = vsel %vm672, %v1560, 0
    %1772 = vmatprep.subr.bf16.mxu0 0
    %1773 = vmatpush1.bf16.xpose.msra.mxu0 %v1749
    %1774 = vmatprep.subr.bf16.mxu0 0
    %1775 = vmatpush1.bf16.xpose.msra.mxu0 %v1752
    %1776 = vmatprep.subr.bf16.mxu0 0
    %1777 = vmatpush1.bf16.xpose.msra.mxu0 %v1755
    %1778 = vmatprep.subr.bf16.mxu0 0
    %1779 = vmatpush1.bf16.xpose.msra.mxu0 %v1758
    %1780 = vmatprep.subr.bf16.mxu0 0
    %1781 = vmatpush1.bf16.xpose.msra.mxu0 %v1761
    %1782 = vmatprep.subr.bf16.mxu0 0
    %1783 = vmatpush1.bf16.xpose.msra.mxu0 %v1764
    %1784 = vmatprep.subr.bf16.mxu0 0
    %1785 = vmatpush1.bf16.xpose.msra.mxu0 %v1767
    %1786 = vmatprep.subr.bf16.mxu0 0
    %1787 = vmatpush1.bf16.xpose.msra.mxu0 %v1770
    %1788 = vmatprep.subr.bf16.mxu0 0
    %1789 = vmatpush1.bf16.xpose.msra.mxu0 0
    %1790 = vmatprep.subr.bf16.mxu0 0
    %1791 = vmatpush1.bf16.xpose.msra.mxu0 0
    %1792 = vmatprep.subr.bf16.mxu0 0
    %1793 = vmatpush1.bf16.xpose.msra.mxu0 0
    %1794 = vmatprep.subr.bf16.mxu0 0
    %1795 = vmatpush1.bf16.xpose.msra.mxu0 0
    %1796 = vmatprep.subr.bf16.mxu0 0
    %1797 = vmatpush1.bf16.xpose.msra.mxu0 0
    %1798 = vmatprep.subr.bf16.mxu0 0
    %1799 = vmatpush1.bf16.xpose.msra.mxu0 0
    %1800 = vmatprep.subr.bf16.mxu0 0
    %1801 = vmatpush1.bf16.xpose.msra.mxu0 0
    %1802 = vmatprep.subr.bf16.mxu0 0
    %1803 = vmatpush1.bf16.xpose.msra.mxu0 0
    %1804 = vmatprep.mubr.bf16.mxu0 0
    %1805 = vmatmul.mubr.bf16.gmra.mrb[0].mxu0 %v1725
    %v1806 = vpop.f32.mrb[0].mxu0
    %v1807 = vadd.f32 %v1708, %v1806
    %v1808 = vpop.f32.mrb[0].mxu0
    %v1809 = vpop.f32.mrb[0].mxu0
    %v1810 = vadd.f32 %v1709, %v1809
    %v1811 = vpop.f32.mrb[0].mxu0
    %1812 = vmatprep.mubr.bf16.mxu0 0
    %1813 = vmatmul.mubr.bf16.gmra.mrb[0].mxu0 %v1728
    %v1814 = vpop.f32.mrb[0].mxu0
    %v1815 = vadd.f32 %v1710, %v1814
    %v1816 = vpop.f32.mrb[0].mxu0
    %v1817 = vpop.f32.mrb[0].mxu0
    %v1818 = vadd.f32 %v1711, %v1817
    %v1819 = vpop.f32.mrb[0].mxu0
    %1820 = vmatprep.mubr.bf16.mxu0 0
    %1821 = vmatmul.mubr.bf16.gmra.mrb[0].mxu0 %v1731
    %v1822 = vpop.f32.mrb[0].mxu0
    %v1823 = vadd.f32 %v1712, %v1822
    %v1824 = vpop.f32.mrb[0].mxu0
    %v1825 = vpop.f32.mrb[0].mxu0
    %v1826 = vadd.f32 %v1713, %v1825
    %v1827 = vpop.f32.mrb[0].mxu0
    %1828 = vmatprep.mubr.bf16.mxu0 0
    %1829 = vmatmul.mubr.bf16.gmra.mrb[0].mxu0 %v1734
    %v1830 = vpop.f32.mrb[0].mxu0
    %v1831 = vadd.f32 %v1714, %v1830
    %v1832 = vpop.f32.mrb[0].mxu0
    %v1833 = vpop.f32.mrb[0].mxu0
    %v1834 = vadd.f32 %v1715, %v1833
    %v1835 = vpop.f32.mrb[0].mxu0
    %1836 = vmatprep.mubr.bf16.mxu0 0
    %1837 = vmatmul.mubr.bf16.gmra.mrb[0].mxu0 %v1737
    %v1838 = vpop.f32.mrb[0].mxu0
    %v1839 = vadd.f32 %v1716, %v1838
    %v1840 = vpop.f32.mrb[0].mxu0
    %v1841 = vpop.f32.mrb[0].mxu0
    %v1842 = vadd.f32 %v1717, %v1841
    %v1843 = vpop.f32.mrb[0].mxu0
    %1844 = vmatprep.mubr.bf16.mxu0 0
    %1845 = vmatmul.mubr.bf16.gmra.mrb[0].mxu0 %v1740
    %v1846 = vpop.f32.mrb[0].mxu0
    %v1847 = vadd.f32 %v1718, %v1846
    %v1848 = vpop.f32.mrb[0].mxu0
    %v1849 = vpop.f32.mrb[0].mxu0
    %v1850 = vadd.f32 %v1719, %v1849
    %v1851 = vpop.f32.mrb[0].mxu0
    %1852 = vmatprep.mubr.bf16.mxu0 0
    %1853 = vmatmul.mubr.bf16.gmra.mrb[0].mxu0 %v1743
    %v1854 = vpop.f32.mrb[0].mxu0
    %v1855 = vadd.f32 %v1720, %v1854
    %v1856 = vpop.f32.mrb[0].mxu0
    %v1857 = vpop.f32.mrb[0].mxu0
    %v1858 = vadd.f32 %v1721, %v1857
    %v1859 = vpop.f32.mrb[0].mxu0
    %1860 = vmatprep.mubr.bf16.mxu0 0
    %1861 = vmatmul.mubr.bf16.gmra.mrb[0].mxu0 %v1746
    %v1862 = vpop.f32.mrb[0].mxu0
    %v1863 = vadd.f32 %v1722, %v1862
    %v1864 = vpop.f32.mrb[0].mxu0
    %v1865 = vpop.f32.mrb[0].mxu0
    %v1866 = vadd.f32 %v1723, %v1865
    %v1867 = vpop.f32.mrb[0].mxu0
    %1868 = vdwg.mxu0
    %1869 = vmax.xlane.f32.xlu0 %v1807
    %v1870 = vpop.xlane.xlu0 %1869
    %1871 = vmax.xlane.f32.xlu0 %v1810
    %v1872 = vpop.xlane.xlu0 %1871
    %1873 = vmax.xlane.f32.xlu0 %v1815
    %v1874 = vpop.xlane.xlu0 %1873
    %1875 = vmax.xlane.f32.xlu0 %v1818
    %v1876 = vpop.xlane.xlu0 %1875
    %1877 = vmax.xlane.f32.xlu0 %v1823
    %v1878 = vpop.xlane.xlu0 %1877
    %1879 = vmax.xlane.f32.xlu0 %v1826
    %v1880 = vpop.xlane.xlu0 %1879
    %1881 = vmax.xlane.f32.xlu0 %v1831
    %v1882 = vpop.xlane.xlu0 %1881
    %1883 = vmax.xlane.f32.xlu0 %v1834
    %v1884 = vpop.xlane.xlu0 %1883
    %1885 = vmax.xlane.f32.xlu0 %v1839
    %v1886 = vpop.xlane.xlu0 %1885
    %1887 = vmax.xlane.f32.xlu0 %v1842
    %v1888 = vpop.xlane.xlu0 %1887
    %1889 = vmax.xlane.f32.xlu0 %v1847
    %v1890 = vpop.xlane.xlu0 %1889
    %1891 = vmax.xlane.f32.xlu0 %v1850
    %v1892 = vpop.xlane.xlu0 %1891
    %1893 = vmax.xlane.f32.xlu0 %v1855
    %v1894 = vpop.xlane.xlu0 %1893
    %1895 = vmax.xlane.f32.xlu0 %v1858
    %v1896 = vpop.xlane.xlu0 %1895
    %1897 = vmax.xlane.f32.xlu0 %v1863
    %v1898 = vpop.xlane.xlu0 %1897
    %1899 = vmax.xlane.f32.xlu0 %v1866
    %v1900 = vpop.xlane.xlu0 %1899
    %v1901 = vsub.f32 %v1807, %v1870
    %v1902 = vsub.f32 %v1810, %v1872
    %v1903 = vsub.f32 %v1815, %v1874
    %v1904 = vsub.f32 %v1818, %v1876
    %v1905 = vsub.f32 %v1823, %v1878
    %v1906 = vsub.f32 %v1826, %v1880
    %v1907 = vsub.f32 %v1831, %v1882
    %v1908 = vsub.f32 %v1834, %v1884
    %v1909 = vsub.f32 %v1839, %v1886
    %v1910 = vsub.f32 %v1842, %v1888
    %v1911 = vsub.f32 %v1847, %v1890
    %v1912 = vsub.f32 %v1850, %v1892
    %v1913 = vsub.f32 %v1855, %v1894
    %v1914 = vsub.f32 %v1858, %v1896
    %v1915 = vsub.f32 %v1863, %v1898
    %v1916 = vsub.f32 %v1866, %v1900
    %v1917 = vmul.f32 %v1901, 1.442695
    %v1918 = vpow.pop %v1917
    %v1919 = vmul.f32 %v1902, 1.442695
    %v1920 = vpow.pop %v1919
    %v1921 = vmul.f32 %v1903, 1.442695
    %v1922 = vpow.pop %v1921
    %v1923 = vmul.f32 %v1904, 1.442695
    %v1924 = vpow.pop %v1923
    %v1925 = vmul.f32 %v1905, 1.442695
    %v1926 = vpow.pop %v1925
    %v1927 = vmul.f32 %v1906, 1.442695
    %v1928 = vpow.pop %v1927
    %v1929 = vmul.f32 %v1907, 1.442695
    %v1930 = vpow.pop %v1929
    %v1931 = vmul.f32 %v1908, 1.442695
    %v1932 = vpow.pop %v1931
    %v1933 = vmul.f32 %v1909, 1.442695
    %v1934 = vpow.pop %v1933
    %v1935 = vmul.f32 %v1910, 1.442695
    %v1936 = vpow.pop %v1935
    %v1937 = vmul.f32 %v1911, 1.442695
    %v1938 = vpow.pop %v1937
    %v1939 = vmul.f32 %v1912, 1.442695
    %v1940 = vpow.pop %v1939
    %v1941 = vmul.f32 %v1913, 1.442695
    %v1942 = vpow.pop %v1941
    %v1943 = vmul.f32 %v1914, 1.442695
    %v1944 = vpow.pop %v1943
    %v1945 = vmul.f32 %v1915, 1.442695
    %v1946 = vpow.pop %v1945
    %v1947 = vmul.f32 %v1916, 1.442695
    %v1948 = vpow.pop %v1947
    %1949 = vadd.xlane.f32.xlu0 %v1918
    %v1950 = vpop.xlane.xlu0 %1949
    %1951 = vadd.xlane.f32.xlu0 %v1920
    %v1952 = vpop.xlane.xlu0 %1951
    %1953 = vadd.xlane.f32.xlu0 %v1922
    %v1954 = vpop.xlane.xlu0 %1953
    %1955 = vadd.xlane.f32.xlu0 %v1924
    %v1956 = vpop.xlane.xlu0 %1955
    %1957 = vadd.xlane.f32.xlu0 %v1926
    %v1958 = vpop.xlane.xlu0 %1957
    %1959 = vadd.xlane.f32.xlu0 %v1928
    %v1960 = vpop.xlane.xlu0 %1959
    %1961 = vadd.xlane.f32.xlu0 %v1930
    %v1962 = vpop.xlane.xlu0 %1961
    %1963 = vadd.xlane.f32.xlu0 %v1932
    %v1964 = vpop.xlane.xlu0 %1963
    %1965 = vadd.xlane.f32.xlu0 %v1934
    %v1966 = vpop.xlane.xlu0 %1965
    %1967 = vadd.xlane.f32.xlu0 %v1936
    %v1968 = vpop.xlane.xlu0 %1967
    %1969 = vadd.xlane.f32.xlu0 %v1938
    %v1970 = vpop.xlane.xlu0 %1969
    %1971 = vadd.xlane.f32.xlu0 %v1940
    %v1972 = vpop.xlane.xlu0 %1971
    %1973 = vadd.xlane.f32.xlu0 %v1942
    %v1974 = vpop.xlane.xlu0 %1973
    %1975 = vadd.xlane.f32.xlu0 %v1944
    %v1976 = vpop.xlane.xlu0 %1975
    %1977 = vadd.xlane.f32.xlu0 %v1946
    %v1978 = vpop.xlane.xlu0 %1977
    %1979 = vadd.xlane.f32.xlu0 %v1948
    %v1980 = vpop.xlane.xlu0 %1979
    %v1981 = vrcp.pop %v1950
    %v1982 = vrcp.pop %v1952
    %v1983 = vrcp.pop %v1954
    %v1984 = vrcp.pop %v1956
    %v1985 = vrcp.pop %v1958
    %v1986 = vrcp.pop %v1960
    %v1987 = vrcp.pop %v1962
    %v1988 = vrcp.pop %v1964
    %v1989 = vrcp.pop %v1966
    %v1990 = vrcp.pop %v1968
    %v1991 = vrcp.pop %v1970
    %v1992 = vrcp.pop %v1972
    %v1993 = vrcp.pop %v1974
    %v1994 = vrcp.pop %v1976
    %v1995 = vrcp.pop %v1978
    %v1996 = vrcp.pop %v1980
    %v1997 = vmul.f32 %v1918, %v1981
    %v1998 = vmul.f32 %v1920, %v1982
    %v1999 = vmul.f32 %v1922, %v1983
    %v2000 = vmul.f32 %v1924, %v1984
    %v2001 = vmul.f32 %v1926, %v1985
    %v2002 = vmul.f32 %v1928, %v1986
    %v2003 = vmul.f32 %v1930, %v1987
    %v2004 = vmul.f32 %v1932, %v1988
    %v2005 = vmul.f32 %v1934, %v1989
    %v2006 = vmul.f32 %v1936, %v1990
    %v2007 = vmul.f32 %v1938, %v1991
    %v2008 = vmul.f32 %v1940, %v1992
    %v2009 = vmul.f32 %v1942, %v1993
    %v2010 = vmul.f32 %v1944, %v1994
    %v2011 = vmul.f32 %v1946, %v1995
    %v2012 = vmul.f32 %v1948, %v1996
    %v2013 = vpack.c.bf16 %v1998, %v1997
    %v2014 = vpack.c.bf16 %v2000, %v1999
    %v2015 = vpack.c.bf16 %v2002, %v2001
    %v2016 = vpack.c.bf16 %v2004, %v2003
    %v2017 = vpack.c.bf16 %v2006, %v2005
    %v2018 = vpack.c.bf16 %v2008, %v2007
    %v2019 = vpack.c.bf16 %v2010, %v2009
    %v2020 = vpack.c.bf16 %v2012, %v2011
    %2021 = vmatprep.subr.bf16.mxu0 0
    %2022 = vmatpush1.bf16.msra.mxu0 %v1683
    %2023 = vmatprep.subr.bf16.mxu0 0
    %2024 = vmatpush1.bf16.msra.mxu0 %v1684
    %2025 = vmatprep.subr.bf16.mxu0 0
    %2026 = vmatpush1.bf16.msra.mxu0 %v1685
    %2027 = vmatprep.subr.bf16.mxu0 0
    %2028 = vmatpush1.bf16.msra.mxu0 %v1686
    %2029 = vmatprep.subr.bf16.mxu0 0
    %2030 = vmatpush1.bf16.msra.mxu0 %v1687
    %2031 = vmatprep.subr.bf16.mxu0 0
    %2032 = vmatpush1.bf16.msra.mxu0 %v1688
    %2033 = vmatprep.subr.bf16.mxu0 0
    %2034 = vmatpush1.bf16.msra.mxu0 %v1689
    %2035 = vmatprep.subr.bf16.mxu0 0
    %2036 = vmatpush1.bf16.msra.mxu0 %v1690
    %2037 = vmatprep.subr.bf16.mxu0 0
    %2038 = vmatpush1.bf16.msra.mxu0 0
    %2039 = vmatprep.subr.bf16.mxu0 0
    %2040 = vmatpush1.bf16.msra.mxu0 0
    %2041 = vmatprep.subr.bf16.mxu0 0
    %2042 = vmatpush1.bf16.msra.mxu0 0
    %2043 = vmatprep.subr.bf16.mxu0 0
    %2044 = vmatpush1.bf16.msra.mxu0 0
    %2045 = vmatprep.subr.bf16.mxu0 0
    %2046 = vmatpush1.bf16.msra.mxu0 0
    %2047 = vmatprep.subr.bf16.mxu0 0
    %2048 = vmatpush1.bf16.msra.mxu0 0
    %2049 = vmatprep.subr.bf16.mxu0 0
    %2050 = vmatpush1.bf16.msra.mxu0 0
    %2051 = vmatprep.subr.bf16.mxu0 0
    %2052 = vmatpush1.bf16.msra.mxu0 0
    %2053 = vmatprep.mubr.bf16.mxu0 0
    %2054 = vmatmul.mubr.bf16.gmra.mrb[0].mxu0 %v2013
    %v2055 = vpop.f32.mrb[0].mxu0
    %v2056 = vadd.f32 0.0, %v2055
    %v2057 = vpop.f32.mrb[0].mxu0
    %v2058 = vpop.f32.mrb[0].mxu0
    %v2059 = vadd.f32 0.0, %v2058
    %v2060 = vpop.f32.mrb[0].mxu0
    %2061 = vmatprep.mubr.bf16.mxu0 0
    %2062 = vmatmul.mubr.bf16.gmra.mrb[0].mxu0 %v2014
    %v2063 = vpop.f32.mrb[0].mxu0
    %v2064 = vadd.f32 0.0, %v2063
    %v2065 = vpop.f32.mrb[0].mxu0
    %v2066 = vpop.f32.mrb[0].mxu0
    %v2067 = vadd.f32 0.0, %v2066
    %v2068 = vpop.f32.mrb[0].mxu0
    %2069 = vmatprep.mubr.bf16.mxu0 0
    %2070 = vmatmul.mubr.bf16.gmra.mrb[0].mxu0 %v2015
    %v2071 = vpop.f32.mrb[0].mxu0
    %v2072 = vadd.f32 0.0, %v2071
    %v2073 = vpop.f32.mrb[0].mxu0
    %v2074 = vpop.f32.mrb[0].mxu0
    %v2075 = vadd.f32 0.0, %v2074
    %v2076 = vpop.f32.mrb[0].mxu0
    %2077 = vmatprep.mubr.bf16.mxu0 0
    %2078 = vmatmul.mubr.bf16.gmra.mrb[0].mxu0 %v2016
    %v2079 = vpop.f32.mrb[0].mxu0
    %v2080 = vadd.f32 0.0, %v2079
    %v2081 = vpop.f32.mrb[0].mxu0
    %v2082 = vpop.f32.mrb[0].mxu0
    %v2083 = vadd.f32 0.0, %v2082
    %v2084 = vpop.f32.mrb[0].mxu0
    %2085 = vmatprep.mubr.bf16.mxu0 0
    %2086 = vmatmul.mubr.bf16.gmra.mrb[0].mxu0 %v2017
    %v2087 = vpop.f32.mrb[0].mxu0
    %v2088 = vadd.f32 0.0, %v2087
    %v2089 = vpop.f32.mrb[0].mxu0
    %v2090 = vpop.f32.mrb[0].mxu0
    %v2091 = vadd.f32 0.0, %v2090
    %v2092 = vpop.f32.mrb[0].mxu0
    %2093 = vmatprep.mubr.bf16.mxu0 0
    %2094 = vmatmul.mubr.bf16.gmra.mrb[0].mxu0 %v2018
    %v2095 = vpop.f32.mrb[0].mxu0
    %v2096 = vadd.f32 0.0, %v2095
    %v2097 = vpop.f32.mrb[0].mxu0
    %v2098 = vpop.f32.mrb[0].mxu0
    %v2099 = vadd.f32 0.0, %v2098
    %v2100 = vpop.f32.mrb[0].mxu0
    %2101 = vmatprep.mubr.bf16.mxu0 0
    %2102 = vmatmul.mubr.bf16.gmra.mrb[0].mxu0 %v2019
    %v2103 = vpop.f32.mrb[0].mxu0
    %v2104 = vadd.f32 0.0, %v2103
    %v2105 = vpop.f32.mrb[0].mxu0
    %v2106 = vpop.f32.mrb[0].mxu0
    %v2107 = vadd.f32 0.0, %v2106
    %v2108 = vpop.f32.mrb[0].mxu0
    %2109 = vmatprep.mubr.bf16.mxu0 0
    %2110 = vmatmul.mubr.bf16.gmra.mrb[0].mxu0 %v2020
    %v2111 = vpop.f32.mrb[0].mxu0
    %v2112 = vadd.f32 0.0, %v2111
    %v2113 = vpop.f32.mrb[0].mxu0
    %v2114 = vpop.f32.mrb[0].mxu0
    %v2115 = vadd.f32 0.0, %v2114
    %v2116 = vpop.f32.mrb[0].mxu0
    %2117 = vdwg.mxu0
    %v2118 = vadd.f32 %v2056, 3.0
    %v2119 = vadd.f32 %v2059, 3.0
    %v2120 = vadd.f32 %v2064, 3.0
    %v2121 = vadd.f32 %v2067, 3.0
    %v2122 = vadd.f32 %v2072, 3.0
    %v2123 = vadd.f32 %v2075, 3.0
    %v2124 = vadd.f32 %v2080, 3.0
    %v2125 = vadd.f32 %v2083, 3.0
    %v2126 = vadd.f32 %v2088, 3.0
    %v2127 = vadd.f32 %v2091, 3.0
    %v2128 = vadd.f32 %v2096, 3.0
    %v2129 = vadd.f32 %v2099, 3.0
    %v2130 = vadd.f32 %v2104, 3.0
    %v2131 = vadd.f32 %v2107, 3.0
    %v2132 = vadd.f32 %v2112, 3.0
    %v2133 = vadd.f32 %v2115, 3.0
    %v2134 = vmax.f32 %v2118, 0.0
    %v2135 = vmax.f32 %v2119, 0.0
    %v2136 = vmax.f32 %v2120, 0.0
    %v2137 = vmax.f32 %v2121, 0.0
    %v2138 = vmax.f32 %v2122, 0.0
    %v2139 = vmax.f32 %v2123, 0.0
    %v2140 = vmax.f32 %v2124, 0.0
    %v2141 = vmax.f32 %v2125, 0.0
    %v2142 = vmax.f32 %v2126, 0.0
    %v2143 = vmax.f32 %v2127, 0.0
    %v2144 = vmax.f32 %v2128, 0.0
    %v2145 = vmax.f32 %v2129, 0.0
    %v2146 = vmax.f32 %v2130, 0.0
    %v2147 = vmax.f32 %v2131, 0.0
    %v2148 = vmax.f32 %v2132, 0.0
    %v2149 = vmax.f32 %v2133, 0.0
    %v2150 = vmin.f32 %v2134, 6.0
    %v2151 = vmin.f32 %v2135, 6.0
    %v2152 = vmin.f32 %v2136, 6.0
    %v2153 = vmin.f32 %v2137, 6.0
    %v2154 = vmin.f32 %v2138, 6.0
    %v2155 = vmin.f32 %v2139, 6.0
    %v2156 = vmin.f32 %v2140, 6.0
    %v2157 = vmin.f32 %v2141, 6.0
    %v2158 = vmin.f32 %v2142, 6.0
    %v2159 = vmin.f32 %v2143, 6.0
    %v2160 = vmin.f32 %v2144, 6.0
    %v2161 = vmin.f32 %v2145, 6.0
    %v2162 = vmin.f32 %v2146, 6.0
    %v2163 = vmin.f32 %v2147, 6.0
    %v2164 = vmin.f32 %v2148, 6.0
    %v2165 = vmin.f32 %v2149, 6.0
    %v2166 = vmul.f32 %v2056, %v2150
    %v2167 = vmul.f32 %v2059, %v2151
    %v2168 = vmul.f32 %v2064, %v2152
    %v2169 = vmul.f32 %v2067, %v2153
    %v2170 = vmul.f32 %v2072, %v2154
    %v2171 = vmul.f32 %v2075, %v2155
    %v2172 = vmul.f32 %v2080, %v2156
    %v2173 = vmul.f32 %v2083, %v2157
    %v2174 = vmul.f32 %v2088, %v2158
    %v2175 = vmul.f32 %v2091, %v2159
    %v2176 = vmul.f32 %v2096, %v2160
    %v2177 = vmul.f32 %v2099, %v2161
    %v2178 = vmul.f32 %v2104, %v2162
    %v2179 = vmul.f32 %v2107, %v2163
    %v2180 = vmul.f32 %v2112, %v2164
    %v2181 = vmul.f32 %v2115, %v2165
    %v2182 = vmul.f32 %v2166, 0.16666667
    %v2183 = vmul.f32 %v2167, 0.16666667
    %v2184 = vmul.f32 %v2168, 0.16666667
    %v2185 = vmul.f32 %v2169, 0.16666667
    %v2186 = vmul.f32 %v2170, 0.16666667
    %v2187 = vmul.f32 %v2171, 0.16666667
    %v2188 = vmul.f32 %v2172, 0.16666667
    %v2189 = vmul.f32 %v2173, 0.16666667
    %v2190 = vmul.f32 %v2174, 0.16666667
    %v2191 = vmul.f32 %v2175, 0.16666667
    %v2192 = vmul.f32 %v2176, 0.16666667
    %v2193 = vmul.f32 %v2177, 0.16666667
    %v2194 = vmul.f32 %v2178, 0.16666667
    %v2195 = vmul.f32 %v2179, 0.16666667
    %v2196 = vmul.f32 %v2180, 0.16666667
    %v2197 = vmul.f32 %v2181, 0.16666667
    %v2198 = vpack.c.bf16 %v2183, %v2182
    %v2199 = vpack.c.bf16 %v2185, %v2184
    %v2200 = vpack.c.bf16 %v2187, %v2186
    %v2201 = vpack.c.bf16 %v2189, %v2188
    %v2202 = vpack.c.bf16 %v2191, %v2190
    %v2203 = vpack.c.bf16 %v2193, %v2192
    %v2204 = vpack.c.bf16 %v2195, %v2194
    %v2205 = vpack.c.bf16 %v2197, %v2196
    %s2206 = scalar_lea.vmem %s7, 8
    %v2207 = vld [vmem:[%s2206] sm:$0xf]
    %v2208 = vld [vmem:[%s2206 + $0x4] sm:$0xf]
    %v2211 = vunpack.c.l.b16 %v2207
    %v2212 = vunpack.c.l.b16 %v2208
    %v2213 = vpack.c.b16 %v2212, %v2211
    %v2216 = vsel %vm1163, %v2198, 0
    %v2219 = vsel %vm1163, %v2199, 0
    %v2222 = vsel %vm1163, %v2200, 0
    %v2225 = vsel %vm1163, %v2201, 0
    %v2228 = vsel %vm1163, %v2202, 0
    %v2231 = vsel %vm1163, %v2203, 0
    %v2234 = vsel %vm1163, %v2204, 0
    %v2237 = vsel %vm1163, %v2205, 0
    %2239 = vmatprep.subr.bf16.mxu0 0
    %2240 = vmatpush1.bf16.msra.mxu0 %v2213
    %2241 = vmatprep.subr.bf16.mxu0 0
    %2242 = vmatpush1.bf16.msra.mxu0 0
    %2243 = vmatprep.subr.bf16.mxu0 0
    %2244 = vmatpush1.bf16.msra.mxu0 0
    %2245 = vmatprep.subr.bf16.mxu0 0
    %2246 = vmatpush1.bf16.msra.mxu0 0
    %2247 = vmatprep.subr.bf16.mxu0 0
    %2248 = vmatpush1.bf16.msra.mxu0 0
    %2249 = vmatprep.subr.bf16.mxu0 0
    %2250 = vmatpush1.bf16.msra.mxu0 0
    %2251 = vmatprep.subr.bf16.mxu0 0
    %2252 = vmatpush1.bf16.msra.mxu0 0
    %2253 = vmatprep.subr.bf16.mxu0 0
    %2254 = vmatpush1.bf16.msra.mxu0 0
    %2255 = vmatprep.subr.bf16.mxu0 0
    %2256 = vmatpush1.bf16.msra.mxu0 0
    %2257 = vmatprep.subr.bf16.mxu0 0
    %2258 = vmatpush1.bf16.msra.mxu0 0
    %2259 = vmatprep.subr.bf16.mxu0 0
    %2260 = vmatpush1.bf16.msra.mxu0 0
    %2261 = vmatprep.subr.bf16.mxu0 0
    %2262 = vmatpush1.bf16.msra.mxu0 0
    %2263 = vmatprep.subr.bf16.mxu0 0
    %2264 = vmatpush1.bf16.msra.mxu0 0
    %2265 = vmatprep.subr.bf16.mxu0 0
    %2266 = vmatpush1.bf16.msra.mxu0 0
    %2267 = vmatprep.subr.bf16.mxu0 0
    %2268 = vmatpush1.bf16.msra.mxu0 0
    %2269 = vmatprep.subr.bf16.mxu0 0
    %2270 = vmatpush1.bf16.msra.mxu0 0
    %2271 = vmatprep.mubr.bf16.mxu0 0
    %2272 = vmatmul.mubr.bf16.gmra.mrb[0].mxu0 %v2216
    %v2273 = vpop.f32.mrb[0].mxu0
    %v2274 = vadd.f32 0.0, %v2273
    %v2275 = vpop.f32.mrb[0].mxu0
    %v2276 = vpop.f32.mrb[0].mxu0
    %v2277 = vadd.f32 0.0, %v2276
    %v2278 = vpop.f32.mrb[0].mxu0
    %2279 = vmatprep.mubr.bf16.mxu0 0
    %2280 = vmatmul.mubr.bf16.gmra.mrb[0].mxu0 %v2219
    %v2281 = vpop.f32.mrb[0].mxu0
    %v2282 = vadd.f32 0.0, %v2281
    %v2283 = vpop.f32.mrb[0].mxu0
    %v2284 = vpop.f32.mrb[0].mxu0
    %v2285 = vadd.f32 0.0, %v2284
    %v2286 = vpop.f32.mrb[0].mxu0
    %2287 = vmatprep.mubr.bf16.mxu0 0
    %2288 = vmatmul.mubr.bf16.gmra.mrb[0].mxu0 %v2222
    %v2289 = vpop.f32.mrb[0].mxu0
    %v2290 = vadd.f32 0.0, %v2289
    %v2291 = vpop.f32.mrb[0].mxu0
    %v2292 = vpop.f32.mrb[0].mxu0
    %v2293 = vadd.f32 0.0, %v2292
    %v2294 = vpop.f32.mrb[0].mxu0
    %2295 = vmatprep.mubr.bf16.mxu0 0
    %2296 = vmatmul.mubr.bf16.gmra.mrb[0].mxu0 %v2225
    %v2297 = vpop.f32.mrb[0].mxu0
    %v2298 = vadd.f32 0.0, %v2297
    %v2299 = vpop.f32.mrb[0].mxu0
    %v2300 = vpop.f32.mrb[0].mxu0
    %v2301 = vadd.f32 0.0, %v2300
    %v2302 = vpop.f32.mrb[0].mxu0
    %2303 = vmatprep.mubr.bf16.mxu0 0
    %2304 = vmatmul.mubr.bf16.gmra.mrb[0].mxu0 %v2228
    %v2305 = vpop.f32.mrb[0].mxu0
    %v2306 = vadd.f32 0.0, %v2305
    %v2307 = vpop.f32.mrb[0].mxu0
    %v2308 = vpop.f32.mrb[0].mxu0
    %v2309 = vadd.f32 0.0, %v2308
    %v2310 = vpop.f32.mrb[0].mxu0
    %2311 = vmatprep.mubr.bf16.mxu0 0
    %2312 = vmatmul.mubr.bf16.gmra.mrb[0].mxu0 %v2231
    %v2313 = vpop.f32.mrb[0].mxu0
    %v2314 = vadd.f32 0.0, %v2313
    %v2315 = vpop.f32.mrb[0].mxu0
    %v2316 = vpop.f32.mrb[0].mxu0
    %v2317 = vadd.f32 0.0, %v2316
    %v2318 = vpop.f32.mrb[0].mxu0
    %2319 = vmatprep.mubr.bf16.mxu0 0
    %2320 = vmatmul.mubr.bf16.gmra.mrb[0].mxu0 %v2234
    %v2321 = vpop.f32.mrb[0].mxu0
    %v2322 = vadd.f32 0.0, %v2321
    %v2323 = vpop.f32.mrb[0].mxu0
    %v2324 = vpop.f32.mrb[0].mxu0
    %v2325 = vadd.f32 0.0, %v2324
    %v2326 = vpop.f32.mrb[0].mxu0
    %2327 = vmatprep.mubr.bf16.mxu0 0
    %2328 = vmatmul.mubr.bf16.gmra.mrb[0].mxu0 %v2237
    %v2329 = vpop.f32.mrb[0].mxu0
    %v2330 = vadd.f32 0.0, %v2329
    %v2331 = vpop.f32.mrb[0].mxu0
    %v2332 = vpop.f32.mrb[0].mxu0
    %v2333 = vadd.f32 0.0, %v2332
    %v2334 = vpop.f32.mrb[0].mxu0
    %2335 = vdwg.mxu0
    %v2336 = vadd.f32 %v1285, %v2274
    %v2337 = vadd.f32 %v1286, %v2277
    %v2338 = vadd.f32 %v1287, %v2282
    %v2339 = vadd.f32 %v1288, %v2285
    %v2340 = vadd.f32 %v1289, %v2290
    %v2341 = vadd.f32 %v1290, %v2293
    %v2342 = vadd.f32 %v1291, %v2298
    %v2343 = vadd.f32 %v1292, %v2301
    %v2344 = vadd.f32 %v1293, %v2306
    %v2345 = vadd.f32 %v1294, %v2309
    %v2346 = vadd.f32 %v1295, %v2314
    %v2347 = vadd.f32 %v1296, %v2317
    %v2348 = vadd.f32 %v1297, %v2322
    %v2349 = vadd.f32 %v1298, %v2325
    %v2350 = vadd.f32 %v1299, %v2330
    %v2351 = vadd.f32 %v1300, %v2333
    %v2352 = vpack.c.bf16 %v2337, %v2336
    %v2353 = vpack.c.bf16 %v2339, %v2338
    %v2354 = vpack.c.bf16 %v2341, %v2340
    %v2355 = vpack.c.bf16 %v2343, %v2342
    %v2356 = vpack.c.bf16 %v2345, %v2344
    %v2357 = vpack.c.bf16 %v2347, %v2346
    %v2358 = vpack.c.bf16 %v2349, %v2348
    %v2359 = vpack.c.bf16 %v2351, %v2350
    %v2360 = vld [vmem:[#allocation8] sm:$0xf]
    %v2361 = vld [vmem:[#allocation8 + $0x4] sm:$0xf]
    %v2362 = vld [vmem:[#allocation8 + $0x8] sm:$0xf]
    %v2363 = vld [vmem:[#allocation8 + $0xc] sm:$0xf]
    %v2364 = vld [vmem:[#allocation10] sm:$0x1]
    %v2366 = vlaneseq
    %v2367 = vshrl.u32 %v2366, 7
    %v2368 = vsub.s32 0, %v2367
    %v2369 = vrot.slane %v2364, %v2368
    %v2375 = vunpack.c.l.b16 %v2360
    %v2376 = vunpack.c.l.b16 %v2361
    %v2377 = vunpack.c.l.b16 %v2362
    %v2378 = vunpack.c.l.b16 %v2363
    %v2379 = vpack.c.b16 %v2376, %v2375
    %v2380 = vpack.c.b16 %v2378, %v2377
    %v2384 = vsel %vm254, %v2352, 0
    %v2387 = vsel %vm254, %v2353, 0
    %v2390 = vsel %vm254, %v2354, 0
    %v2393 = vsel %vm254, %v2355, 0
    %v2396 = vsel %vm254, %v2356, 0
    %v2399 = vsel %vm254, %v2357, 0
    %v2402 = vsel %vm254, %v2358, 0
    %v2405 = vsel %vm254, %v2359, 0
    %2407 = vmatprep.subr.bf16.mxu0 0
    %2408 = vmatpush1.bf16.msra.mxu0 %v2379
    %2409 = vmatprep.subr.bf16.mxu0 0
    %2410 = vmatpush1.bf16.msra.mxu0 %v2380
    %2411 = vmatprep.subr.bf16.mxu0 0
    %2412 = vmatpush1.bf16.msra.mxu0 0
    %2413 = vmatprep.subr.bf16.mxu0 0
    %2414 = vmatpush1.bf16.msra.mxu0 0
    %2415 = vmatprep.subr.bf16.mxu0 0
    %2416 = vmatpush1.bf16.msra.mxu0 0
    %2417 = vmatprep.subr.bf16.mxu0 0
    %2418 = vmatpush1.bf16.msra.mxu0 0
    %2419 = vmatprep.subr.bf16.mxu0 0
    %2420 = vmatpush1.bf16.msra.mxu0 0
    %2421 = vmatprep.subr.bf16.mxu0 0
    %2422 = vmatpush1.bf16.msra.mxu0 0
    %2423 = vmatprep.subr.bf16.mxu0 0
    %2424 = vmatpush1.bf16.msra.mxu0 0
    %2425 = vmatprep.subr.bf16.mxu0 0
    %2426 = vmatpush1.bf16.msra.mxu0 0
    %2427 = vmatprep.subr.bf16.mxu0 0
    %2428 = vmatpush1.bf16.msra.mxu0 0
    %2429 = vmatprep.subr.bf16.mxu0 0
    %2430 = vmatpush1.bf16.msra.mxu0 0
    %2431 = vmatprep.subr.bf16.mxu0 0
    %2432 = vmatpush1.bf16.msra.mxu0 0
    %2433 = vmatprep.subr.bf16.mxu0 0
    %2434 = vmatpush1.bf16.msra.mxu0 0
    %2435 = vmatprep.subr.bf16.mxu0 0
    %2436 = vmatpush1.bf16.msra.mxu0 0
    %2437 = vmatprep.subr.bf16.mxu0 0
    %2438 = vmatpush1.bf16.msra.mxu0 0
    %2439 = vmatprep.mubr.bf16.mxu0 0
    %2440 = vmatmul.mubr.bf16.gmra.mrb[0].mxu0 %v2384
    %v2441 = vpop.f32.mrb[0].mxu0
    %v2442 = vadd.f32 %v2369, %v2441
    %v2443 = vpop.f32.mrb[0].mxu0
    %v2444 = vpop.f32.mrb[0].mxu0
    %v2445 = vadd.f32 %v2369, %v2444
    %v2446 = vpop.f32.mrb[0].mxu0
    %2447 = vmatprep.mubr.bf16.mxu0 0
    %2448 = vmatmul.mubr.bf16.gmra.mrb[0].mxu0 %v2387
    %v2449 = vpop.f32.mrb[0].mxu0
    %v2450 = vadd.f32 %v2369, %v2449
    %v2451 = vpop.f32.mrb[0].mxu0
    %v2452 = vpop.f32.mrb[0].mxu0
    %v2453 = vadd.f32 %v2369, %v2452
    %v2454 = vpop.f32.mrb[0].mxu0
    %2455 = vmatprep.mubr.bf16.mxu0 0
    %2456 = vmatmul.mubr.bf16.gmra.mrb[0].mxu0 %v2390
    %v2457 = vpop.f32.mrb[0].mxu0
    %v2458 = vadd.f32 %v2369, %v2457
    %v2459 = vpop.f32.mrb[0].mxu0
    %v2460 = vpop.f32.mrb[0].mxu0
    %v2461 = vadd.f32 %v2369, %v2460
    %v2462 = vpop.f32.mrb[0].mxu0
    %2463 = vmatprep.mubr.bf16.mxu0 0
    %2464 = vmatmul.mubr.bf16.gmra.mrb[0].mxu0 %v2393
    %v2465 = vpop.f32.mrb[0].mxu0
    %v2466 = vadd.f32 %v2369, %v2465
    %v2467 = vpop.f32.mrb[0].mxu0
    %v2468 = vpop.f32.mrb[0].mxu0
    %v2469 = vadd.f32 %v2369, %v2468
    %v2470 = vpop.f32.mrb[0].mxu0
    %2471 = vmatprep.mubr.bf16.mxu0 0
    %2472 = vmatmul.mubr.bf16.gmra.mrb[0].mxu0 %v2396
    %v2473 = vpop.f32.mrb[0].mxu0
    %v2474 = vadd.f32 %v2369, %v2473
    %v2475 = vpop.f32.mrb[0].mxu0
    %v2476 = vpop.f32.mrb[0].mxu0
    %v2477 = vadd.f32 %v2369, %v2476
    %v2478 = vpop.f32.mrb[0].mxu0
    %2479 = vmatprep.mubr.bf16.mxu0 0
    %2480 = vmatmul.mubr.bf16.gmra.mrb[0].mxu0 %v2399
    %v2481 = vpop.f32.mrb[0].mxu0
    %v2482 = vadd.f32 %v2369, %v2481
    %v2483 = vpop.f32.mrb[0].mxu0
    %v2484 = vpop.f32.mrb[0].mxu0
    %v2485 = vadd.f32 %v2369, %v2484
    %v2486 = vpop.f32.mrb[0].mxu0
    %2487 = vmatprep.mubr.bf16.mxu0 0
    %2488 = vmatmul.mubr.bf16.gmra.mrb[0].mxu0 %v2402
    %v2489 = vpop.f32.mrb[0].mxu0
    %v2490 = vadd.f32 %v2369, %v2489
    %v2491 = vpop.f32.mrb[0].mxu0
    %v2492 = vpop.f32.mrb[0].mxu0
    %v2493 = vadd.f32 %v2369, %v2492
    %v2494 = vpop.f32.mrb[0].mxu0
    %2495 = vmatprep.mubr.bf16.mxu0 0
    %2496 = vmatmul.mubr.bf16.gmra.mrb[0].mxu0 %v2405
    %v2497 = vpop.f32.mrb[0].mxu0
    %v2498 = vadd.f32 %v2369, %v2497
    %v2499 = vpop.f32.mrb[0].mxu0
    %v2500 = vpop.f32.mrb[0].mxu0
    %v2501 = vadd.f32 %v2369, %v2500
    %v2502 = vpop.f32.mrb[0].mxu0
    %2503 = vdwg.mxu0
    %v2504 = vadd.f32 %v2442, 3.0
    %v2505 = vadd.f32 %v2445, 3.0
    %v2506 = vadd.f32 %v2450, 3.0
    %v2507 = vadd.f32 %v2453, 3.0
    %v2508 = vadd.f32 %v2458, 3.0
    %v2509 = vadd.f32 %v2461, 3.0
    %v2510 = vadd.f32 %v2466, 3.0
    %v2511 = vadd.f32 %v2469, 3.0
    %v2512 = vadd.f32 %v2474, 3.0
    %v2513 = vadd.f32 %v2477, 3.0
    %v2514 = vadd.f32 %v2482, 3.0
    %v2515 = vadd.f32 %v2485, 3.0
    %v2516 = vadd.f32 %v2490, 3.0
    %v2517 = vadd.f32 %v2493, 3.0
    %v2518 = vadd.f32 %v2498, 3.0
    %v2519 = vadd.f32 %v2501, 3.0
    %v2520 = vmax.f32 %v2504, 0.0
    %v2521 = vmax.f32 %v2505, 0.0
    %v2522 = vmax.f32 %v2506, 0.0
    %v2523 = vmax.f32 %v2507, 0.0
    %v2524 = vmax.f32 %v2508, 0.0
    %v2525 = vmax.f32 %v2509, 0.0
    %v2526 = vmax.f32 %v2510, 0.0
    %v2527 = vmax.f32 %v2511, 0.0
    %v2528 = vmax.f32 %v2512, 0.0
    %v2529 = vmax.f32 %v2513, 0.0
    %v2530 = vmax.f32 %v2514, 0.0
    %v2531 = vmax.f32 %v2515, 0.0
    %v2532 = vmax.f32 %v2516, 0.0
    %v2533 = vmax.f32 %v2517, 0.0
    %v2534 = vmax.f32 %v2518, 0.0
    %v2535 = vmax.f32 %v2519, 0.0
    %v2536 = vmin.f32 %v2520, 6.0
    %v2537 = vmin.f32 %v2521, 6.0
    %v2538 = vmin.f32 %v2522, 6.0
    %v2539 = vmin.f32 %v2523, 6.0
    %v2540 = vmin.f32 %v2524, 6.0
    %v2541 = vmin.f32 %v2525, 6.0
    %v2542 = vmin.f32 %v2526, 6.0
    %v2543 = vmin.f32 %v2527, 6.0
    %v2544 = vmin.f32 %v2528, 6.0
    %v2545 = vmin.f32 %v2529, 6.0
    %v2546 = vmin.f32 %v2530, 6.0
    %v2547 = vmin.f32 %v2531, 6.0
    %v2548 = vmin.f32 %v2532, 6.0
    %v2549 = vmin.f32 %v2533, 6.0
    %v2550 = vmin.f32 %v2534, 6.0
    %v2551 = vmin.f32 %v2535, 6.0
    %v2552 = vmul.f32 %v2442, %v2536
    %v2553 = vmul.f32 %v2445, %v2537
    %v2554 = vmul.f32 %v2450, %v2538
    %v2555 = vmul.f32 %v2453, %v2539
    %v2556 = vmul.f32 %v2458, %v2540
    %v2557 = vmul.f32 %v2461, %v2541
    %v2558 = vmul.f32 %v2466, %v2542
    %v2559 = vmul.f32 %v2469, %v2543
    %v2560 = vmul.f32 %v2474, %v2544
    %v2561 = vmul.f32 %v2477, %v2545
    %v2562 = vmul.f32 %v2482, %v2546
    %v2563 = vmul.f32 %v2485, %v2547
    %v2564 = vmul.f32 %v2490, %v2548
    %v2565 = vmul.f32 %v2493, %v2549
    %v2566 = vmul.f32 %v2498, %v2550
    %v2567 = vmul.f32 %v2501, %v2551
    %v2568 = vmul.f32 %v2552, 0.16666667
    %v2569 = vmul.f32 %v2553, 0.16666667
    %v2570 = vmul.f32 %v2554, 0.16666667
    %v2571 = vmul.f32 %v2555, 0.16666667
    %v2572 = vmul.f32 %v2556, 0.16666667
    %v2573 = vmul.f32 %v2557, 0.16666667
    %v2574 = vmul.f32 %v2558, 0.16666667
    %v2575 = vmul.f32 %v2559, 0.16666667
    %v2576 = vmul.f32 %v2560, 0.16666667
    %v2577 = vmul.f32 %v2561, 0.16666667
    %v2578 = vmul.f32 %v2562, 0.16666667
    %v2579 = vmul.f32 %v2563, 0.16666667
    %v2580 = vmul.f32 %v2564, 0.16666667
    %v2581 = vmul.f32 %v2565, 0.16666667
    %v2582 = vmul.f32 %v2566, 0.16666667
    %v2583 = vmul.f32 %v2567, 0.16666667
    %v2584 = vpack.c.bf16 %v2569, %v2568
    %v2585 = vpack.c.bf16 %v2571, %v2570
    %v2586 = vpack.c.bf16 %v2573, %v2572
    %v2587 = vpack.c.bf16 %v2575, %v2574
    %v2588 = vpack.c.bf16 %v2577, %v2576
    %v2589 = vpack.c.bf16 %v2579, %v2578
    %v2590 = vpack.c.bf16 %v2581, %v2580
    %v2591 = vpack.c.bf16 %v2583, %v2582
    %v2592 = vld [vmem:[%s11] sm:$0xf]
    %v2593 = vld [vmem:[%s11 + $0x4] sm:$0xf]
    %v2594 = vld [vmem:[%s11 + $0x8] sm:$0xf]
    %v2595 = vld [vmem:[%s11 + $0xc] sm:$0xf]
    %v2596 = vld [vmem:[%s11 + $0x10] sm:$0xf]
    %v2597 = vld [vmem:[%s11 + $0x14] sm:$0xf]
    %v2598 = vld [vmem:[%s11 + $0x18] sm:$0xf]
    %v2599 = vld [vmem:[%s11 + $0x1c] sm:$0xf]
    %v2600 = vld [vmem:[#allocation11] sm:$0x1]
    %v2602 = vlaneseq
    %v2603 = vshrl.u32 %v2602, 7
    %v2604 = vsub.s32 0, %v2603
    %v2605 = vrot.slane %v2600, %v2604
    %v2615 = vunpack.c.l.b16 %v2592
    %v2616 = vunpack.c.l.b16 %v2593
    %v2617 = vunpack.c.l.b16 %v2594
    %v2618 = vunpack.c.l.b16 %v2595
    %v2619 = vunpack.c.l.b16 %v2596
    %v2620 = vunpack.c.l.b16 %v2597
    %v2621 = vunpack.c.l.b16 %v2598
    %v2622 = vunpack.c.l.b16 %v2599
    %v2623 = vpack.c.b16 %v2616, %v2615
    %v2624 = vpack.c.b16 %v2618, %v2617
    %v2625 = vpack.c.b16 %v2620, %v2619
    %v2626 = vpack.c.b16 %v2622, %v2621
    %vm2631 = vcmask 523264
    %v2633 = vsel %vm2631, %v2584, 0
    %v2636 = vsel %vm2631, %v2585, 0
    %v2639 = vsel %vm2631, %v2586, 0
    %v2642 = vsel %vm2631, %v2587, 0
    %v2645 = vsel %vm2631, %v2588, 0
    %v2648 = vsel %vm2631, %v2589, 0
    %v2651 = vsel %vm2631, %v2590, 0
    %v2654 = vsel %vm2631, %v2591, 0
    %2656 = vmatprep.subr.bf16.mxu0 0
    %2657 = vmatpush1.bf16.msra.mxu0 %v2623
    %2658 = vmatprep.subr.bf16.mxu0 0
    %2659 = vmatpush1.bf16.msra.mxu0 %v2624
    %2660 = vmatprep.subr.bf16.mxu0 0
    %2661 = vmatpush1.bf16.msra.mxu0 %v2625
    %2662 = vmatprep.subr.bf16.mxu0 0
    %2663 = vmatpush1.bf16.msra.mxu0 %v2626
    %2664 = vmatprep.subr.bf16.mxu0 0
    %2665 = vmatpush1.bf16.msra.mxu0 0
    %2666 = vmatprep.subr.bf16.mxu0 0
    %2667 = vmatpush1.bf16.msra.mxu0 0
    %2668 = vmatprep.subr.bf16.mxu0 0
    %2669 = vmatpush1.bf16.msra.mxu0 0
    %2670 = vmatprep.subr.bf16.mxu0 0
    %2671 = vmatpush1.bf16.msra.mxu0 0
    %2672 = vmatprep.subr.bf16.mxu0 0
    %2673 = vmatpush1.bf16.msra.mxu0 0
    %2674 = vmatprep.subr.bf16.mxu0 0
    %2675 = vmatpush1.bf16.msra.mxu0 0
    %2676 = vmatprep.subr.bf16.mxu0 0
    %2677 = vmatpush1.bf16.msra.mxu0 0
    %2678 = vmatprep.subr.bf16.mxu0 0
    %2679 = vmatpush1.bf16.msra.mxu0 0
    %2680 = vmatprep.subr.bf16.mxu0 0
    %2681 = vmatpush1.bf16.msra.mxu0 0
    %2682 = vmatprep.subr.bf16.mxu0 0
    %2683 = vmatpush1.bf16.msra.mxu0 0
    %2684 = vmatprep.subr.bf16.mxu0 0
    %2685 = vmatpush1.bf16.msra.mxu0 0
    %2686 = vmatprep.subr.bf16.mxu0 0
    %2687 = vmatpush1.bf16.msra.mxu0 0
    %2688 = vmatprep.mubr.bf16.mxu0 0
    %2689 = vmatmul.mubr.bf16.gmra.mrb[0].mxu0 %v2633
    %v2690 = vpop.f32.mrb[0].mxu0
    %v2691 = vadd.f32 %v2605, %v2690
    %v2692 = vpop.f32.mrb[0].mxu0
    %v2693 = vpop.f32.mrb[0].mxu0
    %v2694 = vadd.f32 %v2605, %v2693
    %v2695 = vpop.f32.mrb[0].mxu0
    %2696 = vmatprep.mubr.bf16.mxu0 0
    %2697 = vmatmul.mubr.bf16.gmra.mrb[0].mxu0 %v2636
    %v2698 = vpop.f32.mrb[0].mxu0
    %v2699 = vadd.f32 %v2605, %v2698
    %v2700 = vpop.f32.mrb[0].mxu0
    %v2701 = vpop.f32.mrb[0].mxu0
    %v2702 = vadd.f32 %v2605, %v2701
    %v2703 = vpop.f32.mrb[0].mxu0
    %2704 = vmatprep.mubr.bf16.mxu0 0
    %2705 = vmatmul.mubr.bf16.gmra.mrb[0].mxu0 %v2639
    %v2706 = vpop.f32.mrb[0].mxu0
    %v2707 = vadd.f32 %v2605, %v2706
    %v2708 = vpop.f32.mrb[0].mxu0
    %v2709 = vpop.f32.mrb[0].mxu0
    %v2710 = vadd.f32 %v2605, %v2709
    %v2711 = vpop.f32.mrb[0].mxu0
    %2712 = vmatprep.mubr.bf16.mxu0 0
    %2713 = vmatmul.mubr.bf16.gmra.mrb[0].mxu0 %v2642
    %v2714 = vpop.f32.mrb[0].mxu0
    %v2715 = vadd.f32 %v2605, %v2714
    %v2716 = vpop.f32.mrb[0].mxu0
    %v2717 = vpop.f32.mrb[0].mxu0
    %v2718 = vadd.f32 %v2605, %v2717
    %v2719 = vpop.f32.mrb[0].mxu0
    %2720 = vmatprep.mubr.bf16.mxu0 0
    %2721 = vmatmul.mubr.bf16.gmra.mrb[0].mxu0 %v2645
    %v2722 = vpop.f32.mrb[0].mxu0
    %v2723 = vadd.f32 %v2605, %v2722
    %v2724 = vpop.f32.mrb[0].mxu0
    %v2725 = vpop.f32.mrb[0].mxu0
    %v2726 = vadd.f32 %v2605, %v2725
    %v2727 = vpop.f32.mrb[0].mxu0
    %2728 = vmatprep.mubr.bf16.mxu0 0
    %2729 = vmatmul.mubr.bf16.gmra.mrb[0].mxu0 %v2648
    %v2730 = vpop.f32.mrb[0].mxu0
    %v2731 = vadd.f32 %v2605, %v2730
    %v2732 = vpop.f32.mrb[0].mxu0
    %v2733 = vpop.f32.mrb[0].mxu0
    %v2734 = vadd.f32 %v2605, %v2733
    %v2735 = vpop.f32.mrb[0].mxu0
    %2736 = vmatprep.mubr.bf16.mxu0 0
    %2737 = vmatmul.mubr.bf16.gmra.mrb[0].mxu0 %v2651
    %v2738 = vpop.f32.mrb[0].mxu0
    %v2739 = vadd.f32 %v2605, %v2738
    %v2740 = vpop.f32.mrb[0].mxu0
    %v2741 = vpop.f32.mrb[0].mxu0
    %v2742 = vadd.f32 %v2605, %v2741
    %v2743 = vpop.f32.mrb[0].mxu0
    %2744 = vmatprep.mubr.bf16.mxu0 0
    %2745 = vmatmul.mubr.bf16.gmra.mrb[0].mxu0 %v2654
    %v2746 = vpop.f32.mrb[0].mxu0
    %v2747 = vadd.f32 %v2605, %v2746
    %v2748 = vpop.f32.mrb[0].mxu0
    %v2749 = vpop.f32.mrb[0].mxu0
    %v2750 = vadd.f32 %v2605, %v2749
    %v2751 = vpop.f32.mrb[0].mxu0
    %2752 = vdwg.mxu0
    %v2753 = vadd.f32 %v2691, %v2336
    %v2754 = vadd.f32 %v2694, %v2337
    %v2755 = vadd.f32 %v2699, %v2338
    %v2756 = vadd.f32 %v2702, %v2339
    %v2757 = vadd.f32 %v2707, %v2340
    %v2758 = vadd.f32 %v2710, %v2341
    %v2759 = vadd.f32 %v2715, %v2342
    %v2760 = vadd.f32 %v2718, %v2343
    %v2761 = vadd.f32 %v2723, %v2344
    %v2762 = vadd.f32 %v2726, %v2345
    %v2763 = vadd.f32 %v2731, %v2346
    %v2764 = vadd.f32 %v2734, %v2347
    %v2765 = vadd.f32 %v2739, %v2348
    %v2766 = vadd.f32 %v2742, %v2349
    %v2767 = vadd.f32 %v2747, %v2350
    %v2768 = vadd.f32 %v2750, %v2351
    %2769 = vxpose.xlu0.b32.start [1/16] %v2753, 128
    %2770 = vxpose.xlu0.b32.cont [2/16] %v2754, 128
    %2771 = vxpose.xlu0.b32.cont [3/16] %v2755, 128
    %2772 = vxpose.xlu0.b32.cont [4/16] %v2756, 128
    %2773 = vxpose.xlu0.b32.cont [5/16] %v2757, 128
    %2774 = vxpose.xlu0.b32.cont [6/16] %v2758, 128
    %2775 = vxpose.xlu0.b32.cont [7/16] %v2759, 128
    %2776 = vxpose.xlu0.b32.cont [8/16] %v2760, 128
    %2777 = vxpose.xlu0.b32.cont [9/16] 0.0, 128
    %2778 = vxpose.xlu0.b32.cont [10/16] 0.0, 128
    %2779 = vxpose.xlu0.b32.cont [11/16] 0.0, 128
    %2780 = vxpose.xlu0.b32.cont [12/16] 0.0, 128
    %2781 = vxpose.xlu0.b32.cont [13/16] 0.0, 128
    %2782 = vxpose.xlu0.b32.cont [14/16] 0.0, 128
    %2783 = vxpose.xlu0.b32.cont [15/16] 0.0, 128
    %2784 = vxpose.xlu0.b32.end [16/16] 0.0, 128
    %v2785 = vpop.trf.xlu0
    %v2786 = vpop.trf.xlu0
    %v2787 = vpop.trf.xlu0
    %v2788 = vpop.trf.xlu0
    %v2789 = vpop.trf.xlu0
    %v2790 = vpop.trf.xlu0
    %v2791 = vpop.trf.xlu0
    %v2792 = vpop.trf.xlu0
    %v2793 = vpop.trf.xlu0
    %v2794 = vpop.trf.xlu0
    %v2795 = vpop.trf.xlu0
    %v2796 = vpop.trf.xlu0
    %v2797 = vpop.trf.xlu0
    %v2798 = vpop.trf.xlu0
    %v2799 = vpop.trf.xlu0
    %v2800 = vpop.trf.xlu0
    %2801 = vst.msk [vmem:[#allocation13] sm:$0xff] %vm2631, %v2785
    %2802 = vst.msk [vmem:[#allocation13 + $0x8] sm:$0xff] %vm2631, %v2786
    %2803 = vst.msk [vmem:[#allocation13 + $0x10] sm:$0xff] %vm2631, %v2787
    %2804 = vst.msk [vmem:[#allocation13 + $0x18] sm:$0xff] %vm2631, %v2788
    %2805 = vxpose.xlu0.b32.start [1/16] %v2761, 128
    %2806 = vxpose.xlu0.b32.cont [2/16] %v2762, 128
    %2807 = vxpose.xlu0.b32.cont [3/16] %v2763, 128
    %2808 = vxpose.xlu0.b32.cont [4/16] %v2764, 128
    %2809 = vxpose.xlu0.b32.cont [5/16] %v2765, 128
    %2810 = vxpose.xlu0.b32.cont [6/16] %v2766, 128
    %2811 = vxpose.xlu0.b32.cont [7/16] %v2767, 128
    %2812 = vxpose.xlu0.b32.cont [8/16] %v2768, 128
    %2813 = vxpose.xlu0.b32.cont [9/16] 0.0, 128
    %2814 = vxpose.xlu0.b32.cont [10/16] 0.0, 128
    %2815 = vxpose.xlu0.b32.cont [11/16] 0.0, 128
    %2816 = vxpose.xlu0.b32.cont [12/16] 0.0, 128
    %2817 = vxpose.xlu0.b32.cont [13/16] 0.0, 128
    %2818 = vxpose.xlu0.b32.cont [14/16] 0.0, 128
    %2819 = vxpose.xlu0.b32.cont [15/16] 0.0, 128
    %2820 = vxpose.xlu0.b32.end [16/16] 0.0, 128
    %v2821 = vpop.trf.xlu0
    %v2822 = vpop.trf.xlu0
    %v2823 = vpop.trf.xlu0
    %v2824 = vpop.trf.xlu0
    %v2825 = vpop.trf.xlu0
    %v2826 = vpop.trf.xlu0
    %v2827 = vpop.trf.xlu0
    %v2828 = vpop.trf.xlu0
    %v2829 = vpop.trf.xlu0
    %v2830 = vpop.trf.xlu0
    %v2831 = vpop.trf.xlu0
    %v2832 = vpop.trf.xlu0
    %v2833 = vpop.trf.xlu0
    %v2834 = vpop.trf.xlu0
    %v2835 = vpop.trf.xlu0
    %v2836 = vpop.trf.xlu0
    %s2837 = scalar_lea.vmem [#allocation13], 32
    %2838 = vst.msk [vmem:[%s2837] sm:$0xff] %vm2631, %v2821
    %2839 = vst.msk [vmem:[%s2837 + $0x8] sm:$0xff] %vm2631, %v2822
    %2840 = vst.msk [vmem:[%s2837 + $0x10] sm:$0xff] %vm2631, %v2823
    %2841 = vst.msk [vmem:[%s2837 + $0x18] sm:$0xff] %vm2631, %v2824
    // Predicated region
    $region82: #{tpu_custom_call.1} parent=1 // pred_check
      _
    $region83: #{tpu_custom_call.1} parent=1 // pred_check_branch
      %2843 = sbr.rel (0) target = $region85
    $region84: #{tpu_custom_call.1} parent=1 // pred_region
      %s2845 = ssub.s32 1024, 1024
      %2846 = vsyncadd [#allocation4], %s2845
      %s2847 = sshll.u32 [#allocation13], 4
      %s2848 = int_to_ptr.vmem [resolvable:$true] %s2847
      %2853 = dma.vmem_to_hbm [thread:$0]  %s2848, 1024, %s14, [#allocation4], 128, 128, 8
    $region85: #{tpu_custom_call.1} parent=1 // pred_fallthru
      _
    // Predicated region
    $region86: #{tpu_custom_call.1} parent=1 // pred_check
      _
    $region87: #{tpu_custom_call.1} parent=1 // pred_check_branch
      %2855 = sbr.rel (0) target = $region89
    $region88: #{tpu_custom_call.1} parent=1 // pred_region
      %2856 = dma.done [#allocation4], 1024
    $region89: #{tpu_custom_call.1} parent=1 // pred_fallthru
      _
    %2857 = vsyncpa [#allocation3], 1
    %2858 = vsyncpa [#allocation6], 1
    %2859 = vsyncpa [#allocation9], 1
    %2860 = vsyncpa [#allocation12], 1
    %2861 = vsyncpa [#allocation4], 1

</llo_original>
